<compile_context>
chip_gen: v7x
topology: tpu7x:2x2x1
jax: 0.10.0
libtpu: 0.0.40
codegen_flags: <defaults>
</compile_context>

<pallas_src>
import functools

import jax
import jax.numpy as jnp
from jax.experimental import pallas as pl
from jax.experimental.pallas import tpu as pltpu


# ----------------------------- in-kernel helpers -----------------------------

def _silu(x):
    return x * jax.nn.sigmoid(x)


def _group_reduce_channels(s, cs):
    """Sum contiguous runs of `cs` channels and broadcast the group sum back to every channel.

    s: [1, C] f32.  cs == 1 -> identity (per-channel groups).  cs == 2 -> non-MXU pairwise
    reduction via an XLU lane rotate (pltpu.roll, jnp.roll semantics) + even/odd lane select.
    Anything else falls back to a block-diagonal indicator matmul (unused at this config).
    """
    if cs == 1:
        return s
    c = s.shape[-1]
    if cs == 2:
        lane = jax.lax.broadcasted_iota(jnp.int32, s.shape, s.ndim - 1)
        nxt = pltpu.roll(s, shift=c - 1, axis=s.ndim - 1)   # s[i+1] at lane i
        prv = pltpu.roll(s, shift=1, axis=s.ndim - 1)       # s[i-1] at lane i
        return s + jnp.where(lane % 2 == 0, nxt, prv)       # each lane += its pair partner
    gi = jax.lax.broadcasted_iota(jnp.int32, (c, c), 0) // cs
    gj = jax.lax.broadcasted_iota(jnp.int32, (c, c), 1) // cs
    same = (gi == gj).astype(jnp.float32)
    return jnp.dot(s, same, preferred_element_type=jnp.float32)


def _group_norm(x2d, gamma, beta, num_groups, eps=1e-5):
    """Per-sample GroupNorm on [H*W, C] f32 activations (one sample per grid step).

    Two-pass: group mean first, then variance of centered values.  All math stays f32
    (v5e has no bf16 VPU/EUP); the group reduction never touches the MXU at this config.
    """
    m, c = x2d.shape
    cs = c // num_groups
    inv_count = 1.0 / float(m * cs)
    s = _group_reduce_channels(jnp.sum(x2d, axis=0, keepdims=True), cs)       # [1, C]
    mean = s * inv_count
    xc = x2d - mean
    v = _group_reduce_channels(jnp.sum(xc * xc, axis=0, keepdims=True), cs)   # [1, C]
    inv_std = jax.lax.rsqrt(v * inv_count + eps)
    return xc * inv_std * gamma + beta


def _fill_taps(col_ref, a, c_off):
    """Write the 9 shifted 3x3 tap slabs of activation `a` [H, W, C] into im2col scratch channels
    [c_off + t*C, c_off + (t+1)*C).

    Only the one-row / one-column border strips a tap can never cover are zeroed (no full-buffer
    memset), every call, so the scratch can persist across grid steps under any core sharding.
    `a` must already be in the col dtype (a single [M, C] cast per activation).
    """
    h, w, c = a.shape
    zrow = jnp.zeros((1, w, c), col_ref.dtype)
    zcol = jnp.zeros((h, 1, c), col_ref.dtype)
    for t in range(9):                                      # 9 static slab copies, no matmuls here
        ky, kx = divmod(t, 3)
        dy, dx = ky - 1, kx - 1
        lo, hi = c_off + t * c, c_off + (t + 1) * c
        col_ref[max(0, -dy):h - max(0, dy),
                max(0, -dx):w - max(0, dx),
                lo:hi] = a[max(0, dy):h - max(0, -dy),
                           max(0, dx):w - max(0, -dx), :]
        # Border cells this tap never writes (stay logically zero-padded).
        if dy == -1:
            col_ref[0:1, :, lo:hi] = zrow
        elif dy == 1:
            col_ref[h - 1:h, :, lo:hi] = zrow
        if dx == -1:
            col_ref[:, 0:1, lo:hi] = zcol
        elif dx == 1:
            col_ref[:, w - 1:w, lo:hi] = zcol


# --------------------------------- the kernel --------------------------------

def resnet_block_kernel(x_ref, tproj_ref,
                        gn1_g_ref, gn1_b_ref, w1_ref, b1_ref,
                        gn2_g_ref, gn2_b_ref, w2s_ref, b2s_ref,
                        out_ref, col_a_ref, col_b_ref,
                        *, H, W, Cin, Cout, groups):
    M = H * W
    cdt = col_b_ref.dtype                                   # matmul/col dtype (bf16)

    x = x_ref[...]                                          # [H, W, Cin] f32 (one sample)

    # Skip conv is fused into conv2 along K: x's taps fill the tail channels of the combined col.
    _fill_taps(col_b_ref, x.astype(cdt), 9 * Cout)

    # first_half: GroupNorm -> SiLU -> Conv3x3 (single K = 9*Cin matmul, f32 accumulation)
    a1 = _silu(_group_norm(x.reshape(M, Cin), gn1_g_ref[...], gn1_b_ref[...], groups))
    _fill_taps(col_a_ref, a1.astype(cdt).reshape(H, W, Cin), 0)
    h = jnp.dot(col_a_ref[...].reshape(M, 9 * Cin), w1_ref[...],
                preferred_element_type=jnp.float32) + b1_ref[...]

    # time-embedding add (SiLU -> Linear projection precomputed in the XLA wrapper)
    h = h + tproj_ref[...]                                  # [M, Cout] + [1, Cout]

    # second_half: GroupNorm -> SiLU -> Dropout -> Conv3x3, fused with the skip conv along K.
    # TODO(synk): dropout is eval-mode identity (train-mode PyTorch RNG not reproduced).
    a2 = _silu(_group_norm(h, gn2_g_ref[...], gn2_b_ref[...], groups))
    _fill_taps(col_b_ref, a2.astype(cdt).reshape(H, W, Cout), 0)
    y = jnp.dot(col_b_ref[...].reshape(M, 9 * (Cout + Cin)), w2s_ref[...],
                preferred_element_type=jnp.float32) + b2s_ref[...]   # b2s = b2 + bs (wrapper)

    # Lane-dense, 128-aligned output stores: out block is [H, W*Cout]; adjacent w-slabs are paired
    # into [H, 2*Cout] (=128-lane) stores at lane offsets that are multiples of 128.
    y3 = y.reshape(H, W, Cout)
    if W % 2 == 0 and (2 * Cout) % 128 == 0:
        for wp in range(W // 2):
            pair = jnp.concatenate([y3[:, 2 * wp, :], y3[:, 2 * wp + 1, :]], axis=-1)
            out_ref[:, (2 * wp) * Cout:(2 * wp + 2) * Cout] = pair
    else:  # fallback when pairing would not be 128-lane aligned
        for wi in range(W):
            out_ref[:, wi * Cout:(wi + 1) * Cout] = y3[:, wi, :]


# --------------------------------- wrapper ------------------------------------

def resnet_block(x, t_emb, params, *, groups=32, matmul_dtype=jnp.bfloat16):
    N, H, W, Cin = x.shape
    Cout = params["b1"].shape[-1]

    # time_projection: SiLU -> Linear on [N, Tdim] stays in XLA (an M=N matmul is pure MXU pop
    # latency inside the kernel); the kernel only broadcast-adds the per-sample [1, Cout] row.
    tproj = (_silu(t_emb) @ params["wt"] + params["bt"]).astype(jnp.float32).reshape(N, 1, Cout)

    # Conv weights as bf16 matmul operands (f32 accumulation inside the kernel).  conv2 and the
    # skip conv share one matmul along K: stack [w2; ws] and pre-add the biases.
    w1 = params["w1"].astype(matmul_dtype)
    w2s = jnp.concatenate([params["w2"], params["ws"]], axis=0).astype(matmul_dtype)
    b2s = params["b2"] + params["bs"]
    # Tap-geometry guard: the fused K layout assumes identical 3x3 / same-padding geometry.
    assert w1.shape[0] == 9 * Cin and w2s.shape[0] == 9 * (Cout + Cin)

    kern = functools.partial(resnet_block_kernel,
                             H=H, W=W, Cin=Cin, Cout=Cout, groups=groups)

    def const_spec(a):  # whole-array parameter block; block index constant -> stays resident
        zeros = (0,) * a.ndim
        return pl.BlockSpec(a.shape, lambda n, _z=zeros: _z)

    in_specs = [
        pl.BlockSpec((None, H, W, Cin), lambda n: (n, 0, 0, 0)),    # x: one sample per grid step
        pl.BlockSpec((None, 1, Cout), lambda n: (n, 0, 0)),         # tproj row for this sample
        const_spec(params["gn1_g"]), const_spec(params["gn1_b"]),
        const_spec(w1), const_spec(params["b1"]),
        const_spec(params["gn2_g"]), const_spec(params["gn2_b"]),
        const_spec(w2s), const_spec(b2s),
    ]

    # Advisory cost estimate so XLA can schedule surrounding ops around the custom call.
    flops = 2 * N * H * W * (9 * Cin + 9 * (Cout + Cin)) * Cout
    bytes_accessed = int(4 * x.size + 4 * N * H * W * Cout + 2 * (w1.size + w2s.size)
                         + 4 * (tproj.size + 2 * Cin + 4 * Cout))
    cost = pl.CostEstimate(flops=flops,
                           transcendentals=N * H * W * (Cin + Cout),
                           bytes_accessed=bytes_accessed)

    out3d = pl.pallas_call(
        kern,
        out_shape=jax.ShapeDtypeStruct((N, H, W * Cout), jnp.float32),
        grid=(N,),
        in_specs=in_specs,
        out_specs=pl.BlockSpec((None, H, W * Cout), lambda n: (n, 0, 0)),
        scratch_shapes=[pltpu.VMEM((H, W, 9 * Cin), matmul_dtype),            # im2col: conv1
                        pltpu.VMEM((H, W, 9 * (Cout + Cin)), matmul_dtype)],  # im2col: conv2 + skip
        compiler_params=pltpu.CompilerParams(
            dimension_semantics=("parallel",),      # batch axis shards across v7x's 2 TensorCores
            vmem_limit_bytes=32 * 1024 * 1024),
        cost_estimate=cost,
    )(x, tproj,
      params["gn1_g"], params["gn1_b"], w1, params["b1"],
      params["gn2_g"], params["gn2_b"], w2s, b2s)

    return out3d.reshape(N, H, W, Cout)


# --------------------------- deterministic parameters --------------------------

def init_params(key, cin, cout, tdim):
    ks = jax.random.split(key, 10)
    s = 0.1
    return {
        "gn1_g": 1.0 + s * jax.random.normal(ks[0], (1, cin), jnp.float32),
        "gn1_b": s * jax.random.normal(ks[1], (1, cin), jnp.float32),
        "w1": s * jax.random.normal(ks[2], (9 * cin, cout), jnp.float32),
        "b1": s * jax.random.normal(ks[3], (1, cout), jnp.float32),
        "wt": s * jax.random.normal(ks[4], (tdim, cout), jnp.float32),
        "bt": s * jax.random.normal(ks[5], (1, cout), jnp.float32),
        "gn2_g": 1.0 + s * jax.random.normal(ks[6], (1, cout), jnp.float32),
        "gn2_b": s * jax.random.normal(ks[7], (1, cout), jnp.float32),
        "w2": s * jax.random.normal(ks[8], (9 * cout, cout), jnp.float32),
        "b2": s * jax.random.normal(ks[9], (1, cout), jnp.float32),
        "ws": s * jax.random.normal(jax.random.fold_in(key, 100), (9 * cin, cout), jnp.float32),
        "bs": s * jax.random.normal(jax.random.fold_in(key, 101), (1, cout), jnp.float32),
    }


# ------------------------------ plain-JAX reference ----------------------------

def _ref_group_norm(x, gamma, beta, groups, eps=1e-5):
    N, H, W, C = x.shape
    cs = C // groups
    xr = x.reshape(N, H * W, groups, cs)
    mean = xr.mean(axis=(1, 3), keepdims=True)
    var = ((xr - mean) ** 2).mean(axis=(1, 3), keepdims=True)
    xn = ((xr - mean) / jnp.sqrt(var + eps)).reshape(N, H, W, C)
    return xn * gamma.reshape(1, 1, 1, C) + beta.reshape(1, 1, 1, C)


def _ref_conv3x3(x, w_flat, b, cin, cout, conv_dtype=jnp.float32):
    w = w_flat.reshape(3, 3, cin, cout)
    y = jax.lax.conv_general_dilated(
        x.astype(conv_dtype), w.astype(conv_dtype), (1, 1), "SAME",
        dimension_numbers=("NHWC", "HWIO", "NHWC"),
        preferred_element_type=jnp.float32)
    return y + b.reshape(1, 1, 1, cout)


def _ref_forward(x, t_emb, p, groups, conv_dtype=jnp.float32):
    cin, cout = x.shape[-1], p["b1"].shape[-1]
    silu = lambda v: v * jax.nn.sigmoid(v)
    h = _ref_conv3x3(silu(_ref_group_norm(x, p["gn1_g"], p["gn1_b"], groups)),
                     p["w1"], p["b1"], cin, cout, conv_dtype)
    tproj = silu(t_emb) @ p["wt"] + p["bt"]
    h = h + tproj[:, None, None, :]
    h = _ref_conv3x3(silu(_ref_group_norm(h, p["gn2_g"], p["gn2_b"], groups)),
                     p["w2"], p["b2"], cout, cout, conv_dtype)
    skip = _ref_conv3x3(x, p["ws"], p["bs"], cin, cout, conv_dtype)
    return skip + h


# ------------------------------------- main -------------------------------------

if __name__ == "__main__":
    key = jax.random.PRNGKey(0)
    kx, kt, kp = jax.random.split(key, 3)

    N, Cin, Cout, H, W, Tdim, groups = 2, 32, 64, 8, 8, 16, 32
    x = jax.random.normal(kx, (N, H, W, Cin), jnp.float32)     # NHWC
    t_emb = jax.random.normal(kt, (N, Tdim), jnp.float32)
    params = init_params(kp, Cin, Cout, Tdim)

    out = resnet_block(x, t_emb, params, groups=groups)
    out = jax.block_until_ready(out)

    assert out.shape == (N, H, W, Cout)
    assert bool(jnp.all(jnp.isfinite(out)))

    # Tight check vs a precision-matched reference (bf16 conv operands, f32 accumulation).
    ref_bf16 = _ref_forward(x, t_emb, params, groups, conv_dtype=jnp.bfloat16)
    err_bf16 = float(jnp.max(jnp.abs(out - ref_bf16)))
    assert err_bf16 < 2e-2, f"max abs err vs precision-matched ref: {err_bf16}"

    # Loose check vs the pure-f32 reference: bounds the bf16 matmul rounding (~1e-2 scale here).
    ref_f32 = _ref_forward(x, t_emb, params, groups, conv_dtype=jnp.float32)
    err_f32 = float(jnp.max(jnp.abs(out - ref_f32)))
    assert err_f32 < 1e-1, f"max abs err vs f32 ref: {err_f32}"

    print("KERNEL_OK")
</pallas_src>

<mosaic_0001>
module attributes {stable_mosaic.version = 11 : i64} {
  func.func @resnet_block_kernel(%arg0: i32, %arg1: memref<1x8x8x32xf32, #tpu.memory_space<vmem>>, %arg2: memref<1x1x64xf32, #tpu.memory_space<vmem>>, %arg3: memref<1x32xf32, #tpu.memory_space<vmem>>, %arg4: memref<1x32xf32, #tpu.memory_space<vmem>>, %arg5: memref<288x64xbf16, #tpu.memory_space<vmem>>, %arg6: memref<1x64xf32, #tpu.memory_space<vmem>>, %arg7: memref<1x64xf32, #tpu.memory_space<vmem>>, %arg8: memref<1x64xf32, #tpu.memory_space<vmem>>, %arg9: memref<864x64xbf16, #tpu.memory_space<vmem>>, %arg10: memref<1x64xf32, #tpu.memory_space<vmem>>, %arg11: memref<1x8x512xf32, #tpu.memory_space<vmem>>, %arg12: memref<8x8x288xbf16, #tpu.memory_space<vmem>>, %arg13: memref<8x8x864xbf16, #tpu.memory_space<vmem>>) attributes {dimension_semantics = [#tpu.dimension_semantics<parallel>], iteration_bounds = array<i64: 2>, scalar_prefetch = 0 : i64, scratch_operands = 2 : i64, tpu.core_type = #tpu.core_type<tc>, window_params = [{transform_indices = @transform_0, window_bounds = array<i64: 1, 8, 8, 32>}, {transform_indices = @transform_1, window_bounds = array<i64: 1, 1, 64>}, {pipeline_mode = #tpu.pipeline_mode<synchronous>, transform_indices = @transform_2, window_bounds = array<i64: 1, 32>}, {pipeline_mode = #tpu.pipeline_mode<synchronous>, transform_indices = @transform_3, window_bounds = array<i64: 1, 32>}, {pipeline_mode = #tpu.pipeline_mode<synchronous>, transform_indices = @transform_4, window_bounds = array<i64: 288, 64>}, {pipeline_mode = #tpu.pipeline_mode<synchronous>, transform_indices = @transform_5, window_bounds = array<i64: 1, 64>}, {pipeline_mode = #tpu.pipeline_mode<synchronous>, transform_indices = @transform_6, window_bounds = array<i64: 1, 64>}, {pipeline_mode = #tpu.pipeline_mode<synchronous>, transform_indices = @transform_7, window_bounds = array<i64: 1, 64>}, {pipeline_mode = #tpu.pipeline_mode<synchronous>, transform_indices = @transform_8, window_bounds = array<i64: 864, 64>}, {pipeline_mode = #tpu.pipeline_mode<synchronous>, transform_indices = @transform_9, window_bounds = array<i64: 1, 64>}, {transform_indices = @transform_10, window_bounds = array<i64: 1, 8, 512>}]} {
    %c0 = arith.constant 0 : index
    %c0_0 = arith.constant 0 : index
    %c0_1 = arith.constant 0 : index
    %c0_2 = arith.constant 0 : index
    %0 = vector.load %arg1[%c0, %c0_0, %c0_1, %c0_2] : memref<1x8x8x32xf32, #tpu.memory_space<vmem>>, vector<1x8x8x32xf32>
    %1 = vector.shape_cast %0 : vector<1x8x8x32xf32> to vector<8x8x32xf32>
    %2 = arith.truncf %1 : vector<8x8x32xf32> to vector<8x8x32xbf16>
    %cst = arith.constant 0.000000e+00 : bf16
    %3 = vector.broadcast %cst : bf16 to vector<1x8x32xbf16>
    %cst_3 = arith.constant 0.000000e+00 : bf16
    %4 = vector.broadcast %cst_3 : bf16 to vector<8x1x32xbf16>
    %5 = vector.extract_strided_slice %2 {offsets = [0, 0, 0], sizes = [7, 7, 32], strides = [1, 1, 1]} : vector<8x8x32xbf16> to vector<7x7x32xbf16>
    %c1 = arith.constant 1 : index
    %c1_4 = arith.constant 1 : index
    %c576 = arith.constant 576 : index
    %6 = vector.load %arg13[%c1, %c1_4, %c576] : memref<8x8x864xbf16, #tpu.memory_space<vmem>>, vector<7x7x32xbf16>
    tpu.vector_store %arg13[%c1, %c1_4, %c576], %5 {strides = array<i32>} : memref<8x8x864xbf16, #tpu.memory_space<vmem>>, vector<7x7x32xbf16>,
    %c0_5 = arith.constant 0 : index
    %c0_6 = arith.constant 0 : index
    %c576_7 = arith.constant 576 : index
    %7 = vector.load %arg13[%c0_5, %c0_6, %c576_7] : memref<8x8x864xbf16, #tpu.memory_space<vmem>>, vector<1x8x32xbf16>
    tpu.vector_store %arg13[%c0_5, %c0_6, %c576_7], %3 {strides = array<i32>} : memref<8x8x864xbf16, #tpu.memory_space<vmem>>, vector<1x8x32xbf16>,
    %c0_8 = arith.constant 0 : index
    %c0_9 = arith.constant 0 : index
    %c576_10 = arith.constant 576 : index
    %8 = vector.load %arg13[%c0_8, %c0_9, %c576_10] : memref<8x8x864xbf16, #tpu.memory_space<vmem>>, vector<8x1x32xbf16>
    tpu.vector_store %arg13[%c0_8, %c0_9, %c576_10], %4 {strides = array<i32>} : memref<8x8x864xbf16, #tpu.memory_space<vmem>>, vector<8x1x32xbf16>,
    %9 = vector.extract_strided_slice %2 {offsets = [0, 0, 0], sizes = [7, 8, 32], strides = [1, 1, 1]} : vector<8x8x32xbf16> to vector<7x8x32xbf16>
    %c1_11 = arith.constant 1 : index
    %c0_12 = arith.constant 0 : index
    %c608 = arith.constant 608 : index
    %10 = vector.load %arg13[%c1_11, %c0_12, %c608] : memref<8x8x864xbf16, #tpu.memory_space<vmem>>, vector<7x8x32xbf16>
    tpu.vector_store %arg13[%c1_11, %c0_12, %c608], %9 {strides = array<i32>} : memref<8x8x864xbf16, #tpu.memory_space<vmem>>, vector<7x8x32xbf16>,
    %c0_13 = arith.constant 0 : index
    %c0_14 = arith.constant 0 : index
    %c608_15 = arith.constant 608 : index
    %11 = vector.load %arg13[%c0_13, %c0_14, %c608_15] : memref<8x8x864xbf16, #tpu.memory_space<vmem>>, vector<1x8x32xbf16>
    tpu.vector_store %arg13[%c0_13, %c0_14, %c608_15], %3 {strides = array<i32>} : memref<8x8x864xbf16, #tpu.memory_space<vmem>>, vector<1x8x32xbf16>,
    %12 = vector.extract_strided_slice %2 {offsets = [0, 1, 0], sizes = [7, 7, 32], strides = [1, 1, 1]} : vector<8x8x32xbf16> to vector<7x7x32xbf16>
    %c1_16 = arith.constant 1 : index
    %c0_17 = arith.constant 0 : index
    %c640 = arith.constant 640 : index
    %13 = vector.load %arg13[%c1_16, %c0_17, %c640] : memref<8x8x864xbf16, #tpu.memory_space<vmem>>, vector<7x7x32xbf16>
    tpu.vector_store %arg13[%c1_16, %c0_17, %c640], %12 {strides = array<i32>} : memref<8x8x864xbf16, #tpu.memory_space<vmem>>, vector<7x7x32xbf16>,
    %c0_18 = arith.constant 0 : index
    %c0_19 = arith.constant 0 : index
    %c640_20 = arith.constant 640 : index
    %14 = vector.load %arg13[%c0_18, %c0_19, %c640_20] : memref<8x8x864xbf16, #tpu.memory_space<vmem>>, vector<1x8x32xbf16>
    tpu.vector_store %arg13[%c0_18, %c0_19, %c640_20], %3 {strides = array<i32>} : memref<8x8x864xbf16, #tpu.memory_space<vmem>>, vector<1x8x32xbf16>,
    %c0_21 = arith.constant 0 : index
    %c7 = arith.constant 7 : index
    %c640_22 = arith.constant 640 : index
    %15 = vector.load %arg13[%c0_21, %c7, %c640_22] : memref<8x8x864xbf16, #tpu.memory_space<vmem>>, vector<8x1x32xbf16>
    tpu.vector_store %arg13[%c0_21, %c7, %c640_22], %4 {strides = array<i32>} : memref<8x8x864xbf16, #tpu.memory_space<vmem>>, vector<8x1x32xbf16>,
    %16 = vector.extract_strided_slice %2 {offsets = [0, 0, 0], sizes = [8, 7, 32], strides = [1, 1, 1]} : vector<8x8x32xbf16> to vector<8x7x32xbf16>
    %c0_23 = arith.constant 0 : index
    %c1_24 = arith.constant 1 : index
    %c672 = arith.constant 672 : index
    %17 = vector.load %arg13[%c0_23, %c1_24, %c672] : memref<8x8x864xbf16, #tpu.memory_space<vmem>>, vector<8x7x32xbf16>
    tpu.vector_store %arg13[%c0_23, %c1_24, %c672], %16 {strides = array<i32>} : memref<8x8x864xbf16, #tpu.memory_space<vmem>>, vector<8x7x32xbf16>,
    %c0_25 = arith.constant 0 : index
    %c0_26 = arith.constant 0 : index
    %c672_27 = arith.constant 672 : index
    %18 = vector.load %arg13[%c0_25, %c0_26, %c672_27] : memref<8x8x864xbf16, #tpu.memory_space<vmem>>, vector<8x1x32xbf16>
    tpu.vector_store %arg13[%c0_25, %c0_26, %c672_27], %4 {strides = array<i32>} : memref<8x8x864xbf16, #tpu.memory_space<vmem>>, vector<8x1x32xbf16>,
    %c0_28 = arith.constant 0 : index
    %c0_29 = arith.constant 0 : index
    %c704 = arith.constant 704 : index
    %19 = vector.load %arg13[%c0_28, %c0_29, %c704] : memref<8x8x864xbf16, #tpu.memory_space<vmem>>, vector<8x8x32xbf16>
    tpu.vector_store %arg13[%c0_28, %c0_29, %c704], %2 {strides = array<i32>} : memref<8x8x864xbf16, #tpu.memory_space<vmem>>, vector<8x8x32xbf16>,
    %20 = vector.extract_strided_slice %2 {offsets = [0, 1, 0], sizes = [8, 7, 32], strides = [1, 1, 1]} : vector<8x8x32xbf16> to vector<8x7x32xbf16>
    %c0_30 = arith.constant 0 : index
    %c0_31 = arith.constant 0 : index
    %c736 = arith.constant 736 : index
    %21 = vector.load %arg13[%c0_30, %c0_31, %c736] : memref<8x8x864xbf16, #tpu.memory_space<vmem>>, vector<8x7x32xbf16>
    tpu.vector_store %arg13[%c0_30, %c0_31, %c736], %20 {strides = array<i32>} : memref<8x8x864xbf16, #tpu.memory_space<vmem>>, vector<8x7x32xbf16>,
    %c0_32 = arith.constant 0 : index
    %c7_33 = arith.constant 7 : index
    %c736_34 = arith.constant 736 : index
    %22 = vector.load %arg13[%c0_32, %c7_33, %c736_34] : memref<8x8x864xbf16, #tpu.memory_space<vmem>>, vector<8x1x32xbf16>
    tpu.vector_store %arg13[%c0_32, %c7_33, %c736_34], %4 {strides = array<i32>} : memref<8x8x864xbf16, #tpu.memory_space<vmem>>, vector<8x1x32xbf16>,
    %23 = vector.extract_strided_slice %2 {offsets = [1, 0, 0], sizes = [7, 7, 32], strides = [1, 1, 1]} : vector<8x8x32xbf16> to vector<7x7x32xbf16>
    %c0_35 = arith.constant 0 : index
    %c1_36 = arith.constant 1 : index
    %c768 = arith.constant 768 : index
    %24 = vector.load %arg13[%c0_35, %c1_36, %c768] : memref<8x8x864xbf16, #tpu.memory_space<vmem>>, vector<7x7x32xbf16>
    tpu.vector_store %arg13[%c0_35, %c1_36, %c768], %23 {strides = array<i32>} : memref<8x8x864xbf16, #tpu.memory_space<vmem>>, vector<7x7x32xbf16>,
    %c7_37 = arith.constant 7 : index
    %c0_38 = arith.constant 0 : index
    %c768_39 = arith.constant 768 : index
    %25 = vector.load %arg13[%c7_37, %c0_38, %c768_39] : memref<8x8x864xbf16, #tpu.memory_space<vmem>>, vector<1x8x32xbf16>
    tpu.vector_store %arg13[%c7_37, %c0_38, %c768_39], %3 {strides = array<i32>} : memref<8x8x864xbf16, #tpu.memory_space<vmem>>, vector<1x8x32xbf16>,
    %c0_40 = arith.constant 0 : index
    %c0_41 = arith.constant 0 : index
    %c768_42 = arith.constant 768 : index
    %26 = vector.load %arg13[%c0_40, %c0_41, %c768_42] : memref<8x8x864xbf16, #tpu.memory_space<vmem>>, vector<8x1x32xbf16>
    tpu.vector_store %arg13[%c0_40, %c0_41, %c768_42], %4 {strides = array<i32>} : memref<8x8x864xbf16, #tpu.memory_space<vmem>>, vector<8x1x32xbf16>,
    %27 = vector.extract_strided_slice %2 {offsets = [1, 0, 0], sizes = [7, 8, 32], strides = [1, 1, 1]} : vector<8x8x32xbf16> to vector<7x8x32xbf16>
    %c0_43 = arith.constant 0 : index
    %c0_44 = arith.constant 0 : index
    %c800 = arith.constant 800 : index
    %28 = vector.load %arg13[%c0_43, %c0_44, %c800] : memref<8x8x864xbf16, #tpu.memory_space<vmem>>, vector<7x8x32xbf16>
    tpu.vector_store %arg13[%c0_43, %c0_44, %c800], %27 {strides = array<i32>} : memref<8x8x864xbf16, #tpu.memory_space<vmem>>, vector<7x8x32xbf16>,
    %c7_45 = arith.constant 7 : index
    %c0_46 = arith.constant 0 : index
    %c800_47 = arith.constant 800 : index
    %29 = vector.load %arg13[%c7_45, %c0_46, %c800_47] : memref<8x8x864xbf16, #tpu.memory_space<vmem>>, vector<1x8x32xbf16>
    tpu.vector_store %arg13[%c7_45, %c0_46, %c800_47], %3 {strides = array<i32>} : memref<8x8x864xbf16, #tpu.memory_space<vmem>>, vector<1x8x32xbf16>,
    %30 = vector.extract_strided_slice %2 {offsets = [1, 1, 0], sizes = [7, 7, 32], strides = [1, 1, 1]} : vector<8x8x32xbf16> to vector<7x7x32xbf16>
    %c0_48 = arith.constant 0 : index
    %c0_49 = arith.constant 0 : index
    %c832 = arith.constant 832 : index
    %31 = vector.load %arg13[%c0_48, %c0_49, %c832] : memref<8x8x864xbf16, #tpu.memory_space<vmem>>, vector<7x7x32xbf16>
    tpu.vector_store %arg13[%c0_48, %c0_49, %c832], %30 {strides = array<i32>} : memref<8x8x864xbf16, #tpu.memory_space<vmem>>, vector<7x7x32xbf16>,
    %c7_50 = arith.constant 7 : index
    %c0_51 = arith.constant 0 : index
    %c832_52 = arith.constant 832 : index
    %32 = vector.load %arg13[%c7_50, %c0_51, %c832_52] : memref<8x8x864xbf16, #tpu.memory_space<vmem>>, vector<1x8x32xbf16>
    tpu.vector_store %arg13[%c7_50, %c0_51, %c832_52], %3 {strides = array<i32>} : memref<8x8x864xbf16, #tpu.memory_space<vmem>>, vector<1x8x32xbf16>,
    %c0_53 = arith.constant 0 : index
    %c7_54 = arith.constant 7 : index
    %c832_55 = arith.constant 832 : index
    %33 = vector.load %arg13[%c0_53, %c7_54, %c832_55] : memref<8x8x864xbf16, #tpu.memory_space<vmem>>, vector<8x1x32xbf16>
    tpu.vector_store %arg13[%c0_53, %c7_54, %c832_55], %4 {strides = array<i32>} : memref<8x8x864xbf16, #tpu.memory_space<vmem>>, vector<8x1x32xbf16>,
    %34 = vector.shape_cast %1 : vector<8x8x32xf32> to vector<64x32xf32>
    %c0_56 = arith.constant 0 : index
    %c0_57 = arith.constant 0 : index
    %35 = vector.load %arg3[%c0_56, %c0_57] : memref<1x32xf32, #tpu.memory_space<vmem>>, vector<1x32xf32>
    %c0_58 = arith.constant 0 : index
    %c0_59 = arith.constant 0 : index
    %36 = vector.load %arg4[%c0_58, %c0_59] : memref<1x32xf32, #tpu.memory_space<vmem>>, vector<1x32xf32>
    %cst_60 = arith.constant dense<0.000000e+00> : vector<32xf32>
    %37 = vector.multi_reduction <add>, %34, %cst_60 [0] : vector<64x32xf32> to vector<32xf32>
    %38 = vector.shape_cast %37 : vector<32xf32> to vector<1x32xf32>
    %cst_61 = arith.constant 1.562500e-02 : f32
    %39 = vector.broadcast %cst_61 : f32 to vector<1x32xf32>
    %40 = arith.mulf %38, %39 : vector<1x32xf32>
    %41 = vector.broadcast %40 : vector<1x32xf32> to vector<64x32xf32>
    %42 = arith.subf %34, %41 : vector<64x32xf32>
    %43 = arith.mulf %42, %42 : vector<64x32xf32>
    %cst_62 = arith.constant dense<0.000000e+00> : vector<32xf32>
    %44 = vector.multi_reduction <add>, %43, %cst_62 [0] : vector<64x32xf32> to vector<32xf32>
    %45 = vector.shape_cast %44 : vector<32xf32> to vector<1x32xf32>
    %cst_63 = arith.constant 1.562500e-02 : f32
    %46 = vector.broadcast %cst_63 : f32 to vector<1x32xf32>
    %47 = arith.mulf %45, %46 : vector<1x32xf32>
    %cst_64 = arith.constant 9.99999974E-6 : f32
    %48 = vector.broadcast %cst_64 : f32 to vector<1x32xf32>
    %49 = arith.addf %47, %48 : vector<1x32xf32>
    %50 = math.rsqrt %49 : vector<1x32xf32>
    %51 = vector.broadcast %50 : vector<1x32xf32> to vector<64x32xf32>
    %52 = arith.mulf %42, %51 : vector<64x32xf32>
    %53 = vector.broadcast %35 : vector<1x32xf32> to vector<64x32xf32>
    %54 = arith.mulf %52, %53 : vector<64x32xf32>
    %55 = vector.broadcast %36 : vector<1x32xf32> to vector<64x32xf32>
    %56 = arith.addf %54, %55 : vector<64x32xf32>
    %57 = arith.negf %56 : vector<64x32xf32>
    %58 = math.exp %57 : vector<64x32xf32>
    %cst_65 = arith.constant 1.000000e+00 : f32
    %59 = vector.broadcast %cst_65 : f32 to vector<64x32xf32>
    %60 = arith.addf %59, %58 : vector<64x32xf32>
    %61 = arith.divf %59, %60 : vector<64x32xf32>
    %62 = arith.mulf %56, %61 : vector<64x32xf32>
    %63 = arith.truncf %62 : vector<64x32xf32> to vector<64x32xbf16>
    %64 = vector.shape_cast %63 : vector<64x32xbf16> to vector<8x8x32xbf16>
    %cst_66 = arith.constant 0.000000e+00 : bf16
    %65 = vector.broadcast %cst_66 : bf16 to vector<1x8x32xbf16>
    %cst_67 = arith.constant 0.000000e+00 : bf16
    %66 = vector.broadcast %cst_67 : bf16 to vector<8x1x32xbf16>
    %67 = vector.extract_strided_slice %64 {offsets = [0, 0, 0], sizes = [7, 7, 32], strides = [1, 1, 1]} : vector<8x8x32xbf16> to vector<7x7x32xbf16>
    %c1_68 = arith.constant 1 : index
    %c1_69 = arith.constant 1 : index
    %c0_70 = arith.constant 0 : index
    %68 = vector.load %arg12[%c1_68, %c1_69, %c0_70] : memref<8x8x288xbf16, #tpu.memory_space<vmem>>, vector<7x7x32xbf16>
    tpu.vector_store %arg12[%c1_68, %c1_69, %c0_70], %67 {strides = array<i32>} : memref<8x8x288xbf16, #tpu.memory_space<vmem>>, vector<7x7x32xbf16>,
    %c0_71 = arith.constant 0 : index
    %c0_72 = arith.constant 0 : index
    %c0_73 = arith.constant 0 : index
    %69 = vector.load %arg12[%c0_71, %c0_72, %c0_73] : memref<8x8x288xbf16, #tpu.memory_space<vmem>>, vector<1x8x32xbf16>
    tpu.vector_store %arg12[%c0_71, %c0_72, %c0_73], %65 {strides = array<i32>} : memref<8x8x288xbf16, #tpu.memory_space<vmem>>, vector<1x8x32xbf16>,
    %c0_74 = arith.constant 0 : index
    %c0_75 = arith.constant 0 : index
    %c0_76 = arith.constant 0 : index
    %70 = vector.load %arg12[%c0_74, %c0_75, %c0_76] : memref<8x8x288xbf16, #tpu.memory_space<vmem>>, vector<8x1x32xbf16>
    tpu.vector_store %arg12[%c0_74, %c0_75, %c0_76], %66 {strides = array<i32>} : memref<8x8x288xbf16, #tpu.memory_space<vmem>>, vector<8x1x32xbf16>,
    %71 = vector.extract_strided_slice %64 {offsets = [0, 0, 0], sizes = [7, 8, 32], strides = [1, 1, 1]} : vector<8x8x32xbf16> to vector<7x8x32xbf16>
    %c1_77 = arith.constant 1 : index
    %c0_78 = arith.constant 0 : index
    %c32 = arith.constant 32 : index
    %72 = vector.load %arg12[%c1_77, %c0_78, %c32] : memref<8x8x288xbf16, #tpu.memory_space<vmem>>, vector<7x8x32xbf16>
    tpu.vector_store %arg12[%c1_77, %c0_78, %c32], %71 {strides = array<i32>} : memref<8x8x288xbf16, #tpu.memory_space<vmem>>, vector<7x8x32xbf16>,
    %c0_79 = arith.constant 0 : index
    %c0_80 = arith.constant 0 : index
    %c32_81 = arith.constant 32 : index
    %73 = vector.load %arg12[%c0_79, %c0_80, %c32_81] : memref<8x8x288xbf16, #tpu.memory_space<vmem>>, vector<1x8x32xbf16>
    tpu.vector_store %arg12[%c0_79, %c0_80, %c32_81], %65 {strides = array<i32>} : memref<8x8x288xbf16, #tpu.memory_space<vmem>>, vector<1x8x32xbf16>,
    %74 = vector.extract_strided_slice %64 {offsets = [0, 1, 0], sizes = [7, 7, 32], strides = [1, 1, 1]} : vector<8x8x32xbf16> to vector<7x7x32xbf16>
    %c1_82 = arith.constant 1 : index
    %c0_83 = arith.constant 0 : index
    %c64 = arith.constant 64 : index
    %75 = vector.load %arg12[%c1_82, %c0_83, %c64] : memref<8x8x288xbf16, #tpu.memory_space<vmem>>, vector<7x7x32xbf16>
    tpu.vector_store %arg12[%c1_82, %c0_83, %c64], %74 {strides = array<i32>} : memref<8x8x288xbf16, #tpu.memory_space<vmem>>, vector<7x7x32xbf16>,
    %c0_84 = arith.constant 0 : index
    %c0_85 = arith.constant 0 : index
    %c64_86 = arith.constant 64 : index
    %76 = vector.load %arg12[%c0_84, %c0_85, %c64_86] : memref<8x8x288xbf16, #tpu.memory_space<vmem>>, vector<1x8x32xbf16>
    tpu.vector_store %arg12[%c0_84, %c0_85, %c64_86], %65 {strides = array<i32>} : memref<8x8x288xbf16, #tpu.memory_space<vmem>>, vector<1x8x32xbf16>,
    %c0_87 = arith.constant 0 : index
    %c7_88 = arith.constant 7 : index
    %c64_89 = arith.constant 64 : index
    %77 = vector.load %arg12[%c0_87, %c7_88, %c64_89] : memref<8x8x288xbf16, #tpu.memory_space<vmem>>, vector<8x1x32xbf16>
    tpu.vector_store %arg12[%c0_87, %c7_88, %c64_89], %66 {strides = array<i32>} : memref<8x8x288xbf16, #tpu.memory_space<vmem>>, vector<8x1x32xbf16>,
    %78 = vector.extract_strided_slice %64 {offsets = [0, 0, 0], sizes = [8, 7, 32], strides = [1, 1, 1]} : vector<8x8x32xbf16> to vector<8x7x32xbf16>
    %c0_90 = arith.constant 0 : index
    %c1_91 = arith.constant 1 : index
    %c96 = arith.constant 96 : index
    %79 = vector.load %arg12[%c0_90, %c1_91, %c96] : memref<8x8x288xbf16, #tpu.memory_space<vmem>>, vector<8x7x32xbf16>
    tpu.vector_store %arg12[%c0_90, %c1_91, %c96], %78 {strides = array<i32>} : memref<8x8x288xbf16, #tpu.memory_space<vmem>>, vector<8x7x32xbf16>,
    %c0_92 = arith.constant 0 : index
    %c0_93 = arith.constant 0 : index
    %c96_94 = arith.constant 96 : index
    %80 = vector.load %arg12[%c0_92, %c0_93, %c96_94] : memref<8x8x288xbf16, #tpu.memory_space<vmem>>, vector<8x1x32xbf16>
    tpu.vector_store %arg12[%c0_92, %c0_93, %c96_94], %66 {strides = array<i32>} : memref<8x8x288xbf16, #tpu.memory_space<vmem>>, vector<8x1x32xbf16>,
    %c0_95 = arith.constant 0 : index
    %c0_96 = arith.constant 0 : index
    %c128 = arith.constant 128 : index
    %81 = vector.load %arg12[%c0_95, %c0_96, %c128] : memref<8x8x288xbf16, #tpu.memory_space<vmem>>, vector<8x8x32xbf16>
    tpu.vector_store %arg12[%c0_95, %c0_96, %c128], %64 {strides = array<i32>} : memref<8x8x288xbf16, #tpu.memory_space<vmem>>, vector<8x8x32xbf16>,
    %82 = vector.extract_strided_slice %64 {offsets = [0, 1, 0], sizes = [8, 7, 32], strides = [1, 1, 1]} : vector<8x8x32xbf16> to vector<8x7x32xbf16>
    %c0_97 = arith.constant 0 : index
    %c0_98 = arith.constant 0 : index
    %c160 = arith.constant 160 : index
    %83 = vector.load %arg12[%c0_97, %c0_98, %c160] : memref<8x8x288xbf16, #tpu.memory_space<vmem>>, vector<8x7x32xbf16>
    tpu.vector_store %arg12[%c0_97, %c0_98, %c160], %82 {strides = array<i32>} : memref<8x8x288xbf16, #tpu.memory_space<vmem>>, vector<8x7x32xbf16>,
    %c0_99 = arith.constant 0 : index
    %c7_100 = arith.constant 7 : index
    %c160_101 = arith.constant 160 : index
    %84 = vector.load %arg12[%c0_99, %c7_100, %c160_101] : memref<8x8x288xbf16, #tpu.memory_space<vmem>>, vector<8x1x32xbf16>
    tpu.vector_store %arg12[%c0_99, %c7_100, %c160_101], %66 {strides = array<i32>} : memref<8x8x288xbf16, #tpu.memory_space<vmem>>, vector<8x1x32xbf16>,
    %85 = vector.extract_strided_slice %64 {offsets = [1, 0, 0], sizes = [7, 7, 32], strides = [1, 1, 1]} : vector<8x8x32xbf16> to vector<7x7x32xbf16>
    %c0_102 = arith.constant 0 : index
    %c1_103 = arith.constant 1 : index
    %c192 = arith.constant 192 : index
    %86 = vector.load %arg12[%c0_102, %c1_103, %c192] : memref<8x8x288xbf16, #tpu.memory_space<vmem>>, vector<7x7x32xbf16>
    tpu.vector_store %arg12[%c0_102, %c1_103, %c192], %85 {strides = array<i32>} : memref<8x8x288xbf16, #tpu.memory_space<vmem>>, vector<7x7x32xbf16>,
    %c7_104 = arith.constant 7 : index
    %c0_105 = arith.constant 0 : index
    %c192_106 = arith.constant 192 : index
    %87 = vector.load %arg12[%c7_104, %c0_105, %c192_106] : memref<8x8x288xbf16, #tpu.memory_space<vmem>>, vector<1x8x32xbf16>
    tpu.vector_store %arg12[%c7_104, %c0_105, %c192_106], %65 {strides = array<i32>} : memref<8x8x288xbf16, #tpu.memory_space<vmem>>, vector<1x8x32xbf16>,
    %c0_107 = arith.constant 0 : index
    %c0_108 = arith.constant 0 : index
    %c192_109 = arith.constant 192 : index
    %88 = vector.load %arg12[%c0_107, %c0_108, %c192_109] : memref<8x8x288xbf16, #tpu.memory_space<vmem>>, vector<8x1x32xbf16>
    tpu.vector_store %arg12[%c0_107, %c0_108, %c192_109], %66 {strides = array<i32>} : memref<8x8x288xbf16, #tpu.memory_space<vmem>>, vector<8x1x32xbf16>,
    %89 = vector.extract_strided_slice %64 {offsets = [1, 0, 0], sizes = [7, 8, 32], strides = [1, 1, 1]} : vector<8x8x32xbf16> to vector<7x8x32xbf16>
    %c0_110 = arith.constant 0 : index
    %c0_111 = arith.constant 0 : index
    %c224 = arith.constant 224 : index
    %90 = vector.load %arg12[%c0_110, %c0_111, %c224] : memref<8x8x288xbf16, #tpu.memory_space<vmem>>, vector<7x8x32xbf16>
    tpu.vector_store %arg12[%c0_110, %c0_111, %c224], %89 {strides = array<i32>} : memref<8x8x288xbf16, #tpu.memory_space<vmem>>, vector<7x8x32xbf16>,
    %c7_112 = arith.constant 7 : index
    %c0_113 = arith.constant 0 : index
    %c224_114 = arith.constant 224 : index
    %91 = vector.load %arg12[%c7_112, %c0_113, %c224_114] : memref<8x8x288xbf16, #tpu.memory_space<vmem>>, vector<1x8x32xbf16>
    tpu.vector_store %arg12[%c7_112, %c0_113, %c224_114], %65 {strides = array<i32>} : memref<8x8x288xbf16, #tpu.memory_space<vmem>>, vector<1x8x32xbf16>,
    %92 = vector.extract_strided_slice %64 {offsets = [1, 1, 0], sizes = [7, 7, 32], strides = [1, 1, 1]} : vector<8x8x32xbf16> to vector<7x7x32xbf16>
    %c0_115 = arith.constant 0 : index
    %c0_116 = arith.constant 0 : index
    %c256 = arith.constant 256 : index
    %93 = vector.load %arg12[%c0_115, %c0_116, %c256] : memref<8x8x288xbf16, #tpu.memory_space<vmem>>, vector<7x7x32xbf16>
    tpu.vector_store %arg12[%c0_115, %c0_116, %c256], %92 {strides = array<i32>} : memref<8x8x288xbf16, #tpu.memory_space<vmem>>, vector<7x7x32xbf16>,
    %c7_117 = arith.constant 7 : index
    %c0_118 = arith.constant 0 : index
    %c256_119 = arith.constant 256 : index
    %94 = vector.load %arg12[%c7_117, %c0_118, %c256_119] : memref<8x8x288xbf16, #tpu.memory_space<vmem>>, vector<1x8x32xbf16>
    tpu.vector_store %arg12[%c7_117, %c0_118, %c256_119], %65 {strides = array<i32>} : memref<8x8x288xbf16, #tpu.memory_space<vmem>>, vector<1x8x32xbf16>,
    %c0_120 = arith.constant 0 : index
    %c7_121 = arith.constant 7 : index
    %c256_122 = arith.constant 256 : index
    %95 = vector.load %arg12[%c0_120, %c7_121, %c256_122] : memref<8x8x288xbf16, #tpu.memory_space<vmem>>, vector<8x1x32xbf16>
    tpu.vector_store %arg12[%c0_120, %c7_121, %c256_122], %66 {strides = array<i32>} : memref<8x8x288xbf16, #tpu.memory_space<vmem>>, vector<8x1x32xbf16>,
    %c0_123 = arith.constant 0 : index
    %c0_124 = arith.constant 0 : index
    %c0_125 = arith.constant 0 : index
    %96 = vector.load %arg12[%c0_123, %c0_124, %c0_125] : memref<8x8x288xbf16, #tpu.memory_space<vmem>>, vector<8x8x288xbf16>
    %97 = vector.shape_cast %96 : vector<8x8x288xbf16> to vector<64x288xbf16>
    %c0_126 = arith.constant 0 : index
    %c0_127 = arith.constant 0 : index
    %98 = vector.load %arg5[%c0_126, %c0_127] : memref<288x64xbf16, #tpu.memory_space<vmem>>, vector<288x64xbf16>
    %cst_128 = arith.constant dense<0.000000e+00> : vector<64x64xf32>
    %99 = tpu.matmul %97, %98, %cst_128 {dimension_numbers = #tpu.dot_dimension_numbers<[1], [0], [0], [1], [0, 0, 1, 1], [], []>} : vector<64x288xbf16>, vector<288x64xbf16>, vector<64x64xf32> -> vector<64x64xf32>
    %c0_129 = arith.constant 0 : index
    %c0_130 = arith.constant 0 : index
    %100 = vector.load %arg6[%c0_129, %c0_130] : memref<1x64xf32, #tpu.memory_space<vmem>>, vector<1x64xf32>
    %101 = vector.broadcast %100 : vector<1x64xf32> to vector<64x64xf32>
    %102 = arith.addf %99, %101 : vector<64x64xf32>
    %c0_131 = arith.constant 0 : index
    %c0_132 = arith.constant 0 : index
    %c0_133 = arith.constant 0 : index
    %103 = vector.load %arg2[%c0_131, %c0_132, %c0_133] : memref<1x1x64xf32, #tpu.memory_space<vmem>>, vector<1x1x64xf32>
    %104 = vector.shape_cast %103 : vector<1x1x64xf32> to vector<1x64xf32>
    %105 = vector.broadcast %104 : vector<1x64xf32> to vector<64x64xf32>
    %106 = arith.addf %102, %105 : vector<64x64xf32>
    %c0_134 = arith.constant 0 : index
    %c0_135 = arith.constant 0 : index
    %107 = vector.load %arg7[%c0_134, %c0_135] : memref<1x64xf32, #tpu.memory_space<vmem>>, vector<1x64xf32>
    %c0_136 = arith.constant 0 : index
    %c0_137 = arith.constant 0 : index
    %108 = vector.load %arg8[%c0_136, %c0_137] : memref<1x64xf32, #tpu.memory_space<vmem>>, vector<1x64xf32>
    %cst_138 = arith.constant dense<0.000000e+00> : vector<64xf32>
    %109 = vector.multi_reduction <add>, %106, %cst_138 [0] : vector<64x64xf32> to vector<64xf32>
    %110 = vector.shape_cast %109 : vector<64xf32> to vector<1x64xf32>
    %111 = tpu.iota {dimensions = array<i32: 1>} : vector<1x64xi32>
    %c63_i32 = arith.constant 63 : i32
    %112 = tpu.dynamic_rotate %110 by %c63_i32 dim 1 : vector<1x64xf32>, i32 -> vector<1x64xf32>
    %c1_i32 = arith.constant 1 : i32
    %113 = tpu.dynamic_rotate %110 by %c1_i32 dim 1 : vector<1x64xf32>, i32 -> vector<1x64xf32>
    %c2_i32 = arith.constant 2 : i32
    %c0_i32 = arith.constant 0 : i32
    %114 = arith.cmpi eq, %c2_i32, %c0_i32 : i32
    %c1_i32_139 = arith.constant 1 : i32
    %115 = arith.select %114, %c1_i32_139, %c2_i32 : i32
    %116 = vector.broadcast %115 : i32 to vector<1x64xi32>
    %117 = arith.remsi %111, %116 : vector<1x64xi32>
    %c0_i32_140 = arith.constant 0 : i32
    %118 = vector.broadcast %c0_i32_140 : i32 to vector<1x64xi32>
    %119 = arith.cmpi ne, %117, %118 : vector<1x64xi32>
    %c0_i32_141 = arith.constant 0 : i32
    %120 = vector.broadcast %c0_i32_141 : i32 to vector<1x64xi32>
    %121 = arith.cmpi slt, %117, %120 : vector<1x64xi32>
    %c0_i32_142 = arith.constant 0 : i32
    %122 = arith.cmpi slt, %115, %c0_i32_142 : i32
    %123 = vector.broadcast %122 : i1 to vector<1x64xi1>
    %124 = vector.broadcast %123 : vector<1x64xi1> to vector<1x64xi1>
    %125 = arith.xori %121, %124 : vector<1x64xi1>
    %126 = arith.andi %125, %119 : vector<1x64xi1>
    %127 = vector.broadcast %115 : i32 to vector<1x64xi32>
    %128 = arith.addi %117, %127 : vector<1x64xi32>
    %129 = arith.select %126, %128, %117 : vector<1x64xi1>, vector<1x64xi32>
    %c0_i32_143 = arith.constant 0 : i32
    %130 = vector.broadcast %c0_i32_143 : i32 to vector<1x64xi32>
    %131 = arith.cmpi eq, %129, %130 : vector<1x64xi32>
    %132 = arith.select %131, %112, %113 : vector<1x64xi1>, vector<1x64xf32>
    %133 = arith.addf %110, %132 : vector<1x64xf32>
    %cst_144 = arith.constant 7.812500e-03 : f32
    %134 = vector.broadcast %cst_144 : f32 to vector<1x64xf32>
    %135 = arith.mulf %133, %134 : vector<1x64xf32>
    %136 = vector.broadcast %135 : vector<1x64xf32> to vector<64x64xf32>
    %137 = arith.subf %106, %136 : vector<64x64xf32>
    %138 = arith.mulf %137, %137 : vector<64x64xf32>
    %cst_145 = arith.constant dense<0.000000e+00> : vector<64xf32>
    %139 = vector.multi_reduction <add>, %138, %cst_145 [0] : vector<64x64xf32> to vector<64xf32>
    %140 = vector.shape_cast %139 : vector<64xf32> to vector<1x64xf32>
    %141 = tpu.iota {dimensions = array<i32: 1>} : vector<1x64xi32>
    %c63_i32_146 = arith.constant 63 : i32
    %142 = tpu.dynamic_rotate %140 by %c63_i32_146 dim 1 : vector<1x64xf32>, i32 -> vector<1x64xf32>
    %c1_i32_147 = arith.constant 1 : i32
    %143 = tpu.dynamic_rotate %140 by %c1_i32_147 dim 1 : vector<1x64xf32>, i32 -> vector<1x64xf32>
    %c2_i32_148 = arith.constant 2 : i32
    %c0_i32_149 = arith.constant 0 : i32
    %144 = arith.cmpi eq, %c2_i32_148, %c0_i32_149 : i32
    %c1_i32_150 = arith.constant 1 : i32
    %145 = arith.select %144, %c1_i32_150, %c2_i32_148 : i32
    %146 = vector.broadcast %145 : i32 to vector<1x64xi32>
    %147 = arith.remsi %141, %146 : vector<1x64xi32>
    %c0_i32_151 = arith.constant 0 : i32
    %148 = vector.broadcast %c0_i32_151 : i32 to vector<1x64xi32>
    %149 = arith.cmpi ne, %147, %148 : vector<1x64xi32>
    %c0_i32_152 = arith.constant 0 : i32
    %150 = vector.broadcast %c0_i32_152 : i32 to vector<1x64xi32>
    %151 = arith.cmpi slt, %147, %150 : vector<1x64xi32>
    %c0_i32_153 = arith.constant 0 : i32
    %152 = arith.cmpi slt, %145, %c0_i32_153 : i32
    %153 = vector.broadcast %152 : i1 to vector<1x64xi1>
    %154 = vector.broadcast %153 : vector<1x64xi1> to vector<1x64xi1>
    %155 = arith.xori %151, %154 : vector<1x64xi1>
    %156 = arith.andi %155, %149 : vector<1x64xi1>
    %157 = vector.broadcast %145 : i32 to vector<1x64xi32>
    %158 = arith.addi %147, %157 : vector<1x64xi32>
    %159 = arith.select %156, %158, %147 : vector<1x64xi1>, vector<1x64xi32>
    %c0_i32_154 = arith.constant 0 : i32
    %160 = vector.broadcast %c0_i32_154 : i32 to vector<1x64xi32>
    %161 = arith.cmpi eq, %159, %160 : vector<1x64xi32>
    %162 = arith.select %161, %142, %143 : vector<1x64xi1>, vector<1x64xf32>
    %163 = arith.addf %140, %162 : vector<1x64xf32>
    %cst_155 = arith.constant 7.812500e-03 : f32
    %164 = vector.broadcast %cst_155 : f32 to vector<1x64xf32>
    %165 = arith.mulf %163, %164 : vector<1x64xf32>
    %cst_156 = arith.constant 9.99999974E-6 : f32
    %166 = vector.broadcast %cst_156 : f32 to vector<1x64xf32>
    %167 = arith.addf %165, %166 : vector<1x64xf32>
    %168 = math.rsqrt %167 : vector<1x64xf32>
    %169 = vector.broadcast %168 : vector<1x64xf32> to vector<64x64xf32>
    %170 = arith.mulf %137, %169 : vector<64x64xf32>
    %171 = vector.broadcast %107 : vector<1x64xf32> to vector<64x64xf32>
    %172 = arith.mulf %170, %171 : vector<64x64xf32>
    %173 = vector.broadcast %108 : vector<1x64xf32> to vector<64x64xf32>
    %174 = arith.addf %172, %173 : vector<64x64xf32>
    %175 = arith.negf %174 : vector<64x64xf32>
    %176 = math.exp %175 : vector<64x64xf32>
    %cst_157 = arith.constant 1.000000e+00 : f32
    %177 = vector.broadcast %cst_157 : f32 to vector<64x64xf32>
    %178 = arith.addf %177, %176 : vector<64x64xf32>
    %179 = arith.divf %177, %178 : vector<64x64xf32>
    %180 = arith.mulf %174, %179 : vector<64x64xf32>
    %181 = arith.truncf %180 : vector<64x64xf32> to vector<64x64xbf16>
    %182 = vector.shape_cast %181 : vector<64x64xbf16> to vector<8x8x64xbf16>
    %cst_158 = arith.constant 0.000000e+00 : bf16
    %183 = vector.broadcast %cst_158 : bf16 to vector<1x8x64xbf16>
    %cst_159 = arith.constant 0.000000e+00 : bf16
    %184 = vector.broadcast %cst_159 : bf16 to vector<8x1x64xbf16>
    %185 = vector.extract_strided_slice %182 {offsets = [0, 0, 0], sizes = [7, 7, 64], strides = [1, 1, 1]} : vector<8x8x64xbf16> to vector<7x7x64xbf16>
    %c1_160 = arith.constant 1 : index
    %c1_161 = arith.constant 1 : index
    %c0_162 = arith.constant 0 : index
    %186 = vector.load %arg13[%c1_160, %c1_161, %c0_162] : memref<8x8x864xbf16, #tpu.memory_space<vmem>>, vector<7x7x64xbf16>
    tpu.vector_store %arg13[%c1_160, %c1_161, %c0_162], %185 {strides = array<i32>} : memref<8x8x864xbf16, #tpu.memory_space<vmem>>, vector<7x7x64xbf16>,
    %c0_163 = arith.constant 0 : index
    %c0_164 = arith.constant 0 : index
    %c0_165 = arith.constant 0 : index
    %187 = vector.load %arg13[%c0_163, %c0_164, %c0_165] : memref<8x8x864xbf16, #tpu.memory_space<vmem>>, vector<1x8x64xbf16>
    tpu.vector_store %arg13[%c0_163, %c0_164, %c0_165], %183 {strides = array<i32>} : memref<8x8x864xbf16, #tpu.memory_space<vmem>>, vector<1x8x64xbf16>,
    %c0_166 = arith.constant 0 : index
    %c0_167 = arith.constant 0 : index
    %c0_168 = arith.constant 0 : index
    %188 = vector.load %arg13[%c0_166, %c0_167, %c0_168] : memref<8x8x864xbf16, #tpu.memory_space<vmem>>, vector<8x1x64xbf16>
    tpu.vector_store %arg13[%c0_166, %c0_167, %c0_168], %184 {strides = array<i32>} : memref<8x8x864xbf16, #tpu.memory_space<vmem>>, vector<8x1x64xbf16>,
    %189 = vector.extract_strided_slice %182 {offsets = [0, 0, 0], sizes = [7, 8, 64], strides = [1, 1, 1]} : vector<8x8x64xbf16> to vector<7x8x64xbf16>
    %c1_169 = arith.constant 1 : index
    %c0_170 = arith.constant 0 : index
    %c64_171 = arith.constant 64 : index
    %190 = vector.load %arg13[%c1_169, %c0_170, %c64_171] : memref<8x8x864xbf16, #tpu.memory_space<vmem>>, vector<7x8x64xbf16>
    tpu.vector_store %arg13[%c1_169, %c0_170, %c64_171], %189 {strides = array<i32>} : memref<8x8x864xbf16, #tpu.memory_space<vmem>>, vector<7x8x64xbf16>,
    %c0_172 = arith.constant 0 : index
    %c0_173 = arith.constant 0 : index
    %c64_174 = arith.constant 64 : index
    %191 = vector.load %arg13[%c0_172, %c0_173, %c64_174] : memref<8x8x864xbf16, #tpu.memory_space<vmem>>, vector<1x8x64xbf16>
    tpu.vector_store %arg13[%c0_172, %c0_173, %c64_174], %183 {strides = array<i32>} : memref<8x8x864xbf16, #tpu.memory_space<vmem>>, vector<1x8x64xbf16>,
    %192 = vector.extract_strided_slice %182 {offsets = [0, 1, 0], sizes = [7, 7, 64], strides = [1, 1, 1]} : vector<8x8x64xbf16> to vector<7x7x64xbf16>
    %c1_175 = arith.constant 1 : index
    %c0_176 = arith.constant 0 : index
    %c128_177 = arith.constant 128 : index
    %193 = vector.load %arg13[%c1_175, %c0_176, %c128_177] : memref<8x8x864xbf16, #tpu.memory_space<vmem>>, vector<7x7x64xbf16>
    tpu.vector_store %arg13[%c1_175, %c0_176, %c128_177], %192 {strides = array<i32>} : memref<8x8x864xbf16, #tpu.memory_space<vmem>>, vector<7x7x64xbf16>,
    %c0_178 = arith.constant 0 : index
    %c0_179 = arith.constant 0 : index
    %c128_180 = arith.constant 128 : index
    %194 = vector.load %arg13[%c0_178, %c0_179, %c128_180] : memref<8x8x864xbf16, #tpu.memory_space<vmem>>, vector<1x8x64xbf16>
    tpu.vector_store %arg13[%c0_178, %c0_179, %c128_180], %183 {strides = array<i32>} : memref<8x8x864xbf16, #tpu.memory_space<vmem>>, vector<1x8x64xbf16>,
    %c0_181 = arith.constant 0 : index
    %c7_182 = arith.constant 7 : index
    %c128_183 = arith.constant 128 : index
    %195 = vector.load %arg13[%c0_181, %c7_182, %c128_183] : memref<8x8x864xbf16, #tpu.memory_space<vmem>>, vector<8x1x64xbf16>
    tpu.vector_store %arg13[%c0_181, %c7_182, %c128_183], %184 {strides = array<i32>} : memref<8x8x864xbf16, #tpu.memory_space<vmem>>, vector<8x1x64xbf16>,
    %196 = vector.extract_strided_slice %182 {offsets = [0, 0, 0], sizes = [8, 7, 64], strides = [1, 1, 1]} : vector<8x8x64xbf16> to vector<8x7x64xbf16>
    %c0_184 = arith.constant 0 : index
    %c1_185 = arith.constant 1 : index
    %c192_186 = arith.constant 192 : index
    %197 = vector.load %arg13[%c0_184, %c1_185, %c192_186] : memref<8x8x864xbf16, #tpu.memory_space<vmem>>, vector<8x7x64xbf16>
    tpu.vector_store %arg13[%c0_184, %c1_185, %c192_186], %196 {strides = array<i32>} : memref<8x8x864xbf16, #tpu.memory_space<vmem>>, vector<8x7x64xbf16>,
    %c0_187 = arith.constant 0 : index
    %c0_188 = arith.constant 0 : index
    %c192_189 = arith.constant 192 : index
    %198 = vector.load %arg13[%c0_187, %c0_188, %c192_189] : memref<8x8x864xbf16, #tpu.memory_space<vmem>>, vector<8x1x64xbf16>
    tpu.vector_store %arg13[%c0_187, %c0_188, %c192_189], %184 {strides = array<i32>} : memref<8x8x864xbf16, #tpu.memory_space<vmem>>, vector<8x1x64xbf16>,
    %c0_190 = arith.constant 0 : index
    %c0_191 = arith.constant 0 : index
    %c256_192 = arith.constant 256 : index
    %199 = vector.load %arg13[%c0_190, %c0_191, %c256_192] : memref<8x8x864xbf16, #tpu.memory_space<vmem>>, vector<8x8x64xbf16>
    tpu.vector_store %arg13[%c0_190, %c0_191, %c256_192], %182 {strides = array<i32>} : memref<8x8x864xbf16, #tpu.memory_space<vmem>>, vector<8x8x64xbf16>,
    %200 = vector.extract_strided_slice %182 {offsets = [0, 1, 0], sizes = [8, 7, 64], strides = [1, 1, 1]} : vector<8x8x64xbf16> to vector<8x7x64xbf16>
    %c0_193 = arith.constant 0 : index
    %c0_194 = arith.constant 0 : index
    %c320 = arith.constant 320 : index
    %201 = vector.load %arg13[%c0_193, %c0_194, %c320] : memref<8x8x864xbf16, #tpu.memory_space<vmem>>, vector<8x7x64xbf16>
    tpu.vector_store %arg13[%c0_193, %c0_194, %c320], %200 {strides = array<i32>} : memref<8x8x864xbf16, #tpu.memory_space<vmem>>, vector<8x7x64xbf16>,
    %c0_195 = arith.constant 0 : index
    %c7_196 = arith.constant 7 : index
    %c320_197 = arith.constant 320 : index
    %202 = vector.load %arg13[%c0_195, %c7_196, %c320_197] : memref<8x8x864xbf16, #tpu.memory_space<vmem>>, vector<8x1x64xbf16>
    tpu.vector_store %arg13[%c0_195, %c7_196, %c320_197], %184 {strides = array<i32>} : memref<8x8x864xbf16, #tpu.memory_space<vmem>>, vector<8x1x64xbf16>,
    %203 = vector.extract_strided_slice %182 {offsets = [1, 0, 0], sizes = [7, 7, 64], strides = [1, 1, 1]} : vector<8x8x64xbf16> to vector<7x7x64xbf16>
    %c0_198 = arith.constant 0 : index
    %c1_199 = arith.constant 1 : index
    %c384 = arith.constant 384 : index
    %204 = vector.load %arg13[%c0_198, %c1_199, %c384] : memref<8x8x864xbf16, #tpu.memory_space<vmem>>, vector<7x7x64xbf16>
    tpu.vector_store %arg13[%c0_198, %c1_199, %c384], %203 {strides = array<i32>} : memref<8x8x864xbf16, #tpu.memory_space<vmem>>, vector<7x7x64xbf16>,
    %c7_200 = arith.constant 7 : index
    %c0_201 = arith.constant 0 : index
    %c384_202 = arith.constant 384 : index
    %205 = vector.load %arg13[%c7_200, %c0_201, %c384_202] : memref<8x8x864xbf16, #tpu.memory_space<vmem>>, vector<1x8x64xbf16>
    tpu.vector_store %arg13[%c7_200, %c0_201, %c384_202], %183 {strides = array<i32>} : memref<8x8x864xbf16, #tpu.memory_space<vmem>>, vector<1x8x64xbf16>,
    %c0_203 = arith.constant 0 : index
    %c0_204 = arith.constant 0 : index
    %c384_205 = arith.constant 384 : index
    %206 = vector.load %arg13[%c0_203, %c0_204, %c384_205] : memref<8x8x864xbf16, #tpu.memory_space<vmem>>, vector<8x1x64xbf16>
    tpu.vector_store %arg13[%c0_203, %c0_204, %c384_205], %184 {strides = array<i32>} : memref<8x8x864xbf16, #tpu.memory_space<vmem>>, vector<8x1x64xbf16>,
    %207 = vector.extract_strided_slice %182 {offsets = [1, 0, 0], sizes = [7, 8, 64], strides = [1, 1, 1]} : vector<8x8x64xbf16> to vector<7x8x64xbf16>
    %c0_206 = arith.constant 0 : index
    %c0_207 = arith.constant 0 : index
    %c448 = arith.constant 448 : index
    %208 = vector.load %arg13[%c0_206, %c0_207, %c448] : memref<8x8x864xbf16, #tpu.memory_space<vmem>>, vector<7x8x64xbf16>
    tpu.vector_store %arg13[%c0_206, %c0_207, %c448], %207 {strides = array<i32>} : memref<8x8x864xbf16, #tpu.memory_space<vmem>>, vector<7x8x64xbf16>,
    %c7_208 = arith.constant 7 : index
    %c0_209 = arith.constant 0 : index
    %c448_210 = arith.constant 448 : index
    %209 = vector.load %arg13[%c7_208, %c0_209, %c448_210] : memref<8x8x864xbf16, #tpu.memory_space<vmem>>, vector<1x8x64xbf16>
    tpu.vector_store %arg13[%c7_208, %c0_209, %c448_210], %183 {strides = array<i32>} : memref<8x8x864xbf16, #tpu.memory_space<vmem>>, vector<1x8x64xbf16>,
    %210 = vector.extract_strided_slice %182 {offsets = [1, 1, 0], sizes = [7, 7, 64], strides = [1, 1, 1]} : vector<8x8x64xbf16> to vector<7x7x64xbf16>
    %c0_211 = arith.constant 0 : index
    %c0_212 = arith.constant 0 : index
    %c512 = arith.constant 512 : index
    %211 = vector.load %arg13[%c0_211, %c0_212, %c512] : memref<8x8x864xbf16, #tpu.memory_space<vmem>>, vector<7x7x64xbf16>
    tpu.vector_store %arg13[%c0_211, %c0_212, %c512], %210 {strides = array<i32>} : memref<8x8x864xbf16, #tpu.memory_space<vmem>>, vector<7x7x64xbf16>,
    %c7_213 = arith.constant 7 : index
    %c0_214 = arith.constant 0 : index
    %c512_215 = arith.constant 512 : index
    %212 = vector.load %arg13[%c7_213, %c0_214, %c512_215] : memref<8x8x864xbf16, #tpu.memory_space<vmem>>, vector<1x8x64xbf16>
    tpu.vector_store %arg13[%c7_213, %c0_214, %c512_215], %183 {strides = array<i32>} : memref<8x8x864xbf16, #tpu.memory_space<vmem>>, vector<1x8x64xbf16>,
    %c0_216 = arith.constant 0 : index
    %c7_217 = arith.constant 7 : index
    %c512_218 = arith.constant 512 : index
    %213 = vector.load %arg13[%c0_216, %c7_217, %c512_218] : memref<8x8x864xbf16, #tpu.memory_space<vmem>>, vector<8x1x64xbf16>
    tpu.vector_store %arg13[%c0_216, %c7_217, %c512_218], %184 {strides = array<i32>} : memref<8x8x864xbf16, #tpu.memory_space<vmem>>, vector<8x1x64xbf16>,
    %c0_219 = arith.constant 0 : index
    %c0_220 = arith.constant 0 : index
    %c0_221 = arith.constant 0 : index
    %214 = vector.load %arg13[%c0_219, %c0_220, %c0_221] : memref<8x8x864xbf16, #tpu.memory_space<vmem>>, vector<8x8x864xbf16>
    %215 = vector.shape_cast %214 : vector<8x8x864xbf16> to vector<64x864xbf16>
    %c0_222 = arith.constant 0 : index
    %c0_223 = arith.constant 0 : index
    %216 = vector.load %arg9[%c0_222, %c0_223] : memref<864x64xbf16, #tpu.memory_space<vmem>>, vector<864x64xbf16>
    %cst_224 = arith.constant dense<0.000000e+00> : vector<64x64xf32>
    %217 = tpu.matmul %215, %216, %cst_224 {dimension_numbers = #tpu.dot_dimension_numbers<[1], [0], [0], [1], [0, 0, 1, 1], [], []>} : vector<64x864xbf16>, vector<864x64xbf16>, vector<64x64xf32> -> vector<64x64xf32>
    %c0_225 = arith.constant 0 : index
    %c0_226 = arith.constant 0 : index
    %218 = vector.load %arg10[%c0_225, %c0_226] : memref<1x64xf32, #tpu.memory_space<vmem>>, vector<1x64xf32>
    %219 = vector.broadcast %218 : vector<1x64xf32> to vector<64x64xf32>
    %220 = arith.addf %217, %219 : vector<64x64xf32>
    %221 = vector.shape_cast %220 : vector<64x64xf32> to vector<8x8x64xf32>
    %222 = vector.extract_strided_slice %221 {offsets = [0, 0, 0], sizes = [8, 1, 64], strides = [1, 1, 1]} : vector<8x8x64xf32> to vector<8x1x64xf32>
    %223 = vector.shape_cast %222 : vector<8x1x64xf32> to vector<8x64xf32>
    %224 = vector.extract_strided_slice %221 {offsets = [0, 1, 0], sizes = [8, 1, 64], strides = [1, 1, 1]} : vector<8x8x64xf32> to vector<8x1x64xf32>
    %225 = vector.shape_cast %224 : vector<8x1x64xf32> to vector<8x64xf32>
    %226 = tpu.concatenate %223, %225 in 1 : vector<8x64xf32>, vector<8x64xf32> -> vector<8x128xf32>
    %c0_227 = arith.constant 0 : index
    %c0_228 = arith.constant 0 : index
    %c0_229 = arith.constant 0 : index
    %227 = vector.load %arg11[%c0_227, %c0_228, %c0_229] : memref<1x8x512xf32, #tpu.memory_space<vmem>>, vector<1x8x128xf32>
    %228 = vector.shape_cast %227 : vector<1x8x128xf32> to vector<8x128xf32>
    %229 = vector.shape_cast %226 : vector<8x128xf32> to vector<1x8x128xf32>
    tpu.vector_store %arg11[%c0_227, %c0_228, %c0_229], %229 {strides = array<i32>} : memref<1x8x512xf32, #tpu.memory_space<vmem>>, vector<1x8x128xf32>,
    %230 = vector.extract_strided_slice %221 {offsets = [0, 2, 0], sizes = [8, 1, 64], strides = [1, 1, 1]} : vector<8x8x64xf32> to vector<8x1x64xf32>
    %231 = vector.shape_cast %230 : vector<8x1x64xf32> to vector<8x64xf32>
    %232 = vector.extract_strided_slice %221 {offsets = [0, 3, 0], sizes = [8, 1, 64], strides = [1, 1, 1]} : vector<8x8x64xf32> to vector<8x1x64xf32>
    %233 = vector.shape_cast %232 : vector<8x1x64xf32> to vector<8x64xf32>
    %234 = tpu.concatenate %231, %233 in 1 : vector<8x64xf32>, vector<8x64xf32> -> vector<8x128xf32>
    %c0_230 = arith.constant 0 : index
    %c0_231 = arith.constant 0 : index
    %c128_232 = arith.constant 128 : index
    %235 = vector.load %arg11[%c0_230, %c0_231, %c128_232] : memref<1x8x512xf32, #tpu.memory_space<vmem>>, vector<1x8x128xf32>
    %236 = vector.shape_cast %235 : vector<1x8x128xf32> to vector<8x128xf32>
    %237 = vector.shape_cast %234 : vector<8x128xf32> to vector<1x8x128xf32>
    tpu.vector_store %arg11[%c0_230, %c0_231, %c128_232], %237 {strides = array<i32>} : memref<1x8x512xf32, #tpu.memory_space<vmem>>, vector<1x8x128xf32>,
    %238 = vector.extract_strided_slice %221 {offsets = [0, 4, 0], sizes = [8, 1, 64], strides = [1, 1, 1]} : vector<8x8x64xf32> to vector<8x1x64xf32>
    %239 = vector.shape_cast %238 : vector<8x1x64xf32> to vector<8x64xf32>
    %240 = vector.extract_strided_slice %221 {offsets = [0, 5, 0], sizes = [8, 1, 64], strides = [1, 1, 1]} : vector<8x8x64xf32> to vector<8x1x64xf32>
    %241 = vector.shape_cast %240 : vector<8x1x64xf32> to vector<8x64xf32>
    %242 = tpu.concatenate %239, %241 in 1 : vector<8x64xf32>, vector<8x64xf32> -> vector<8x128xf32>
    %c0_233 = arith.constant 0 : index
    %c0_234 = arith.constant 0 : index
    %c256_235 = arith.constant 256 : index
    %243 = vector.load %arg11[%c0_233, %c0_234, %c256_235] : memref<1x8x512xf32, #tpu.memory_space<vmem>>, vector<1x8x128xf32>
    %244 = vector.shape_cast %243 : vector<1x8x128xf32> to vector<8x128xf32>
    %245 = vector.shape_cast %242 : vector<8x128xf32> to vector<1x8x128xf32>
    tpu.vector_store %arg11[%c0_233, %c0_234, %c256_235], %245 {strides = array<i32>} : memref<1x8x512xf32, #tpu.memory_space<vmem>>, vector<1x8x128xf32>,
    %246 = vector.extract_strided_slice %221 {offsets = [0, 6, 0], sizes = [8, 1, 64], strides = [1, 1, 1]} : vector<8x8x64xf32> to vector<8x1x64xf32>
    %247 = vector.shape_cast %246 : vector<8x1x64xf32> to vector<8x64xf32>
    %248 = vector.extract_strided_slice %221 {offsets = [0, 7, 0], sizes = [8, 1, 64], strides = [1, 1, 1]} : vector<8x8x64xf32> to vector<8x1x64xf32>
    %249 = vector.shape_cast %248 : vector<8x1x64xf32> to vector<8x64xf32>
    %250 = tpu.concatenate %247, %249 in 1 : vector<8x64xf32>, vector<8x64xf32> -> vector<8x128xf32>
    %c0_236 = arith.constant 0 : index
    %c0_237 = arith.constant 0 : index
    %c384_238 = arith.constant 384 : index
    %251 = vector.load %arg11[%c0_236, %c0_237, %c384_238] : memref<1x8x512xf32, #tpu.memory_space<vmem>>, vector<1x8x128xf32>
    %252 = vector.shape_cast %251 : vector<1x8x128xf32> to vector<8x128xf32>
    %253 = vector.shape_cast %250 : vector<8x128xf32> to vector<1x8x128xf32>
    tpu.vector_store %arg11[%c0_236, %c0_237, %c384_238], %253 {strides = array<i32>} : memref<1x8x512xf32, #tpu.memory_space<vmem>>, vector<1x8x128xf32>,
    return
  }
  func.func @transform_0(%arg0: i32) -> (i32, i32, i32, i32) {
    %c0_i32 = arith.constant 0 : i32
    %c0_i32_0 = arith.constant 0 : i32
    %c0_i32_1 = arith.constant 0 : i32
    %c0_i32_2 = arith.constant 0 : i32
    return %arg0, %c0_i32, %c0_i32_0, %c0_i32_1 : i32, i32, i32, i32
  }
  func.func @transform_1(%arg0: i32) -> (i32, i32, i32) {
    %c0_i32 = arith.constant 0 : i32
    %c0_i32_0 = arith.constant 0 : i32
    %c0_i32_1 = arith.constant 0 : i32
    return %arg0, %c0_i32, %c0_i32_0 : i32, i32, i32
  }
  func.func @transform_2(%arg0: i32) -> (i32, i32) {
    %c0_i32 = arith.constant 0 : i32
    %c0_i32_0 = arith.constant 0 : i32
    %c0_i32_1 = arith.constant 0 : i32
    return %c0_i32, %c0_i32_0 : i32, i32
  }
  func.func @transform_3(%arg0: i32) -> (i32, i32) {
    %c0_i32 = arith.constant 0 : i32
    %c0_i32_0 = arith.constant 0 : i32
    %c0_i32_1 = arith.constant 0 : i32
    return %c0_i32, %c0_i32_0 : i32, i32
  }
  func.func @transform_4(%arg0: i32) -> (i32, i32) {
    %c0_i32 = arith.constant 0 : i32
    %c0_i32_0 = arith.constant 0 : i32
    %c0_i32_1 = arith.constant 0 : i32
    return %c0_i32, %c0_i32_0 : i32, i32
  }
  func.func @transform_5(%arg0: i32) -> (i32, i32) {
    %c0_i32 = arith.constant 0 : i32
    %c0_i32_0 = arith.constant 0 : i32
    %c0_i32_1 = arith.constant 0 : i32
    return %c0_i32, %c0_i32_0 : i32, i32
  }
  func.func @transform_6(%arg0: i32) -> (i32, i32) {
    %c0_i32 = arith.constant 0 : i32
    %c0_i32_0 = arith.constant 0 : i32
    %c0_i32_1 = arith.constant 0 : i32
    return %c0_i32, %c0_i32_0 : i32, i32
  }
  func.func @transform_7(%arg0: i32) -> (i32, i32) {
    %c0_i32 = arith.constant 0 : i32
    %c0_i32_0 = arith.constant 0 : i32
    %c0_i32_1 = arith.constant 0 : i32
    return %c0_i32, %c0_i32_0 : i32, i32
  }
  func.func @transform_8(%arg0: i32) -> (i32, i32) {
    %c0_i32 = arith.constant 0 : i32
    %c0_i32_0 = arith.constant 0 : i32
    %c0_i32_1 = arith.constant 0 : i32
    return %c0_i32, %c0_i32_0 : i32, i32
  }
  func.func @transform_9(%arg0: i32) -> (i32, i32) {
    %c0_i32 = arith.constant 0 : i32
    %c0_i32_0 = arith.constant 0 : i32
    %c0_i32_1 = arith.constant 0 : i32
    return %c0_i32, %c0_i32_0 : i32, i32
  }
  func.func @transform_10(%arg0: i32) -> (i32, i32, i32) {
    %c0_i32 = arith.constant 0 : i32
    %c0_i32_0 = arith.constant 0 : i32
    %c0_i32_1 = arith.constant 0 : i32
    return %arg0, %c0_i32, %c0_i32_0 : i32, i32, i32
  }
}

</mosaic_0001>

<llo_original>
// kernel: tpu_custom_call.1
$region0: #{tpu_custom_call.1}
  #allocation0 [shape = 'u32[]', space=smem, size = 0x4, offset = 0x4, fixed_abs, tag = 'smem constant byte address 0x4 - core index']
  #allocation1 [shape = 'u32[144,128]{1,0:T(1,128)}', space=vmem, size = 0x12000, scoped, tag = 'internal scratch']
  #allocation2 [shape = 'bf16[8,8,288]{2,1,0:T(8,128)(2,1)}', space=vmem, size = 0xc000, scoped, tag = 'scratch operand']
  #allocation3 [shape = 'bf16[8,8,864]{2,1,0:T(8,128)(2,1)}', space=vmem, size = 0x1c000, scoped, tag = 'scratch operand']
  %s0 = inlined_call_operand.vmem [shape: f32[2,8,8,32], index: 0, kind: input, shape index: {}]
  %s1 = inlined_call_operand.vmem [shape: f32[2,1,64], index: 1, kind: input, shape index: {}]
  %s2 = inlined_call_operand.vmem [shape: f32[1,32], index: 2, kind: input, shape index: {}]
  %s3 = inlined_call_operand.vmem [shape: f32[1,32], index: 3, kind: input, shape index: {}]
  %s4 = inlined_call_operand.vmem [shape: bf16[288,64], index: 4, kind: input, shape index: {}]
  %s5 = inlined_call_operand.vmem [shape: f32[1,64], index: 5, kind: input, shape index: {}]
  %s6 = inlined_call_operand.vmem [shape: f32[1,64], index: 6, kind: input, shape index: {}]
  %s7 = inlined_call_operand.vmem [shape: f32[1,64], index: 7, kind: input, shape index: {}]
  %s8 = inlined_call_operand.vmem [shape: bf16[864,64], index: 8, kind: input, shape index: {}]
  %s9 = inlined_call_operand.vmem [shape: f32[1,64], index: 9, kind: input, shape index: {}]
  %s10 = inlined_call_operand.hbm [shape: f32[2,8,512], index: 10, kind: output, shape index: {}]
  %s11 = sld [smem:[#allocation0]]
  $region73: #{tpu_custom_call.1} parent=0
    _
  %s13 = ssub.s32 1, %s11
  %s14 = scalar_select 0, %s13, %s11
  $region1: #{tpu_custom_call.1} parent=0
    #allocation4 [shape = 'u8[32768]{0}', space=vmem, size = 0x8000, scoped, tag = 'output window, operand 0']
    #allocation5 [shape = 's32[2]{0}', space=sflag, size = 0x8, scoped, tag = 'scoped memory for tpu_custom_call.1']
    %15 = vsyncpa [#allocation5], 0
    %s16 = scalar_lea.sflag [#allocation5], 1
    %17 = vsyncpa %s16, 0
    loop: start=0, step=1, limit=4
    $region2: #{tpu_custom_call.1} parent=1 // loop_pre_header
      _
    $region3: #{tpu_custom_call.1} parent=1 // loop_header
      %s19 = sphi 0, %s23
      %p20 = scmp.ge.s32.totalorder %s19, 4
      %s29 = sphi 0, %s31
      %s32 = sphi 0, %s29
      %s33 = sphi 0, %s32
      %s49 = sphi 0, %s33
      %s55 = sphi 0, %s57
      %s58 = sphi 0, %s55
      %s59 = sphi 0, %s58
      %s75 = sphi 0, %s59
      %s79 = sphi 0, %s79
      %s81 = sphi 0, %s79
      %s82 = sphi 0, %s81
      %s96 = sphi 0, %s82
      %s100 = sphi 0, %s100
      %s102 = sphi 0, %s100
      %s103 = sphi 0, %s102
      %s117 = sphi 0, %s103
      %s121 = sphi 0, %s121
      %s123 = sphi 0, %s121
      %s124 = sphi 0, %s123
      %s138 = sphi 0, %s124
      %s142 = sphi 0, %s142
      %s144 = sphi 0, %s142
      %s145 = sphi 0, %s144
      %s159 = sphi 0, %s145
      %s163 = sphi 0, %s163
      %s165 = sphi 0, %s163
      %s166 = sphi 0, %s165
      %s180 = sphi 0, %s166
      %s184 = sphi 0, %s184
      %s186 = sphi 0, %s184
      %s187 = sphi 0, %s186
      %s201 = sphi 0, %s187
      %s205 = sphi 0, %s205
      %s207 = sphi 0, %s205
      %s208 = sphi 0, %s207
      %s222 = sphi 0, %s208
      %s226 = sphi 0, %s226
      %s228 = sphi 0, %s226
      %s229 = sphi 0, %s228
      %s243 = sphi 0, %s229
      %s249 = sphi 0, %s251
      %s252 = sphi 0, %s249
      %s253 = sphi 0, %s252
      %s269 = sphi 0, %s253
    $region4: #{tpu_custom_call.1} parent=1 // loop_header_branch
      %22 = sbr.rel (%p20) target = $region8
    $region5: #{tpu_custom_call.1} parent=1 // loop_body
      %s24 = ssub.s32 %s19, 1
      %s25 = ssub.s32 %s19, 2
      %s26 = sadd.s32 %s19, 1
      %s27 = ssub.s32 %s19, %s26
      %p28 = scmp.eq.s32.totalorder %s27, 0
      %s30 = sadd.s32 %s29, 1
      %s31 = scalar_select %p28, %s29, %s30
      %p34 = pneg %p28
      %p35 = scmp.eq.s32.totalorder %s19, 1
      %p36 = por %p34, %p35
      %p37 = scmp.ne.s32.totalorder %s29, %s32
      %p38 = scmp.eq.s32.totalorder %s19, 0
      %p39 = por %p37, %p38
      %p40 = scmp.ne.s32.totalorder %s29, %s32
      %p41 = scmp.eq.s32.totalorder %s24, 1
      %p42 = por %p40, %p41
      %p43 = scmp.ne.s32.totalorder %s32, %s33
      %p44 = scmp.eq.s32.totalorder %s24, 0
      %p45 = por %p43, %p44
      %p46 = scmp.ne.s32.totalorder %s32, %s33
      %p47 = scmp.eq.s32.totalorder %s25, 1
      %p48 = por %p46, %p47
      %p50 = scmp.ne.s32.totalorder %s33, %s49
      %p51 = scmp.eq.s32.totalorder %s25, 0
      %p52 = por %p50, %p51
      %s53 = ssub.s32 %s19, %s26
      %p54 = scmp.eq.s32.totalorder %s53, 0
      %s56 = sadd.s32 %s55, 1
      %s57 = scalar_select %p54, %s55, %s56
      %p60 = pneg %p54
      %p61 = scmp.eq.s32.totalorder %s19, 1
      %p62 = por %p60, %p61
      %p63 = scmp.ne.s32.totalorder %s55, %s58
      %p64 = scmp.eq.s32.totalorder %s19, 0
      %p65 = por %p63, %p64
      %p66 = scmp.ne.s32.totalorder %s55, %s58
      %p67 = scmp.eq.s32.totalorder %s24, 1
      %p68 = por %p66, %p67
      %p69 = scmp.ne.s32.totalorder %s58, %s59
      %p70 = scmp.eq.s32.totalorder %s24, 0
      %p71 = por %p69, %p70
      %p72 = scmp.ne.s32.totalorder %s58, %s59
      %p73 = scmp.eq.s32.totalorder %s25, 1
      %p74 = por %p72, %p73
      %p76 = scmp.ne.s32.totalorder %s59, %s75
      %p77 = scmp.eq.s32.totalorder %s25, 0
      %p78 = por %p76, %p77
      %s80 = sadd.s32 %s79, 1
      %p83 = scmp.eq.s32.totalorder %s19, 1
      %p84 = scmp.ne.s32.totalorder %s79, %s81
      %p85 = scmp.eq.s32.totalorder %s19, 0
      %p86 = por %p84, %p85
      %p87 = scmp.ne.s32.totalorder %s79, %s81
      %p88 = scmp.eq.s32.totalorder %s24, 1
      %p89 = por %p87, %p88
      %p90 = scmp.ne.s32.totalorder %s81, %s82
      %p91 = scmp.eq.s32.totalorder %s24, 0
      %p92 = por %p90, %p91
      %p93 = scmp.ne.s32.totalorder %s81, %s82
      %p94 = scmp.eq.s32.totalorder %s25, 1
      %p95 = por %p93, %p94
      %p97 = scmp.ne.s32.totalorder %s82, %s96
      %p98 = scmp.eq.s32.totalorder %s25, 0
      %p99 = por %p97, %p98
      %s101 = sadd.s32 %s100, 1
      %p104 = scmp.eq.s32.totalorder %s19, 1
      %p105 = scmp.ne.s32.totalorder %s100, %s102
      %p106 = scmp.eq.s32.totalorder %s19, 0
      %p107 = por %p105, %p106
      %p108 = scmp.ne.s32.totalorder %s100, %s102
      %p109 = scmp.eq.s32.totalorder %s24, 1
      %p110 = por %p108, %p109
      %p111 = scmp.ne.s32.totalorder %s102, %s103
      %p112 = scmp.eq.s32.totalorder %s24, 0
      %p113 = por %p111, %p112
      %p114 = scmp.ne.s32.totalorder %s102, %s103
      %p115 = scmp.eq.s32.totalorder %s25, 1
      %p116 = por %p114, %p115
      %p118 = scmp.ne.s32.totalorder %s103, %s117
      %p119 = scmp.eq.s32.totalorder %s25, 0
      %p120 = por %p118, %p119
      %s122 = sadd.s32 %s121, 1
      %p125 = scmp.eq.s32.totalorder %s19, 1
      %p126 = scmp.ne.s32.totalorder %s121, %s123
      %p127 = scmp.eq.s32.totalorder %s19, 0
      %p128 = por %p126, %p127
      %p129 = scmp.ne.s32.totalorder %s121, %s123
      %p130 = scmp.eq.s32.totalorder %s24, 1
      %p131 = por %p129, %p130
      %p132 = scmp.ne.s32.totalorder %s123, %s124
      %p133 = scmp.eq.s32.totalorder %s24, 0
      %p134 = por %p132, %p133
      %p135 = scmp.ne.s32.totalorder %s123, %s124
      %p136 = scmp.eq.s32.totalorder %s25, 1
      %p137 = por %p135, %p136
      %p139 = scmp.ne.s32.totalorder %s124, %s138
      %p140 = scmp.eq.s32.totalorder %s25, 0
      %p141 = por %p139, %p140
      %s143 = sadd.s32 %s142, 1
      %p146 = scmp.eq.s32.totalorder %s19, 1
      %p147 = scmp.ne.s32.totalorder %s142, %s144
      %p148 = scmp.eq.s32.totalorder %s19, 0
      %p149 = por %p147, %p148
      %p150 = scmp.ne.s32.totalorder %s142, %s144
      %p151 = scmp.eq.s32.totalorder %s24, 1
      %p152 = por %p150, %p151
      %p153 = scmp.ne.s32.totalorder %s144, %s145
      %p154 = scmp.eq.s32.totalorder %s24, 0
      %p155 = por %p153, %p154
      %p156 = scmp.ne.s32.totalorder %s144, %s145
      %p157 = scmp.eq.s32.totalorder %s25, 1
      %p158 = por %p156, %p157
      %p160 = scmp.ne.s32.totalorder %s145, %s159
      %p161 = scmp.eq.s32.totalorder %s25, 0
      %p162 = por %p160, %p161
      %s164 = sadd.s32 %s163, 1
      %p167 = scmp.eq.s32.totalorder %s19, 1
      %p168 = scmp.ne.s32.totalorder %s163, %s165
      %p169 = scmp.eq.s32.totalorder %s19, 0
      %p170 = por %p168, %p169
      %p171 = scmp.ne.s32.totalorder %s163, %s165
      %p172 = scmp.eq.s32.totalorder %s24, 1
      %p173 = por %p171, %p172
      %p174 = scmp.ne.s32.totalorder %s165, %s166
      %p175 = scmp.eq.s32.totalorder %s24, 0
      %p176 = por %p174, %p175
      %p177 = scmp.ne.s32.totalorder %s165, %s166
      %p178 = scmp.eq.s32.totalorder %s25, 1
      %p179 = por %p177, %p178
      %p181 = scmp.ne.s32.totalorder %s166, %s180
      %p182 = scmp.eq.s32.totalorder %s25, 0
      %p183 = por %p181, %p182
      %s185 = sadd.s32 %s184, 1
      %p188 = scmp.eq.s32.totalorder %s19, 1
      %p189 = scmp.ne.s32.totalorder %s184, %s186
      %p190 = scmp.eq.s32.totalorder %s19, 0
      %p191 = por %p189, %p190
      %p192 = scmp.ne.s32.totalorder %s184, %s186
      %p193 = scmp.eq.s32.totalorder %s24, 1
      %p194 = por %p192, %p193
      %p195 = scmp.ne.s32.totalorder %s186, %s187
      %p196 = scmp.eq.s32.totalorder %s24, 0
      %p197 = por %p195, %p196
      %p198 = scmp.ne.s32.totalorder %s186, %s187
      %p199 = scmp.eq.s32.totalorder %s25, 1
      %p200 = por %p198, %p199
      %p202 = scmp.ne.s32.totalorder %s187, %s201
      %p203 = scmp.eq.s32.totalorder %s25, 0
      %p204 = por %p202, %p203
      %s206 = sadd.s32 %s205, 1
      %p209 = scmp.eq.s32.totalorder %s19, 1
      %p210 = scmp.ne.s32.totalorder %s205, %s207
      %p211 = scmp.eq.s32.totalorder %s19, 0
      %p212 = por %p210, %p211
      %p213 = scmp.ne.s32.totalorder %s205, %s207
      %p214 = scmp.eq.s32.totalorder %s24, 1
      %p215 = por %p213, %p214
      %p216 = scmp.ne.s32.totalorder %s207, %s208
      %p217 = scmp.eq.s32.totalorder %s24, 0
      %p218 = por %p216, %p217
      %p219 = scmp.ne.s32.totalorder %s207, %s208
      %p220 = scmp.eq.s32.totalorder %s25, 1
      %p221 = por %p219, %p220
      %p223 = scmp.ne.s32.totalorder %s208, %s222
      %p224 = scmp.eq.s32.totalorder %s25, 0
      %p225 = por %p223, %p224
      %s227 = sadd.s32 %s226, 1
      %p230 = scmp.eq.s32.totalorder %s19, 1
      %p231 = scmp.ne.s32.totalorder %s226, %s228
      %p232 = scmp.eq.s32.totalorder %s19, 0
      %p233 = por %p231, %p232
      %p234 = scmp.ne.s32.totalorder %s226, %s228
      %p235 = scmp.eq.s32.totalorder %s24, 1
      %p236 = por %p234, %p235
      %p237 = scmp.ne.s32.totalorder %s228, %s229
      %p238 = scmp.eq.s32.totalorder %s24, 0
      %p239 = por %p237, %p238
      %p240 = scmp.ne.s32.totalorder %s228, %s229
      %p241 = scmp.eq.s32.totalorder %s25, 1
      %p242 = por %p240, %p241
      %p244 = scmp.ne.s32.totalorder %s229, %s243
      %p245 = scmp.eq.s32.totalorder %s25, 0
      %p246 = por %p244, %p245
      %s247 = ssub.s32 %s19, %s26
      %p248 = scmp.eq.s32.totalorder %s247, 0
      %s250 = sadd.s32 %s249, 1
      %s251 = scalar_select %p248, %s249, %s250
      %p254 = pneg %p248
      %p255 = scmp.eq.s32.totalorder %s19, 1
      %p256 = por %p254, %p255
      %p257 = scmp.ne.s32.totalorder %s249, %s252
      %p258 = scmp.eq.s32.totalorder %s19, 0
      %p259 = por %p257, %p258
      %p260 = scmp.ne.s32.totalorder %s249, %s252
      %p261 = scmp.eq.s32.totalorder %s24, 1
      %p262 = por %p260, %p261
      %p263 = scmp.ne.s32.totalorder %s252, %s253
      %p264 = scmp.eq.s32.totalorder %s24, 0
      %p265 = por %p263, %p264
      %p266 = scmp.ne.s32.totalorder %s252, %s253
      %p267 = scmp.eq.s32.totalorder %s25, 1
      %p268 = por %p266, %p267
      %p270 = scmp.ne.s32.totalorder %s253, %s269
      %p271 = scmp.eq.s32.totalorder %s25, 0
      %p272 = por %p270, %p271
      %p273 = scmp.le.s32.totalorder 1, %s19
      %p274 = scmp.lt.s32.totalorder %s19, 3
      %p275 = pnand %p273, %p274
      %p276 = pneg %p275
      // Predicated region
      $region9: #{tpu_custom_call.1} parent=5 // pred_check
        _
      $region10: #{tpu_custom_call.1} parent=5 // pred_check_branch
        %278 = sbr.rel (%p275) target = $region12
      $region11: #{tpu_custom_call.1} parent=5 // pred_region
        %s279 = ssub.s32 %s19, 1
        // Predicated region
        $region13: #{tpu_custom_call.1} parent=11 // pred_check
          %p280 = pneg %p92
        $region14: #{tpu_custom_call.1} parent=11 // pred_check_branch
          %282 = sbr.rel (%p280) target = $region16
        $region15: #{tpu_custom_call.1} parent=11 // pred_region
          _
        $region16: #{tpu_custom_call.1} parent=11 // pred_fallthru
          _
        // Predicated region
        $region17: #{tpu_custom_call.1} parent=11 // pred_check
          %p283 = pneg %p113
        $region18: #{tpu_custom_call.1} parent=11 // pred_check_branch
          %285 = sbr.rel (%p283) target = $region20
        $region19: #{tpu_custom_call.1} parent=11 // pred_region
          _
        $region20: #{tpu_custom_call.1} parent=11 // pred_fallthru
          _
        // Predicated region
        $region21: #{tpu_custom_call.1} parent=11 // pred_check
          %p286 = pneg %p134
        $region22: #{tpu_custom_call.1} parent=11 // pred_check_branch
          %288 = sbr.rel (%p286) target = $region24
        $region23: #{tpu_custom_call.1} parent=11 // pred_region
          _
        $region24: #{tpu_custom_call.1} parent=11 // pred_fallthru
          _
        // Predicated region
        $region25: #{tpu_custom_call.1} parent=11 // pred_check
          %p289 = pneg %p155
        $region26: #{tpu_custom_call.1} parent=11 // pred_check_branch
          %291 = sbr.rel (%p289) target = $region28
        $region27: #{tpu_custom_call.1} parent=11 // pred_region
          _
        $region28: #{tpu_custom_call.1} parent=11 // pred_fallthru
          _
        // Predicated region
        $region29: #{tpu_custom_call.1} parent=11 // pred_check
          %p292 = pneg %p176
        $region30: #{tpu_custom_call.1} parent=11 // pred_check_branch
          %294 = sbr.rel (%p292) target = $region32
        $region31: #{tpu_custom_call.1} parent=11 // pred_region
          _
        $region32: #{tpu_custom_call.1} parent=11 // pred_fallthru
          _
        // Predicated region
        $region33: #{tpu_custom_call.1} parent=11 // pred_check
          %p295 = pneg %p197
        $region34: #{tpu_custom_call.1} parent=11 // pred_check_branch
          %297 = sbr.rel (%p295) target = $region36
        $region35: #{tpu_custom_call.1} parent=11 // pred_region
          _
        $region36: #{tpu_custom_call.1} parent=11 // pred_fallthru
          _
        // Predicated region
        $region37: #{tpu_custom_call.1} parent=11 // pred_check
          %p298 = pneg %p218
        $region38: #{tpu_custom_call.1} parent=11 // pred_check_branch
          %300 = sbr.rel (%p298) target = $region40
        $region39: #{tpu_custom_call.1} parent=11 // pred_region
          _
        $region40: #{tpu_custom_call.1} parent=11 // pred_fallthru
          _
        // Predicated region
        $region41: #{tpu_custom_call.1} parent=11 // pred_check
          %p301 = pneg %p239
        $region42: #{tpu_custom_call.1} parent=11 // pred_check_branch
          %303 = sbr.rel (%p301) target = $region44
        $region43: #{tpu_custom_call.1} parent=11 // pred_region
          _
        $region44: #{tpu_custom_call.1} parent=11 // pred_fallthru
          _
      $region12: #{tpu_custom_call.1} parent=5 // pred_fallthru
        _
      %p304 = scmp.lt.s32.totalorder %s19, 2
      // Predicated region
      $region45: #{tpu_custom_call.1} parent=5 // pred_check
        %p305 = pneg %p304
      $region46: #{tpu_custom_call.1} parent=5 // pred_check_branch
        %307 = sbr.rel (%p305) target = $region48
      $region47: #{tpu_custom_call.1} parent=5 // pred_region
        // Predicated region
        $region49: #{tpu_custom_call.1} parent=47 // pred_check
          %p308 = pneg %p39
        $region50: #{tpu_custom_call.1} parent=47 // pred_check_branch
          %310 = sbr.rel (%p308) target = $region52
        $region51: #{tpu_custom_call.1} parent=47 // pred_region
          %p311 = scmp.lt.s32.totalorder %s19, 1
          %s312 = scalar_select %p311, %s19, 1
          %s313 = smul.addr %s312, 8
          %s314 = smul.addr %s313, 8
          %s315 = scalar_lea.vmem %s0, %s314
        $region52: #{tpu_custom_call.1} parent=47 // pred_fallthru
          _
        // Predicated region
        $region53: #{tpu_custom_call.1} parent=47 // pred_check
          %p316 = pneg %p65
        $region54: #{tpu_custom_call.1} parent=47 // pred_check_branch
          %318 = sbr.rel (%p316) target = $region56
        $region55: #{tpu_custom_call.1} parent=47 // pred_region
          %p319 = scmp.lt.s32.totalorder %s19, 1
          %s320 = scalar_select %p319, %s19, 1
          %s321 = scalar_lea.vmem %s1, %s320
        $region56: #{tpu_custom_call.1} parent=47 // pred_fallthru
          _
      $region48: #{tpu_custom_call.1} parent=5 // pred_fallthru
        _
      %p322 = scmp.le.s32.totalorder 1, %s19
      %p323 = scmp.lt.s32.totalorder %s19, 3
      %p324 = pnand %p322, %p323
      %p325 = pneg %p324
      // Predicated region
      $region57: #{tpu_custom_call.1} parent=5 // pred_check
        _
      $region58: #{tpu_custom_call.1} parent=5 // pred_check_branch
        %327 = sbr.rel (%p324) target = $region60
      $region59: #{tpu_custom_call.1} parent=5 // pred_region
        %s328 = ssub.s32 %s19, 1
        %p329 = scmp.lt.s32.totalorder %s24, 1
        %s330 = scalar_select %p329, %s24, 1
        %s331 = smul.addr %s330, 8
        %s332 = smul.addr %s331, 8
        %s333 = scalar_lea.vmem %s0, %s332
        %p334 = pneg %p45
        %p335 = pneg %p42
        %p336 = scmp.lt.s32.totalorder %s24, 1
        %s337 = scalar_select %p336, %s24, 1
        %s338 = scalar_lea.vmem %s1, %s337
        %p339 = pneg %p71
        %p340 = pneg %p68
        %p341 = pneg %p92
        %p342 = pneg %p89
        %p343 = pneg %p113
        %p344 = pneg %p110
        %p345 = pneg %p134
        %p346 = pneg %p131
        %p347 = pneg %p155
        %p348 = pneg %p152
        %p349 = pneg %p176
        %p350 = pneg %p173
        %p351 = pneg %p197
        %p352 = pneg %p194
        %p353 = pneg %p218
        %p354 = pneg %p215
        %p355 = pneg %p239
        %p356 = pneg %p236
        %p357 = pneg %p265
        %p358 = pneg %p262
        %s359 = sand.u32 %s252, 1
        %s360 = scalar_lea.sflag [#allocation5], %s359
        %s361 = sand.u32 %s252, 1
        %s362 = smul.addr %s361, 32
        %s363 = scalar_lea.vmem [#allocation4], %s362
        %p364 = scmp.lt.s32.totalorder %s24, 1
        %s365 = scalar_select %p364, %s24, 1
        %s366 = smul.addr %s365, 8
        %s367 = smul.addr %s366, 8
        %s368 = scalar_lea.vmem %s0, %s367
        %p369 = scmp.lt.s32.totalorder %s24, 1
        %s370 = scalar_select %p369, %s24, 1
        %s371 = scalar_lea.vmem %s1, %s370
        %v373 = vld [vmem:[%s368] sm:$0xff]
        %v374 = vld [vmem:[%s368 + $0x8] sm:$0xff]
        %v375 = vld [vmem:[%s368 + $0x10] sm:$0xff]
        %v376 = vld [vmem:[%s368 + $0x18] sm:$0xff]
        %v377 = vld [vmem:[%s368 + $0x20] sm:$0xff]
        %v378 = vld [vmem:[%s368 + $0x28] sm:$0xff]
        %v379 = vld [vmem:[%s368 + $0x30] sm:$0xff]
        %v380 = vld [vmem:[%s368 + $0x38] sm:$0xff]
        %v381 = vpack.c.bf16 %v373, %v373
        %v382 = vpack.c.bf16 %v374, %v374
        %v383 = vpack.c.bf16 %v375, %v375
        %v384 = vpack.c.bf16 %v376, %v376
        %v385 = vpack.c.bf16 %v377, %v377
        %v386 = vpack.c.bf16 %v378, %v378
        %v387 = vpack.c.bf16 %v379, %v379
        %v388 = vpack.c.bf16 %v380, %v380
        %v396 = vunpack.c.l.b16 %v381
        %v397 = vunpack.c.l.b16 %v382
        %v398 = vunpack.c.l.b16 %v383
        %v399 = vunpack.c.l.b16 %v384
        %v400 = vunpack.c.l.b16 %v385
        %v401 = vunpack.c.l.b16 %v386
        %v402 = vunpack.c.l.b16 %v387
        %v403 = vpack.c.b16 %v396, %v396
        %v404 = vpack.c.b16 %v397, %v397
        %v405 = vpack.c.b16 %v398, %v398
        %v406 = vpack.c.b16 %v399, %v399
        %v407 = vpack.c.b16 %v400, %v400
        %v408 = vpack.c.b16 %v401, %v401
        %v409 = vpack.c.b16 %v402, %v402
        %v411 = vshrl.u32 %v403, 16
        %v413 = vrot.slane %v411, 7
        %v414 = vshll.u32 %v403, 16
        %v416 = vor.u32 %v413, %v414
        %v418 = vshrl.u32 %v404, 16
        %v420 = vrot.slane %v418, 7
        %v421 = vshll.u32 %v404, 16
        %v423 = vor.u32 %v420, %v421
        %v425 = vshrl.u32 %v405, 16
        %v427 = vrot.slane %v425, 7
        %v428 = vshll.u32 %v405, 16
        %v430 = vor.u32 %v427, %v428
        %v432 = vshrl.u32 %v406, 16
        %v434 = vrot.slane %v432, 7
        %v435 = vshll.u32 %v406, 16
        %v437 = vor.u32 %v434, %v435
        %v439 = vshrl.u32 %v407, 16
        %v441 = vrot.slane %v439, 7
        %v442 = vshll.u32 %v407, 16
        %v444 = vor.u32 %v441, %v442
        %v446 = vshrl.u32 %v408, 16
        %v448 = vrot.slane %v446, 7
        %v449 = vshll.u32 %v408, 16
        %v451 = vor.u32 %v448, %v449
        %v453 = vshrl.u32 %v409, 16
        %v455 = vrot.slane %v453, 7
        %v456 = vshll.u32 %v409, 16
        %v458 = vor.u32 %v455, %v456
        %459 = vrot.lane.b32.xlu0 %v416, 64
        %v460 = vpop.permute.xlu0 %459
        %461 = vrot.lane.b32.xlu0 %v423, 64
        %v462 = vpop.permute.xlu0 %461
        %463 = vrot.lane.b32.xlu0 %v430, 64
        %v464 = vpop.permute.xlu0 %463
        %465 = vrot.lane.b32.xlu0 %v437, 64
        %v466 = vpop.permute.xlu0 %465
        %467 = vrot.lane.b32.xlu0 %v444, 64
        %v468 = vpop.permute.xlu0 %467
        %469 = vrot.lane.b32.xlu0 %v451, 64
        %v470 = vpop.permute.xlu0 %469
        %471 = vrot.lane.b32.xlu0 %v458, 64
        %v472 = vpop.permute.xlu0 %471
        %s480 = scalar_lea.vmem [#allocation3], 28
        %vm481 = vcmask 781824
        %vm482 = vsmask.f32 7938
        %vm483 = vmand %vm481, %vm482
        %v484 = vld [vmem:[%s480 + $0x10] sm:$0xf]
        %v485 = vsel %vm483, %v460, %v484
        %486 = vst [vmem:[%s480 + $0x10] sm:$0xf] %v485
        %v487 = vld [vmem:[%s480 + $0x2c] sm:$0xf]
        %v488 = vsel %vm483, %v462, %v487
        %489 = vst [vmem:[%s480 + $0x2c] sm:$0xf] %v488
        %v490 = vld [vmem:[%s480 + $0x48] sm:$0xf]
        %v491 = vsel %vm483, %v464, %v490
        %492 = vst [vmem:[%s480 + $0x48] sm:$0xf] %v491
        %v493 = vld [vmem:[%s480 + $0x64] sm:$0xf]
        %v494 = vsel %vm483, %v466, %v493
        %495 = vst [vmem:[%s480 + $0x64] sm:$0xf] %v494
        %v496 = vld [vmem:[%s480 + $0x80] sm:$0xf]
        %v497 = vsel %vm483, %v468, %v496
        %498 = vst [vmem:[%s480 + $0x80] sm:$0xf] %v497
        %v499 = vld [vmem:[%s480 + $0x9c] sm:$0xf]
        %v500 = vsel %vm483, %v470, %v499
        %501 = vst [vmem:[%s480 + $0x9c] sm:$0xf] %v500
        %v502 = vld [vmem:[%s480 + $0xb8] sm:$0xf]
        %v503 = vsel %vm483, %v472, %v502
        %504 = vst [vmem:[%s480 + $0xb8] sm:$0xf] %v503
        %vm505 = vcmask 781824
        %506 = vst.msk [vmem:[#allocation3 + $0x10] sm:$0xf] %vm505, 0
        %vm507 = vcmask 778752
        %vm508 = vsmask.f32 256
        %vm509 = vmand %vm507, %vm508
        %v510 = vld [vmem:[#allocation3 + $0x10] sm:$0x1]
        %v511 = vsel %vm509, 0, %v510
        %512 = vst [vmem:[#allocation3 + $0x10] sm:$0x1] %v511
        %v513 = vld [vmem:[#allocation3 + $0x2c] sm:$0x1]
        %v514 = vsel %vm509, 0, %v513
        %515 = vst [vmem:[#allocation3 + $0x2c] sm:$0x1] %v514
        %v516 = vld [vmem:[#allocation3 + $0x48] sm:$0x1]
        %v517 = vsel %vm509, 0, %v516
        %518 = vst [vmem:[#allocation3 + $0x48] sm:$0x1] %v517
        %v519 = vld [vmem:[#allocation3 + $0x64] sm:$0x1]
        %v520 = vsel %vm509, 0, %v519
        %521 = vst [vmem:[#allocation3 + $0x64] sm:$0x1] %v520
        %v522 = vld [vmem:[#allocation3 + $0x80] sm:$0x1]
        %v523 = vsel %vm509, 0, %v522
        %524 = vst [vmem:[#allocation3 + $0x80] sm:$0x1] %v523
        %v525 = vld [vmem:[#allocation3 + $0x9c] sm:$0x1]
        %v526 = vsel %vm509, 0, %v525
        %527 = vst [vmem:[#allocation3 + $0x9c] sm:$0x1] %v526
        %v528 = vld [vmem:[#allocation3 + $0xb8] sm:$0x1]
        %v529 = vsel %vm509, 0, %v528
        %530 = vst [vmem:[#allocation3 + $0xb8] sm:$0x1] %v529
        %v531 = vld [vmem:[#allocation3 + $0xd4] sm:$0x1]
        %v532 = vsel %vm509, 0, %v531
        %533 = vst [vmem:[#allocation3 + $0xd4] sm:$0x1] %v532
        %534 = vrot.lane.b32.xlu0 %v403, 96
        %v535 = vpop.permute.xlu0 %534
        %536 = vrot.lane.b32.xlu0 %v404, 96
        %v537 = vpop.permute.xlu0 %536
        %538 = vrot.lane.b32.xlu0 %v405, 96
        %v539 = vpop.permute.xlu0 %538
        %540 = vrot.lane.b32.xlu0 %v406, 96
        %v541 = vpop.permute.xlu0 %540
        %542 = vrot.lane.b32.xlu0 %v407, 96
        %v543 = vpop.permute.xlu0 %542
        %544 = vrot.lane.b32.xlu0 %v408, 96
        %v545 = vpop.permute.xlu0 %544
        %546 = vrot.lane.b32.xlu0 %v409, 96
        %v547 = vpop.permute.xlu0 %546
        %vm555 = vcmask 1044224
        %556 = vst.msk [vmem:[%s480 + $0x10] sm:$0xf] %vm555, %v535
        %557 = vst.msk [vmem:[%s480 + $0x2c] sm:$0xf] %vm555, %v537
        %558 = vst.msk [vmem:[%s480 + $0x48] sm:$0xf] %vm555, %v539
        %559 = vst.msk [vmem:[%s480 + $0x64] sm:$0xf] %vm555, %v541
        %560 = vst.msk [vmem:[%s480 + $0x80] sm:$0xf] %vm555, %v543
        %561 = vst.msk [vmem:[%s480 + $0x9c] sm:$0xf] %vm555, %v545
        %562 = vst.msk [vmem:[%s480 + $0xb8] sm:$0xf] %vm555, %v547
        %563 = vst.msk [vmem:[#allocation3 + $0x10] sm:$0xf] %vm555, 0
        %v564 = vrot.slane %v411, 4
        %v565 = vrot.slane %v414, 5
        %v566 = vor.u32 %v564, %v565
        %v567 = vrot.slane %v566, 4
        %v568 = vrot.slane %v418, 4
        %v569 = vrot.slane %v421, 5
        %v570 = vor.u32 %v568, %v569
        %v571 = vrot.slane %v570, 4
        %v572 = vrot.slane %v425, 4
        %v573 = vrot.slane %v428, 5
        %v574 = vor.u32 %v572, %v573
        %v575 = vrot.slane %v574, 4
        %v576 = vrot.slane %v432, 4
        %v577 = vrot.slane %v435, 5
        %v578 = vor.u32 %v576, %v577
        %v579 = vrot.slane %v578, 4
        %v580 = vrot.slane %v439, 4
        %v581 = vrot.slane %v442, 5
        %v582 = vor.u32 %v580, %v581
        %v583 = vrot.slane %v582, 4
        %v584 = vrot.slane %v446, 4
        %v585 = vrot.slane %v449, 5
        %v586 = vor.u32 %v584, %v585
        %v587 = vrot.slane %v586, 4
        %v588 = vrot.slane %v453, 4
        %v589 = vrot.slane %v456, 5
        %v590 = vor.u32 %v588, %v589
        %v591 = vrot.slane %v590, 4
        %vm599 = vcmask 257024
        %vm600 = vsmask.f32 3328
        %vm601 = vmand %vm599, %vm600
        %v602 = vld [vmem:[%s480 + $0x14] sm:$0xf]
        %v603 = vsel %vm601, %v567, %v602
        %604 = vst [vmem:[%s480 + $0x14] sm:$0xf] %v603
        %v605 = vld [vmem:[%s480 + $0x30] sm:$0xf]
        %v606 = vsel %vm601, %v571, %v605
        %607 = vst [vmem:[%s480 + $0x30] sm:$0xf] %v606
        %v608 = vld [vmem:[%s480 + $0x4c] sm:$0xf]
        %v609 = vsel %vm601, %v575, %v608
        %610 = vst [vmem:[%s480 + $0x4c] sm:$0xf] %v609
        %v611 = vld [vmem:[%s480 + $0x68] sm:$0xf]
        %v612 = vsel %vm601, %v579, %v611
        %613 = vst [vmem:[%s480 + $0x68] sm:$0xf] %v612
        %v614 = vld [vmem:[%s480 + $0x84] sm:$0xf]
        %v615 = vsel %vm601, %v583, %v614
        %616 = vst [vmem:[%s480 + $0x84] sm:$0xf] %v615
        %v617 = vld [vmem:[%s480 + $0xa0] sm:$0xf]
        %v618 = vsel %vm601, %v587, %v617
        %619 = vst [vmem:[%s480 + $0xa0] sm:$0xf] %v618
        %v620 = vld [vmem:[%s480 + $0xbc] sm:$0xf]
        %v621 = vsel %vm601, %v591, %v620
        %622 = vst [vmem:[%s480 + $0xbc] sm:$0xf] %v621
        %vm623 = vcmask 257024
        %624 = vst.msk [vmem:[#allocation3 + $0x14] sm:$0xf] %vm623, 0
        %vm625 = vcmask 257027
        %vm626 = vsmask.f32 7950
        %vm627 = vmand %vm625, %vm626
        %v628 = vld [vmem:[#allocation3 + $0x14] sm:$0x8]
        %v629 = vsel %vm627, 0, %v628
        %630 = vst [vmem:[#allocation3 + $0x14] sm:$0x8] %v629
        %v631 = vld [vmem:[#allocation3 + $0x30] sm:$0x8]
        %v632 = vsel %vm627, 0, %v631
        %633 = vst [vmem:[#allocation3 + $0x30] sm:$0x8] %v632
        %v634 = vld [vmem:[#allocation3 + $0x4c] sm:$0x8]
        %v635 = vsel %vm627, 0, %v634
        %636 = vst [vmem:[#allocation3 + $0x4c] sm:$0x8] %v635
        %v637 = vld [vmem:[#allocation3 + $0x68] sm:$0x8]
        %v638 = vsel %vm627, 0, %v637
        %639 = vst [vmem:[#allocation3 + $0x68] sm:$0x8] %v638
        %v640 = vld [vmem:[#allocation3 + $0x84] sm:$0x8]
        %v641 = vsel %vm627, 0, %v640
        %642 = vst [vmem:[#allocation3 + $0x84] sm:$0x8] %v641
        %v643 = vld [vmem:[#allocation3 + $0xa0] sm:$0x8]
        %v644 = vsel %vm627, 0, %v643
        %645 = vst [vmem:[#allocation3 + $0xa0] sm:$0x8] %v644
        %v646 = vld [vmem:[#allocation3 + $0xbc] sm:$0x8]
        %v647 = vsel %vm627, 0, %v646
        %648 = vst [vmem:[#allocation3 + $0xbc] sm:$0x8] %v647
        %v649 = vld [vmem:[#allocation3 + $0xd8] sm:$0x8]
        %v650 = vsel %vm627, 0, %v649
        %651 = vst [vmem:[#allocation3 + $0xd8] sm:$0x8] %v650
        %v653 = vunpack.c.l.b16 %v388
        %v654 = vpack.c.b16 %v653, %v653
        %v656 = vshrl.u32 %v654, 16
        %v658 = vrot.slane %v656, 7
        %v659 = vshll.u32 %v654, 16
        %v661 = vor.u32 %v658, %v659
        %662 = vrot.lane.b32.xlu0 %v416, 32
        %v663 = vpop.permute.xlu0 %662
        %664 = vrot.lane.b32.xlu0 %v423, 32
        %v665 = vpop.permute.xlu0 %664
        %666 = vrot.lane.b32.xlu0 %v430, 32
        %v667 = vpop.permute.xlu0 %666
        %668 = vrot.lane.b32.xlu0 %v437, 32
        %v669 = vpop.permute.xlu0 %668
        %670 = vrot.lane.b32.xlu0 %v444, 32
        %v671 = vpop.permute.xlu0 %670
        %672 = vrot.lane.b32.xlu0 %v451, 32
        %v673 = vpop.permute.xlu0 %672
        %674 = vrot.lane.b32.xlu0 %v458, 32
        %v675 = vpop.permute.xlu0 %674
        %676 = vrot.lane.b32.xlu0 %v661, 32
        %v677 = vpop.permute.xlu0 %676
        %vm686 = vcmask 519424
        %vm687 = vmand %vm686, %vm482
        %v688 = vld [vmem:[#allocation3 + $0x14] sm:$0xf]
        %v689 = vsel %vm687, %v663, %v688
        %690 = vst [vmem:[#allocation3 + $0x14] sm:$0xf] %v689
        %v691 = vld [vmem:[#allocation3 + $0x30] sm:$0xf]
        %v692 = vsel %vm687, %v665, %v691
        %693 = vst [vmem:[#allocation3 + $0x30] sm:$0xf] %v692
        %v694 = vld [vmem:[#allocation3 + $0x4c] sm:$0xf]
        %v695 = vsel %vm687, %v667, %v694
        %696 = vst [vmem:[#allocation3 + $0x4c] sm:$0xf] %v695
        %v697 = vld [vmem:[#allocation3 + $0x68] sm:$0xf]
        %v698 = vsel %vm687, %v669, %v697
        %699 = vst [vmem:[#allocation3 + $0x68] sm:$0xf] %v698
        %v700 = vld [vmem:[#allocation3 + $0x84] sm:$0xf]
        %v701 = vsel %vm687, %v671, %v700
        %702 = vst [vmem:[#allocation3 + $0x84] sm:$0xf] %v701
        %v703 = vld [vmem:[#allocation3 + $0xa0] sm:$0xf]
        %v704 = vsel %vm687, %v673, %v703
        %705 = vst [vmem:[#allocation3 + $0xa0] sm:$0xf] %v704
        %v706 = vld [vmem:[#allocation3 + $0xbc] sm:$0xf]
        %v707 = vsel %vm687, %v675, %v706
        %708 = vst [vmem:[#allocation3 + $0xbc] sm:$0xf] %v707
        %v709 = vld [vmem:[#allocation3 + $0xd8] sm:$0xf]
        %v710 = vsel %vm687, %v677, %v709
        %711 = vst [vmem:[#allocation3 + $0xd8] sm:$0xf] %v710
        %vm712 = vcmask 516352
        %vm713 = vmand %vm712, %vm508
        %v714 = vld [vmem:[#allocation3 + $0x14] sm:$0x1]
        %v715 = vsel %vm713, 0, %v714
        %716 = vst [vmem:[#allocation3 + $0x14] sm:$0x1] %v715
        %v717 = vld [vmem:[#allocation3 + $0x30] sm:$0x1]
        %v718 = vsel %vm713, 0, %v717
        %719 = vst [vmem:[#allocation3 + $0x30] sm:$0x1] %v718
        %v720 = vld [vmem:[#allocation3 + $0x4c] sm:$0x1]
        %v721 = vsel %vm713, 0, %v720
        %722 = vst [vmem:[#allocation3 + $0x4c] sm:$0x1] %v721
        %v723 = vld [vmem:[#allocation3 + $0x68] sm:$0x1]
        %v724 = vsel %vm713, 0, %v723
        %725 = vst [vmem:[#allocation3 + $0x68] sm:$0x1] %v724
        %v726 = vld [vmem:[#allocation3 + $0x84] sm:$0x1]
        %v727 = vsel %vm713, 0, %v726
        %728 = vst [vmem:[#allocation3 + $0x84] sm:$0x1] %v727
        %v729 = vld [vmem:[#allocation3 + $0xa0] sm:$0x1]
        %v730 = vsel %vm713, 0, %v729
        %731 = vst [vmem:[#allocation3 + $0xa0] sm:$0x1] %v730
        %v732 = vld [vmem:[#allocation3 + $0xbc] sm:$0x1]
        %v733 = vsel %vm713, 0, %v732
        %734 = vst [vmem:[#allocation3 + $0xbc] sm:$0x1] %v733
        %v735 = vld [vmem:[#allocation3 + $0xd8] sm:$0x1]
        %v736 = vsel %vm713, 0, %v735
        %737 = vst [vmem:[#allocation3 + $0xd8] sm:$0x1] %v736
        %738 = vrot.lane.b32.xlu0 %v403, 64
        %v739 = vpop.permute.xlu0 %738
        %740 = vrot.lane.b32.xlu0 %v404, 64
        %v741 = vpop.permute.xlu0 %740
        %742 = vrot.lane.b32.xlu0 %v405, 64
        %v743 = vpop.permute.xlu0 %742
        %744 = vrot.lane.b32.xlu0 %v406, 64
        %v745 = vpop.permute.xlu0 %744
        %746 = vrot.lane.b32.xlu0 %v407, 64
        %v747 = vpop.permute.xlu0 %746
        %748 = vrot.lane.b32.xlu0 %v408, 64
        %v749 = vpop.permute.xlu0 %748
        %750 = vrot.lane.b32.xlu0 %v409, 64
        %v751 = vpop.permute.xlu0 %750
        %752 = vrot.lane.b32.xlu0 %v654, 64
        %v753 = vpop.permute.xlu0 %752
        %762 = vst.msk [vmem:[#allocation3 + $0x14] sm:$0xf] %vm505, %v739
        %763 = vst.msk [vmem:[#allocation3 + $0x30] sm:$0xf] %vm505, %v741
        %764 = vst.msk [vmem:[#allocation3 + $0x4c] sm:$0xf] %vm505, %v743
        %765 = vst.msk [vmem:[#allocation3 + $0x68] sm:$0xf] %vm505, %v745
        %766 = vst.msk [vmem:[#allocation3 + $0x84] sm:$0xf] %vm505, %v747
        %767 = vst.msk [vmem:[#allocation3 + $0xa0] sm:$0xf] %vm505, %v749
        %768 = vst.msk [vmem:[#allocation3 + $0xbc] sm:$0xf] %vm505, %v751
        %769 = vst.msk [vmem:[#allocation3 + $0xd8] sm:$0xf] %vm505, %v753
        %v770 = vrot.slane %v656, 4
        %v771 = vrot.slane %v659, 5
        %v772 = vor.u32 %v770, %v771
        %v773 = vrot.slane %v772, 4
        %774 = vrot.lane.b32.xlu0 %v567, 96
        %v775 = vpop.permute.xlu0 %774
        %776 = vrot.lane.b32.xlu0 %v571, 96
        %v777 = vpop.permute.xlu0 %776
        %778 = vrot.lane.b32.xlu0 %v575, 96
        %v779 = vpop.permute.xlu0 %778
        %780 = vrot.lane.b32.xlu0 %v579, 96
        %v781 = vpop.permute.xlu0 %780
        %782 = vrot.lane.b32.xlu0 %v583, 96
        %v783 = vpop.permute.xlu0 %782
        %784 = vrot.lane.b32.xlu0 %v587, 96
        %v785 = vpop.permute.xlu0 %784
        %786 = vrot.lane.b32.xlu0 %v591, 96
        %v787 = vpop.permute.xlu0 %786
        %788 = vrot.lane.b32.xlu0 %v773, 96
        %v789 = vpop.permute.xlu0 %788
        %vm798 = vcmask 1044224
        %vm799 = vmand %vm798, %vm600
        %v800 = vld [vmem:[#allocation3 + $0x14] sm:$0xf]
        %v801 = vsel %vm799, %v775, %v800
        %802 = vst [vmem:[#allocation3 + $0x14] sm:$0xf] %v801
        %v803 = vld [vmem:[#allocation3 + $0x30] sm:$0xf]
        %v804 = vsel %vm799, %v777, %v803
        %805 = vst [vmem:[#allocation3 + $0x30] sm:$0xf] %v804
        %v806 = vld [vmem:[#allocation3 + $0x4c] sm:$0xf]
        %v807 = vsel %vm799, %v779, %v806
        %808 = vst [vmem:[#allocation3 + $0x4c] sm:$0xf] %v807
        %v809 = vld [vmem:[#allocation3 + $0x68] sm:$0xf]
        %v810 = vsel %vm799, %v781, %v809
        %811 = vst [vmem:[#allocation3 + $0x68] sm:$0xf] %v810
        %v812 = vld [vmem:[#allocation3 + $0x84] sm:$0xf]
        %v813 = vsel %vm799, %v783, %v812
        %814 = vst [vmem:[#allocation3 + $0x84] sm:$0xf] %v813
        %v815 = vld [vmem:[#allocation3 + $0xa0] sm:$0xf]
        %v816 = vsel %vm799, %v785, %v815
        %817 = vst [vmem:[#allocation3 + $0xa0] sm:$0xf] %v816
        %v818 = vld [vmem:[#allocation3 + $0xbc] sm:$0xf]
        %v819 = vsel %vm799, %v787, %v818
        %820 = vst [vmem:[#allocation3 + $0xbc] sm:$0xf] %v819
        %v821 = vld [vmem:[#allocation3 + $0xd8] sm:$0xf]
        %v822 = vsel %vm799, %v789, %v821
        %823 = vst [vmem:[#allocation3 + $0xd8] sm:$0xf] %v822
        %vm824 = vcmask 1044227
        %vm825 = vmand %vm824, %vm626
        %v826 = vld [vmem:[#allocation3 + $0x14] sm:$0x8]
        %v827 = vsel %vm825, 0, %v826
        %828 = vst [vmem:[#allocation3 + $0x14] sm:$0x8] %v827
        %v829 = vld [vmem:[#allocation3 + $0x30] sm:$0x8]
        %v830 = vsel %vm825, 0, %v829
        %831 = vst [vmem:[#allocation3 + $0x30] sm:$0x8] %v830
        %v832 = vld [vmem:[#allocation3 + $0x4c] sm:$0x8]
        %v833 = vsel %vm825, 0, %v832
        %834 = vst [vmem:[#allocation3 + $0x4c] sm:$0x8] %v833
        %v835 = vld [vmem:[#allocation3 + $0x68] sm:$0x8]
        %v836 = vsel %vm825, 0, %v835
        %837 = vst [vmem:[#allocation3 + $0x68] sm:$0x8] %v836
        %v838 = vld [vmem:[#allocation3 + $0x84] sm:$0x8]
        %v839 = vsel %vm825, 0, %v838
        %840 = vst [vmem:[#allocation3 + $0x84] sm:$0x8] %v839
        %v841 = vld [vmem:[#allocation3 + $0xa0] sm:$0x8]
        %v842 = vsel %vm825, 0, %v841
        %843 = vst [vmem:[#allocation3 + $0xa0] sm:$0x8] %v842
        %v844 = vld [vmem:[#allocation3 + $0xbc] sm:$0x8]
        %v845 = vsel %vm825, 0, %v844
        %846 = vst [vmem:[#allocation3 + $0xbc] sm:$0x8] %v845
        %v847 = vld [vmem:[#allocation3 + $0xd8] sm:$0x8]
        %v848 = vsel %vm825, 0, %v847
        %849 = vst [vmem:[#allocation3 + $0xd8] sm:$0x8] %v848
        %vm857 = vmand %vm599, %vm482
        %v858 = vld [vmem:[#allocation3 + $0x18] sm:$0xf]
        %v859 = vsel %vm857, %v423, %v858
        %860 = vst [vmem:[#allocation3 + $0x18] sm:$0xf] %v859
        %v861 = vld [vmem:[#allocation3 + $0x34] sm:$0xf]
        %v862 = vsel %vm857, %v430, %v861
        %863 = vst [vmem:[#allocation3 + $0x34] sm:$0xf] %v862
        %v864 = vld [vmem:[#allocation3 + $0x50] sm:$0xf]
        %v865 = vsel %vm857, %v437, %v864
        %866 = vst [vmem:[#allocation3 + $0x50] sm:$0xf] %v865
        %v867 = vld [vmem:[#allocation3 + $0x6c] sm:$0xf]
        %v868 = vsel %vm857, %v444, %v867
        %869 = vst [vmem:[#allocation3 + $0x6c] sm:$0xf] %v868
        %v870 = vld [vmem:[#allocation3 + $0x88] sm:$0xf]
        %v871 = vsel %vm857, %v451, %v870
        %872 = vst [vmem:[#allocation3 + $0x88] sm:$0xf] %v871
        %v873 = vld [vmem:[#allocation3 + $0xa4] sm:$0xf]
        %v874 = vsel %vm857, %v458, %v873
        %875 = vst [vmem:[#allocation3 + $0xa4] sm:$0xf] %v874
        %v876 = vld [vmem:[#allocation3 + $0xc0] sm:$0xf]
        %v877 = vsel %vm857, %v661, %v876
        %878 = vst [vmem:[#allocation3 + $0xc0] sm:$0xf] %v877
        %s879 = scalar_lea.vmem [#allocation3], 196
        %880 = vst.msk [vmem:[%s879 + $0x18] sm:$0xf] %vm623, 0
        %vm881 = vcmask 253952
        %vm882 = vmand %vm881, %vm508
        %v883 = vld [vmem:[#allocation3 + $0x18] sm:$0x1]
        %v884 = vsel %vm882, 0, %v883
        %885 = vst [vmem:[#allocation3 + $0x18] sm:$0x1] %v884
        %v886 = vld [vmem:[#allocation3 + $0x34] sm:$0x1]
        %v887 = vsel %vm882, 0, %v886
        %888 = vst [vmem:[#allocation3 + $0x34] sm:$0x1] %v887
        %v889 = vld [vmem:[#allocation3 + $0x50] sm:$0x1]
        %v890 = vsel %vm882, 0, %v889
        %891 = vst [vmem:[#allocation3 + $0x50] sm:$0x1] %v890
        %v892 = vld [vmem:[#allocation3 + $0x6c] sm:$0x1]
        %v893 = vsel %vm882, 0, %v892
        %894 = vst [vmem:[#allocation3 + $0x6c] sm:$0x1] %v893
        %v895 = vld [vmem:[#allocation3 + $0x88] sm:$0x1]
        %v896 = vsel %vm882, 0, %v895
        %897 = vst [vmem:[#allocation3 + $0x88] sm:$0x1] %v896
        %v898 = vld [vmem:[#allocation3 + $0xa4] sm:$0x1]
        %v899 = vsel %vm882, 0, %v898
        %900 = vst [vmem:[#allocation3 + $0xa4] sm:$0x1] %v899
        %v901 = vld [vmem:[#allocation3 + $0xc0] sm:$0x1]
        %v902 = vsel %vm882, 0, %v901
        %903 = vst [vmem:[#allocation3 + $0xc0] sm:$0x1] %v902
        %v904 = vld [vmem:[#allocation3 + $0xdc] sm:$0x1]
        %v905 = vsel %vm882, 0, %v904
        %906 = vst [vmem:[#allocation3 + $0xdc] sm:$0x1] %v905
        %907 = vrot.lane.b32.xlu0 %v404, 32
        %v908 = vpop.permute.xlu0 %907
        %909 = vrot.lane.b32.xlu0 %v405, 32
        %v910 = vpop.permute.xlu0 %909
        %911 = vrot.lane.b32.xlu0 %v406, 32
        %v912 = vpop.permute.xlu0 %911
        %913 = vrot.lane.b32.xlu0 %v407, 32
        %v914 = vpop.permute.xlu0 %913
        %915 = vrot.lane.b32.xlu0 %v408, 32
        %v916 = vpop.permute.xlu0 %915
        %917 = vrot.lane.b32.xlu0 %v409, 32
        %v918 = vpop.permute.xlu0 %917
        %919 = vrot.lane.b32.xlu0 %v654, 32
        %v920 = vpop.permute.xlu0 %919
        %vm928 = vcmask 519424
        %929 = vst.msk [vmem:[#allocation3 + $0x18] sm:$0xf] %vm928, %v908
        %930 = vst.msk [vmem:[#allocation3 + $0x34] sm:$0xf] %vm928, %v910
        %931 = vst.msk [vmem:[#allocation3 + $0x50] sm:$0xf] %vm928, %v912
        %932 = vst.msk [vmem:[#allocation3 + $0x6c] sm:$0xf] %vm928, %v914
        %933 = vst.msk [vmem:[#allocation3 + $0x88] sm:$0xf] %vm928, %v916
        %934 = vst.msk [vmem:[#allocation3 + $0xa4] sm:$0xf] %vm928, %v918
        %935 = vst.msk [vmem:[#allocation3 + $0xc0] sm:$0xf] %vm928, %v920
        %936 = vst.msk [vmem:[%s879 + $0x18] sm:$0xf] %vm928, 0
        %937 = vrot.lane.b32.xlu0 %v571, 64
        %v938 = vpop.permute.xlu0 %937
        %939 = vrot.lane.b32.xlu0 %v575, 64
        %v940 = vpop.permute.xlu0 %939
        %941 = vrot.lane.b32.xlu0 %v579, 64
        %v942 = vpop.permute.xlu0 %941
        %943 = vrot.lane.b32.xlu0 %v583, 64
        %v944 = vpop.permute.xlu0 %943
        %945 = vrot.lane.b32.xlu0 %v587, 64
        %v946 = vpop.permute.xlu0 %945
        %947 = vrot.lane.b32.xlu0 %v591, 64
        %v948 = vpop.permute.xlu0 %947
        %949 = vrot.lane.b32.xlu0 %v773, 64
        %v950 = vpop.permute.xlu0 %949
        %vm958 = vmand %vm481, %vm600
        %v959 = vld [vmem:[#allocation3 + $0x18] sm:$0xf]
        %v960 = vsel %vm958, %v938, %v959
        %961 = vst [vmem:[#allocation3 + $0x18] sm:$0xf] %v960
        %v962 = vld [vmem:[#allocation3 + $0x34] sm:$0xf]
        %v963 = vsel %vm958, %v940, %v962
        %964 = vst [vmem:[#allocation3 + $0x34] sm:$0xf] %v963
        %v965 = vld [vmem:[#allocation3 + $0x50] sm:$0xf]
        %v966 = vsel %vm958, %v942, %v965
        %967 = vst [vmem:[#allocation3 + $0x50] sm:$0xf] %v966
        %v968 = vld [vmem:[#allocation3 + $0x6c] sm:$0xf]
        %v969 = vsel %vm958, %v944, %v968
        %970 = vst [vmem:[#allocation3 + $0x6c] sm:$0xf] %v969
        %v971 = vld [vmem:[#allocation3 + $0x88] sm:$0xf]
        %v972 = vsel %vm958, %v946, %v971
        %973 = vst [vmem:[#allocation3 + $0x88] sm:$0xf] %v972
        %v974 = vld [vmem:[#allocation3 + $0xa4] sm:$0xf]
        %v975 = vsel %vm958, %v948, %v974
        %976 = vst [vmem:[#allocation3 + $0xa4] sm:$0xf] %v975
        %v977 = vld [vmem:[#allocation3 + $0xc0] sm:$0xf]
        %v978 = vsel %vm958, %v950, %v977
        %979 = vst [vmem:[#allocation3 + $0xc0] sm:$0xf] %v978
        %980 = vst.msk [vmem:[%s879 + $0x18] sm:$0xf] %vm505, 0
        %vm981 = vcmask 781827
        %vm982 = vmand %vm981, %vm626
        %v983 = vld [vmem:[#allocation3 + $0x18] sm:$0x8]
        %v984 = vsel %vm982, 0, %v983
        %985 = vst [vmem:[#allocation3 + $0x18] sm:$0x8] %v984
        %v986 = vld [vmem:[#allocation3 + $0x34] sm:$0x8]
        %v987 = vsel %vm982, 0, %v986
        %988 = vst [vmem:[#allocation3 + $0x34] sm:$0x8] %v987
        %v989 = vld [vmem:[#allocation3 + $0x50] sm:$0x8]
        %v990 = vsel %vm982, 0, %v989
        %991 = vst [vmem:[#allocation3 + $0x50] sm:$0x8] %v990
        %v992 = vld [vmem:[#allocation3 + $0x6c] sm:$0x8]
        %v993 = vsel %vm982, 0, %v992
        %994 = vst [vmem:[#allocation3 + $0x6c] sm:$0x8] %v993
        %v995 = vld [vmem:[#allocation3 + $0x88] sm:$0x8]
        %v996 = vsel %vm982, 0, %v995
        %997 = vst [vmem:[#allocation3 + $0x88] sm:$0x8] %v996
        %v998 = vld [vmem:[#allocation3 + $0xa4] sm:$0x8]
        %v999 = vsel %vm982, 0, %v998
        %1000 = vst [vmem:[#allocation3 + $0xa4] sm:$0x8] %v999
        %v1001 = vld [vmem:[#allocation3 + $0xc0] sm:$0x8]
        %v1002 = vsel %vm982, 0, %v1001
        %1003 = vst [vmem:[#allocation3 + $0xc0] sm:$0x8] %v1002
        %v1004 = vld [vmem:[#allocation3 + $0xdc] sm:$0x8]
        %v1005 = vsel %vm982, 0, %v1004
        %1006 = vst [vmem:[#allocation3 + $0xdc] sm:$0x8] %v1005
        %v1007 = vld [vmem:[%s2] sm:$0x1]
        %v1008 = vld [vmem:[%s3] sm:$0x1]
        %vm1009 = vcmask 261120
        %v1010 = vsel %vm1009, %v373, 0.0
        %v1011 = vsel %vm1009, %v374, 0.0
        %v1012 = vadd.f32 %v1010, %v1011
        %v1013 = vsel %vm1009, %v375, 0.0
        %v1014 = vadd.f32 %v1012, %v1013
        %v1015 = vsel %vm1009, %v376, 0.0
        %v1016 = vadd.f32 %v1014, %v1015
        %v1017 = vsel %vm1009, %v377, 0.0
        %v1018 = vadd.f32 %v1016, %v1017
        %v1019 = vsel %vm1009, %v378, 0.0
        %v1020 = vadd.f32 %v1018, %v1019
        %v1021 = vsel %vm1009, %v379, 0.0
        %v1022 = vadd.f32 %v1020, %v1021
        %v1023 = vsel %vm1009, %v380, 0.0
        %v1024 = vadd.f32 %v1022, %v1023
        %v1025 = vrot.slane %v1024, 4
        %v1026 = vadd.f32 %v1024, %v1025
        %v1027 = vrot.slane %v1026, 2
        %v1028 = vadd.f32 %v1026, %v1027
        %v1029 = vrot.slane %v1028, 1
        %v1030 = vadd.f32 %v1028, %v1029
        %v1031 = vmul.f32 %v1030, 0.015625
        %v1032 = vsub.f32 %v373, %v1031
        %v1033 = vsub.f32 %v374, %v1031
        %v1034 = vsub.f32 %v375, %v1031
        %v1035 = vsub.f32 %v376, %v1031
        %v1036 = vsub.f32 %v377, %v1031
        %v1037 = vsub.f32 %v378, %v1031
        %v1038 = vsub.f32 %v379, %v1031
        %v1039 = vsub.f32 %v380, %v1031
        %v1040 = vmul.f32 %v1032, %v1032
        %v1041 = vmul.f32 %v1033, %v1033
        %v1042 = vmul.f32 %v1034, %v1034
        %v1043 = vmul.f32 %v1035, %v1035
        %v1044 = vmul.f32 %v1036, %v1036
        %v1045 = vmul.f32 %v1037, %v1037
        %v1046 = vmul.f32 %v1038, %v1038
        %v1047 = vmul.f32 %v1039, %v1039
        %v1048 = vsel %vm1009, %v1040, 0.0
        %v1049 = vsel %vm1009, %v1041, 0.0
        %v1050 = vadd.f32 %v1048, %v1049
        %v1051 = vsel %vm1009, %v1042, 0.0
        %v1052 = vadd.f32 %v1050, %v1051
        %v1053 = vsel %vm1009, %v1043, 0.0
        %v1054 = vadd.f32 %v1052, %v1053
        %v1055 = vsel %vm1009, %v1044, 0.0
        %v1056 = vadd.f32 %v1054, %v1055
        %v1057 = vsel %vm1009, %v1045, 0.0
        %v1058 = vadd.f32 %v1056, %v1057
        %v1059 = vsel %vm1009, %v1046, 0.0
        %v1060 = vadd.f32 %v1058, %v1059
        %v1061 = vsel %vm1009, %v1047, 0.0
        %v1062 = vadd.f32 %v1060, %v1061
        %v1063 = vrot.slane %v1062, 4
        %v1064 = vadd.f32 %v1062, %v1063
        %v1065 = vrot.slane %v1064, 2
        %v1066 = vadd.f32 %v1064, %v1065
        %v1067 = vrot.slane %v1066, 1
        %v1068 = vadd.f32 %v1066, %v1067
        %v1069 = vmul.f32 %v1068, 0.015625
        %v1070 = vadd.f32 %v1069, 1e-05
        %v1071 = vrsqrt.pop %v1070
        %v1072 = vmul.f32 %v1032, %v1071
        %v1073 = vmul.f32 %v1033, %v1071
        %v1074 = vmul.f32 %v1034, %v1071
        %v1075 = vmul.f32 %v1035, %v1071
        %v1076 = vmul.f32 %v1036, %v1071
        %v1077 = vmul.f32 %v1037, %v1071
        %v1078 = vmul.f32 %v1038, %v1071
        %v1079 = vmul.f32 %v1039, %v1071
        %v1081 = vlaneseq
        %v1082 = vshrl.u32 %v1081, 7
        %v1083 = vsub.s32 0, %v1082
        %v1084 = vrot.slane %v1007, %v1083
        %v1086 = vmul.f32 %v1072, %v1084
        %v1087 = vmul.f32 %v1073, %v1084
        %v1088 = vmul.f32 %v1074, %v1084
        %v1089 = vmul.f32 %v1075, %v1084
        %v1090 = vmul.f32 %v1076, %v1084
        %v1091 = vmul.f32 %v1077, %v1084
        %v1092 = vmul.f32 %v1078, %v1084
        %v1093 = vmul.f32 %v1079, %v1084
        %v1095 = vlaneseq
        %v1096 = vshrl.u32 %v1095, 7
        %v1097 = vsub.s32 0, %v1096
        %v1098 = vrot.slane %v1008, %v1097
        %v1100 = vadd.f32 %v1086, %v1098
        %v1101 = vadd.f32 %v1087, %v1098
        %v1102 = vadd.f32 %v1088, %v1098
        %v1103 = vadd.f32 %v1089, %v1098
        %v1104 = vadd.f32 %v1090, %v1098
        %v1105 = vadd.f32 %v1091, %v1098
        %v1106 = vadd.f32 %v1092, %v1098
        %v1107 = vadd.f32 %v1093, %v1098
        %v1108 = vxor.u32 %v1100, 2147483648
        %v1109 = vxor.u32 %v1101, 2147483648
        %v1110 = vxor.u32 %v1102, 2147483648
        %v1111 = vxor.u32 %v1103, 2147483648
        %v1112 = vxor.u32 %v1104, 2147483648
        %v1113 = vxor.u32 %v1105, 2147483648
        %v1114 = vxor.u32 %v1106, 2147483648
        %v1115 = vxor.u32 %v1107, 2147483648
        %v1116 = vmul.f32 %v1108, 1.442695
        %v1117 = vpow.pop %v1116
        %v1118 = vmul.f32 %v1109, 1.442695
        %v1119 = vpow.pop %v1118
        %v1120 = vmul.f32 %v1110, 1.442695
        %v1121 = vpow.pop %v1120
        %v1122 = vmul.f32 %v1111, 1.442695
        %v1123 = vpow.pop %v1122
        %v1124 = vmul.f32 %v1112, 1.442695
        %v1125 = vpow.pop %v1124
        %v1126 = vmul.f32 %v1113, 1.442695
        %v1127 = vpow.pop %v1126
        %v1128 = vmul.f32 %v1114, 1.442695
        %v1129 = vpow.pop %v1128
        %v1130 = vmul.f32 %v1115, 1.442695
        %v1131 = vpow.pop %v1130
        %v1132 = vadd.f32 %v1117, 1.0
        %v1133 = vadd.f32 %v1119, 1.0
        %v1134 = vadd.f32 %v1121, 1.0
        %v1135 = vadd.f32 %v1123, 1.0
        %v1136 = vadd.f32 %v1125, 1.0
        %v1137 = vadd.f32 %v1127, 1.0
        %v1138 = vadd.f32 %v1129, 1.0
        %v1139 = vadd.f32 %v1131, 1.0
        %v1140 = vrcp.pop %v1132
        %v1141 = vmul.f32 1.0, %v1140
        %v1142 = vrcp.pop %v1133
        %v1143 = vmul.f32 1.0, %v1142
        %v1144 = vrcp.pop %v1134
        %v1145 = vmul.f32 1.0, %v1144
        %v1146 = vrcp.pop %v1135
        %v1147 = vmul.f32 1.0, %v1146
        %v1148 = vrcp.pop %v1136
        %v1149 = vmul.f32 1.0, %v1148
        %v1150 = vrcp.pop %v1137
        %v1151 = vmul.f32 1.0, %v1150
        %v1152 = vrcp.pop %v1138
        %v1153 = vmul.f32 1.0, %v1152
        %v1154 = vrcp.pop %v1139
        %v1155 = vmul.f32 1.0, %v1154
        %v1156 = vmul.f32 %v1100, %v1141
        %v1157 = vmul.f32 %v1101, %v1143
        %v1158 = vmul.f32 %v1102, %v1145
        %v1159 = vmul.f32 %v1103, %v1147
        %v1160 = vmul.f32 %v1104, %v1149
        %v1161 = vmul.f32 %v1105, %v1151
        %v1162 = vmul.f32 %v1106, %v1153
        %v1163 = vmul.f32 %v1107, %v1155
        %v1164 = vpack.c.bf16 %v1157, %v1156
        %v1165 = vpack.c.bf16 %v1159, %v1158
        %v1166 = vpack.c.bf16 %v1161, %v1160
        %v1167 = vpack.c.bf16 %v1163, %v1162
        %v1172 = vunpack.c.l.b16 %v1164
        %v1173 = vunpack.c.h.b16 %v1164
        %v1174 = vunpack.c.l.b16 %v1165
        %v1175 = vunpack.c.h.b16 %v1165
        %v1176 = vunpack.c.l.b16 %v1166
        %v1177 = vunpack.c.h.b16 %v1166
        %v1178 = vunpack.c.l.b16 %v1167
        %v1179 = vunpack.c.h.b16 %v1167
        %v1180 = vpack.c.b16 %v1172, %v1172
        %v1181 = vpack.c.b16 %v1173, %v1173
        %v1182 = vpack.c.b16 %v1174, %v1174
        %v1183 = vpack.c.b16 %v1175, %v1175
        %v1184 = vpack.c.b16 %v1176, %v1176
        %v1185 = vpack.c.b16 %v1177, %v1177
        %v1186 = vpack.c.b16 %v1178, %v1178
        %v1187 = vpack.c.b16 %v1179, %v1179
        %v1197 = vshrl.u32 %v1180, 16
        %v1199 = vrot.slane %v1197, 7
        %v1200 = vshll.u32 %v1180, 16
        %v1202 = vor.u32 %v1199, %v1200
        %v1204 = vshrl.u32 %v1181, 16
        %v1206 = vrot.slane %v1204, 7
        %v1207 = vshll.u32 %v1181, 16
        %v1209 = vor.u32 %v1206, %v1207
        %v1211 = vshrl.u32 %v1182, 16
        %v1213 = vrot.slane %v1211, 7
        %v1214 = vshll.u32 %v1182, 16
        %v1216 = vor.u32 %v1213, %v1214
        %v1218 = vshrl.u32 %v1183, 16
        %v1220 = vrot.slane %v1218, 7
        %v1221 = vshll.u32 %v1183, 16
        %v1223 = vor.u32 %v1220, %v1221
        %v1225 = vshrl.u32 %v1184, 16
        %v1227 = vrot.slane %v1225, 7
        %v1228 = vshll.u32 %v1184, 16
        %v1230 = vor.u32 %v1227, %v1228
        %v1232 = vshrl.u32 %v1185, 16
        %v1234 = vrot.slane %v1232, 7
        %v1235 = vshll.u32 %v1185, 16
        %v1237 = vor.u32 %v1234, %v1235
        %v1239 = vshrl.u32 %v1186, 16
        %v1241 = vrot.slane %v1239, 7
        %v1242 = vshll.u32 %v1186, 16
        %v1244 = vor.u32 %v1241, %v1242
        %s1252 = scalar_lea.vmem [#allocation2], 12
        %v1253 = vld [vmem:[%s1252] sm:$0xf]
        %v1254 = vsel %vm857, %v1202, %v1253
        %1255 = vst [vmem:[%s1252] sm:$0xf] %v1254
        %v1256 = vld [vmem:[%s1252 + $0xc] sm:$0xf]
        %v1257 = vsel %vm857, %v1209, %v1256
        %1258 = vst [vmem:[%s1252 + $0xc] sm:$0xf] %v1257
        %v1259 = vld [vmem:[%s1252 + $0x18] sm:$0xf]
        %v1260 = vsel %vm857, %v1216, %v1259
        %1261 = vst [vmem:[%s1252 + $0x18] sm:$0xf] %v1260
        %v1262 = vld [vmem:[%s1252 + $0x24] sm:$0xf]
        %v1263 = vsel %vm857, %v1223, %v1262
        %1264 = vst [vmem:[%s1252 + $0x24] sm:$0xf] %v1263
        %v1265 = vld [vmem:[%s1252 + $0x30] sm:$0xf]
        %v1266 = vsel %vm857, %v1230, %v1265
        %1267 = vst [vmem:[%s1252 + $0x30] sm:$0xf] %v1266
        %v1268 = vld [vmem:[%s1252 + $0x3c] sm:$0xf]
        %v1269 = vsel %vm857, %v1237, %v1268
        %1270 = vst [vmem:[%s1252 + $0x3c] sm:$0xf] %v1269
        %v1271 = vld [vmem:[%s1252 + $0x48] sm:$0xf]
        %v1272 = vsel %vm857, %v1244, %v1271
        %1273 = vst [vmem:[%s1252 + $0x48] sm:$0xf] %v1272
        %1274 = vst.msk [vmem:[#allocation2] sm:$0xf] %vm623, 0
        %v1275 = vld [vmem:[#allocation2] sm:$0x1]
        %v1276 = vsel %vm882, 0, %v1275
        %1277 = vst [vmem:[#allocation2] sm:$0x1] %v1276
        %v1278 = vld [vmem:[#allocation2 + $0xc] sm:$0x1]
        %v1279 = vsel %vm882, 0, %v1278
        %1280 = vst [vmem:[#allocation2 + $0xc] sm:$0x1] %v1279
        %v1281 = vld [vmem:[#allocation2 + $0x18] sm:$0x1]
        %v1282 = vsel %vm882, 0, %v1281
        %1283 = vst [vmem:[#allocation2 + $0x18] sm:$0x1] %v1282
        %v1284 = vld [vmem:[#allocation2 + $0x24] sm:$0x1]
        %v1285 = vsel %vm882, 0, %v1284
        %1286 = vst [vmem:[#allocation2 + $0x24] sm:$0x1] %v1285
        %v1287 = vld [vmem:[#allocation2 + $0x30] sm:$0x1]
        %v1288 = vsel %vm882, 0, %v1287
        %1289 = vst [vmem:[#allocation2 + $0x30] sm:$0x1] %v1288
        %v1290 = vld [vmem:[#allocation2 + $0x3c] sm:$0x1]
        %v1291 = vsel %vm882, 0, %v1290
        %1292 = vst [vmem:[#allocation2 + $0x3c] sm:$0x1] %v1291
        %v1293 = vld [vmem:[#allocation2 + $0x48] sm:$0x1]
        %v1294 = vsel %vm882, 0, %v1293
        %1295 = vst [vmem:[#allocation2 + $0x48] sm:$0x1] %v1294
        %v1296 = vld [vmem:[#allocation2 + $0x54] sm:$0x1]
        %v1297 = vsel %vm882, 0, %v1296
        %1298 = vst [vmem:[#allocation2 + $0x54] sm:$0x1] %v1297
        %1299 = vrot.lane.b32.xlu0 %v1180, 32
        %v1300 = vpop.permute.xlu0 %1299
        %1301 = vrot.lane.b32.xlu0 %v1181, 32
        %v1302 = vpop.permute.xlu0 %1301
        %1303 = vrot.lane.b32.xlu0 %v1182, 32
        %v1304 = vpop.permute.xlu0 %1303
        %1305 = vrot.lane.b32.xlu0 %v1183, 32
        %v1306 = vpop.permute.xlu0 %1305
        %1307 = vrot.lane.b32.xlu0 %v1184, 32
        %v1308 = vpop.permute.xlu0 %1307
        %1309 = vrot.lane.b32.xlu0 %v1185, 32
        %v1310 = vpop.permute.xlu0 %1309
        %1311 = vrot.lane.b32.xlu0 %v1186, 32
        %v1312 = vpop.permute.xlu0 %1311
        %1320 = vst.msk [vmem:[%s1252] sm:$0xf] %vm928, %v1300
        %1321 = vst.msk [vmem:[%s1252 + $0xc] sm:$0xf] %vm928, %v1302
        %1322 = vst.msk [vmem:[%s1252 + $0x18] sm:$0xf] %vm928, %v1304
        %1323 = vst.msk [vmem:[%s1252 + $0x24] sm:$0xf] %vm928, %v1306
        %1324 = vst.msk [vmem:[%s1252 + $0x30] sm:$0xf] %vm928, %v1308
        %1325 = vst.msk [vmem:[%s1252 + $0x3c] sm:$0xf] %vm928, %v1310
        %1326 = vst.msk [vmem:[%s1252 + $0x48] sm:$0xf] %vm928, %v1312
        %1327 = vst.msk [vmem:[#allocation2] sm:$0xf] %vm928, 0
        %v1328 = vrot.slane %v1197, 4
        %v1329 = vrot.slane %v1200, 5
        %v1330 = vor.u32 %v1328, %v1329
        %v1331 = vrot.slane %v1330, 4
        %v1332 = vrot.slane %v1204, 4
        %v1333 = vrot.slane %v1207, 5
        %v1334 = vor.u32 %v1332, %v1333
        %v1335 = vrot.slane %v1334, 4
        %v1336 = vrot.slane %v1211, 4
        %v1337 = vrot.slane %v1214, 5
        %v1338 = vor.u32 %v1336, %v1337
        %v1339 = vrot.slane %v1338, 4
        %v1340 = vrot.slane %v1218, 4
        %v1341 = vrot.slane %v1221, 5
        %v1342 = vor.u32 %v1340, %v1341
        %v1343 = vrot.slane %v1342, 4
        %v1344 = vrot.slane %v1225, 4
        %v1345 = vrot.slane %v1228, 5
        %v1346 = vor.u32 %v1344, %v1345
        %v1347 = vrot.slane %v1346, 4
        %v1348 = vrot.slane %v1232, 4
        %v1349 = vrot.slane %v1235, 5
        %v1350 = vor.u32 %v1348, %v1349
        %v1351 = vrot.slane %v1350, 4
        %v1352 = vrot.slane %v1239, 4
        %v1353 = vrot.slane %v1242, 5
        %v1354 = vor.u32 %v1352, %v1353
        %v1355 = vrot.slane %v1354, 4
        %1356 = vrot.lane.b32.xlu0 %v1331, 64
        %v1357 = vpop.permute.xlu0 %1356
        %1358 = vrot.lane.b32.xlu0 %v1335, 64
        %v1359 = vpop.permute.xlu0 %1358
        %1360 = vrot.lane.b32.xlu0 %v1339, 64
        %v1361 = vpop.permute.xlu0 %1360
        %1362 = vrot.lane.b32.xlu0 %v1343, 64
        %v1363 = vpop.permute.xlu0 %1362
        %1364 = vrot.lane.b32.xlu0 %v1347, 64
        %v1365 = vpop.permute.xlu0 %1364
        %1366 = vrot.lane.b32.xlu0 %v1351, 64
        %v1367 = vpop.permute.xlu0 %1366
        %1368 = vrot.lane.b32.xlu0 %v1355, 64
        %v1369 = vpop.permute.xlu0 %1368
        %v1377 = vld [vmem:[%s1252] sm:$0xf]
        %v1378 = vsel %vm958, %v1357, %v1377
        %1379 = vst [vmem:[%s1252] sm:$0xf] %v1378
        %v1380 = vld [vmem:[%s1252 + $0xc] sm:$0xf]
        %v1381 = vsel %vm958, %v1359, %v1380
        %1382 = vst [vmem:[%s1252 + $0xc] sm:$0xf] %v1381
        %v1383 = vld [vmem:[%s1252 + $0x18] sm:$0xf]
        %v1384 = vsel %vm958, %v1361, %v1383
        %1385 = vst [vmem:[%s1252 + $0x18] sm:$0xf] %v1384
        %v1386 = vld [vmem:[%s1252 + $0x24] sm:$0xf]
        %v1387 = vsel %vm958, %v1363, %v1386
        %1388 = vst [vmem:[%s1252 + $0x24] sm:$0xf] %v1387
        %v1389 = vld [vmem:[%s1252 + $0x30] sm:$0xf]
        %v1390 = vsel %vm958, %v1365, %v1389
        %1391 = vst [vmem:[%s1252 + $0x30] sm:$0xf] %v1390
        %v1392 = vld [vmem:[%s1252 + $0x3c] sm:$0xf]
        %v1393 = vsel %vm958, %v1367, %v1392
        %1394 = vst [vmem:[%s1252 + $0x3c] sm:$0xf] %v1393
        %v1395 = vld [vmem:[%s1252 + $0x48] sm:$0xf]
        %v1396 = vsel %vm958, %v1369, %v1395
        %1397 = vst [vmem:[%s1252 + $0x48] sm:$0xf] %v1396
        %1398 = vst.msk [vmem:[#allocation2] sm:$0xf] %vm505, 0
        %v1399 = vld [vmem:[#allocation2] sm:$0x8]
        %v1400 = vsel %vm982, 0, %v1399
        %1401 = vst [vmem:[#allocation2] sm:$0x8] %v1400
        %v1402 = vld [vmem:[#allocation2 + $0xc] sm:$0x8]
        %v1403 = vsel %vm982, 0, %v1402
        %1404 = vst [vmem:[#allocation2 + $0xc] sm:$0x8] %v1403
        %v1405 = vld [vmem:[#allocation2 + $0x18] sm:$0x8]
        %v1406 = vsel %vm982, 0, %v1405
        %1407 = vst [vmem:[#allocation2 + $0x18] sm:$0x8] %v1406
        %v1408 = vld [vmem:[#allocation2 + $0x24] sm:$0x8]
        %v1409 = vsel %vm982, 0, %v1408
        %1410 = vst [vmem:[#allocation2 + $0x24] sm:$0x8] %v1409
        %v1411 = vld [vmem:[#allocation2 + $0x30] sm:$0x8]
        %v1412 = vsel %vm982, 0, %v1411
        %1413 = vst [vmem:[#allocation2 + $0x30] sm:$0x8] %v1412
        %v1414 = vld [vmem:[#allocation2 + $0x3c] sm:$0x8]
        %v1415 = vsel %vm982, 0, %v1414
        %1416 = vst [vmem:[#allocation2 + $0x3c] sm:$0x8] %v1415
        %v1417 = vld [vmem:[#allocation2 + $0x48] sm:$0x8]
        %v1418 = vsel %vm982, 0, %v1417
        %1419 = vst [vmem:[#allocation2 + $0x48] sm:$0x8] %v1418
        %v1420 = vld [vmem:[#allocation2 + $0x54] sm:$0x8]
        %v1421 = vsel %vm982, 0, %v1420
        %1422 = vst [vmem:[#allocation2 + $0x54] sm:$0x8] %v1421
        %v1424 = vshrl.u32 %v1187, 16
        %v1426 = vrot.slane %v1424, 7
        %v1427 = vshll.u32 %v1187, 16
        %v1429 = vor.u32 %v1426, %v1427
        %1430 = vrot.lane.b32.xlu0 %v1202, 96
        %v1431 = vpop.permute.xlu0 %1430
        %1432 = vrot.lane.b32.xlu0 %v1209, 96
        %v1433 = vpop.permute.xlu0 %1432
        %1434 = vrot.lane.b32.xlu0 %v1216, 96
        %v1435 = vpop.permute.xlu0 %1434
        %1436 = vrot.lane.b32.xlu0 %v1223, 96
        %v1437 = vpop.permute.xlu0 %1436
        %1438 = vrot.lane.b32.xlu0 %v1230, 96
        %v1439 = vpop.permute.xlu0 %1438
        %1440 = vrot.lane.b32.xlu0 %v1237, 96
        %v1441 = vpop.permute.xlu0 %1440
        %1442 = vrot.lane.b32.xlu0 %v1244, 96
        %v1443 = vpop.permute.xlu0 %1442
        %1444 = vrot.lane.b32.xlu0 %v1429, 96
        %v1445 = vpop.permute.xlu0 %1444
        %vm1454 = vmand %vm798, %vm482
        %v1455 = vld [vmem:[#allocation2] sm:$0xf]
        %v1456 = vsel %vm1454, %v1431, %v1455
        %1457 = vst [vmem:[#allocation2] sm:$0xf] %v1456
        %v1458 = vld [vmem:[#allocation2 + $0xc] sm:$0xf]
        %v1459 = vsel %vm1454, %v1433, %v1458
        %1460 = vst [vmem:[#allocation2 + $0xc] sm:$0xf] %v1459
        %v1461 = vld [vmem:[#allocation2 + $0x18] sm:$0xf]
        %v1462 = vsel %vm1454, %v1435, %v1461
        %1463 = vst [vmem:[#allocation2 + $0x18] sm:$0xf] %v1462
        %v1464 = vld [vmem:[#allocation2 + $0x24] sm:$0xf]
        %v1465 = vsel %vm1454, %v1437, %v1464
        %1466 = vst [vmem:[#allocation2 + $0x24] sm:$0xf] %v1465
        %v1467 = vld [vmem:[#allocation2 + $0x30] sm:$0xf]
        %v1468 = vsel %vm1454, %v1439, %v1467
        %1469 = vst [vmem:[#allocation2 + $0x30] sm:$0xf] %v1468
        %v1470 = vld [vmem:[#allocation2 + $0x3c] sm:$0xf]
        %v1471 = vsel %vm1454, %v1441, %v1470
        %1472 = vst [vmem:[#allocation2 + $0x3c] sm:$0xf] %v1471
        %v1473 = vld [vmem:[#allocation2 + $0x48] sm:$0xf]
        %v1474 = vsel %vm1454, %v1443, %v1473
        %1475 = vst [vmem:[#allocation2 + $0x48] sm:$0xf] %v1474
        %v1476 = vld [vmem:[#allocation2 + $0x54] sm:$0xf]
        %v1477 = vsel %vm1454, %v1445, %v1476
        %1478 = vst [vmem:[#allocation2 + $0x54] sm:$0xf] %v1477
        %vm1479 = vcmask 1041152
        %vm1480 = vmand %vm1479, %vm508
        %v1481 = vld [vmem:[#allocation2] sm:$0x1]
        %v1482 = vsel %vm1480, 0, %v1481
        %1483 = vst [vmem:[#allocation2] sm:$0x1] %v1482
        %v1484 = vld [vmem:[#allocation2 + $0xc] sm:$0x1]
        %v1485 = vsel %vm1480, 0, %v1484
        %1486 = vst [vmem:[#allocation2 + $0xc] sm:$0x1] %v1485
        %v1487 = vld [vmem:[#allocation2 + $0x18] sm:$0x1]
        %v1488 = vsel %vm1480, 0, %v1487
        %1489 = vst [vmem:[#allocation2 + $0x18] sm:$0x1] %v1488
        %v1490 = vld [vmem:[#allocation2 + $0x24] sm:$0x1]
        %v1491 = vsel %vm1480, 0, %v1490
        %1492 = vst [vmem:[#allocation2 + $0x24] sm:$0x1] %v1491
        %v1493 = vld [vmem:[#allocation2 + $0x30] sm:$0x1]
        %v1494 = vsel %vm1480, 0, %v1493
        %1495 = vst [vmem:[#allocation2 + $0x30] sm:$0x1] %v1494
        %v1496 = vld [vmem:[#allocation2 + $0x3c] sm:$0x1]
        %v1497 = vsel %vm1480, 0, %v1496
        %1498 = vst [vmem:[#allocation2 + $0x3c] sm:$0x1] %v1497
        %v1499 = vld [vmem:[#allocation2 + $0x48] sm:$0x1]
        %v1500 = vsel %vm1480, 0, %v1499
        %1501 = vst [vmem:[#allocation2 + $0x48] sm:$0x1] %v1500
        %v1502 = vld [vmem:[#allocation2 + $0x54] sm:$0x1]
        %v1503 = vsel %vm1480, 0, %v1502
        %1504 = vst [vmem:[#allocation2 + $0x54] sm:$0x1] %v1503
        %1505 = vst.msk [vmem:[#allocation2 + $0x4] sm:$0xf] %vm623, %v1180
        %1506 = vst.msk [vmem:[#allocation2 + $0x10] sm:$0xf] %vm623, %v1181
        %1507 = vst.msk [vmem:[#allocation2 + $0x1c] sm:$0xf] %vm623, %v1182
        %1508 = vst.msk [vmem:[#allocation2 + $0x28] sm:$0xf] %vm623, %v1183
        %1509 = vst.msk [vmem:[#allocation2 + $0x34] sm:$0xf] %vm623, %v1184
        %1510 = vst.msk [vmem:[#allocation2 + $0x40] sm:$0xf] %vm623, %v1185
        %1511 = vst.msk [vmem:[#allocation2 + $0x4c] sm:$0xf] %vm623, %v1186
        %1512 = vst.msk [vmem:[#allocation2 + $0x58] sm:$0xf] %vm623, %v1187
        %v1513 = vrot.slane %v1424, 4
        %v1514 = vrot.slane %v1427, 5
        %v1515 = vor.u32 %v1513, %v1514
        %v1516 = vrot.slane %v1515, 4
        %1517 = vrot.lane.b32.xlu0 %v1331, 32
        %v1518 = vpop.permute.xlu0 %1517
        %1519 = vrot.lane.b32.xlu0 %v1335, 32
        %v1520 = vpop.permute.xlu0 %1519
        %1521 = vrot.lane.b32.xlu0 %v1339, 32
        %v1522 = vpop.permute.xlu0 %1521
        %1523 = vrot.lane.b32.xlu0 %v1343, 32
        %v1524 = vpop.permute.xlu0 %1523
        %1525 = vrot.lane.b32.xlu0 %v1347, 32
        %v1526 = vpop.permute.xlu0 %1525
        %1527 = vrot.lane.b32.xlu0 %v1351, 32
        %v1528 = vpop.permute.xlu0 %1527
        %1529 = vrot.lane.b32.xlu0 %v1355, 32
        %v1530 = vpop.permute.xlu0 %1529
        %1531 = vrot.lane.b32.xlu0 %v1516, 32
        %v1532 = vpop.permute.xlu0 %1531
        %vm1541 = vmand %vm686, %vm600
        %v1542 = vld [vmem:[#allocation2 + $0x4] sm:$0xf]
        %v1543 = vsel %vm1541, %v1518, %v1542
        %1544 = vst [vmem:[#allocation2 + $0x4] sm:$0xf] %v1543
        %v1545 = vld [vmem:[#allocation2 + $0x10] sm:$0xf]
        %v1546 = vsel %vm1541, %v1520, %v1545
        %1547 = vst [vmem:[#allocation2 + $0x10] sm:$0xf] %v1546
        %v1548 = vld [vmem:[#allocation2 + $0x1c] sm:$0xf]
        %v1549 = vsel %vm1541, %v1522, %v1548
        %1550 = vst [vmem:[#allocation2 + $0x1c] sm:$0xf] %v1549
        %v1551 = vld [vmem:[#allocation2 + $0x28] sm:$0xf]
        %v1552 = vsel %vm1541, %v1524, %v1551
        %1553 = vst [vmem:[#allocation2 + $0x28] sm:$0xf] %v1552
        %v1554 = vld [vmem:[#allocation2 + $0x34] sm:$0xf]
        %v1555 = vsel %vm1541, %v1526, %v1554
        %1556 = vst [vmem:[#allocation2 + $0x34] sm:$0xf] %v1555
        %v1557 = vld [vmem:[#allocation2 + $0x40] sm:$0xf]
        %v1558 = vsel %vm1541, %v1528, %v1557
        %1559 = vst [vmem:[#allocation2 + $0x40] sm:$0xf] %v1558
        %v1560 = vld [vmem:[#allocation2 + $0x4c] sm:$0xf]
        %v1561 = vsel %vm1541, %v1530, %v1560
        %1562 = vst [vmem:[#allocation2 + $0x4c] sm:$0xf] %v1561
        %v1563 = vld [vmem:[#allocation2 + $0x58] sm:$0xf]
        %v1564 = vsel %vm1541, %v1532, %v1563
        %1565 = vst [vmem:[#allocation2 + $0x58] sm:$0xf] %v1564
        %vm1566 = vcmask 519427
        %vm1567 = vmand %vm1566, %vm626
        %v1568 = vld [vmem:[#allocation2 + $0x4] sm:$0x8]
        %v1569 = vsel %vm1567, 0, %v1568
        %1570 = vst [vmem:[#allocation2 + $0x4] sm:$0x8] %v1569
        %v1571 = vld [vmem:[#allocation2 + $0x10] sm:$0x8]
        %v1572 = vsel %vm1567, 0, %v1571
        %1573 = vst [vmem:[#allocation2 + $0x10] sm:$0x8] %v1572
        %v1574 = vld [vmem:[#allocation2 + $0x1c] sm:$0x8]
        %v1575 = vsel %vm1567, 0, %v1574
        %1576 = vst [vmem:[#allocation2 + $0x1c] sm:$0x8] %v1575
        %v1577 = vld [vmem:[#allocation2 + $0x28] sm:$0x8]
        %v1578 = vsel %vm1567, 0, %v1577
        %1579 = vst [vmem:[#allocation2 + $0x28] sm:$0x8] %v1578
        %v1580 = vld [vmem:[#allocation2 + $0x34] sm:$0x8]
        %v1581 = vsel %vm1567, 0, %v1580
        %1582 = vst [vmem:[#allocation2 + $0x34] sm:$0x8] %v1581
        %v1583 = vld [vmem:[#allocation2 + $0x40] sm:$0x8]
        %v1584 = vsel %vm1567, 0, %v1583
        %1585 = vst [vmem:[#allocation2 + $0x40] sm:$0x8] %v1584
        %v1586 = vld [vmem:[#allocation2 + $0x4c] sm:$0x8]
        %v1587 = vsel %vm1567, 0, %v1586
        %1588 = vst [vmem:[#allocation2 + $0x4c] sm:$0x8] %v1587
        %v1589 = vld [vmem:[#allocation2 + $0x58] sm:$0x8]
        %v1590 = vsel %vm1567, 0, %v1589
        %1591 = vst [vmem:[#allocation2 + $0x58] sm:$0x8] %v1590
        %1592 = vrot.lane.b32.xlu0 %v1209, 64
        %v1593 = vpop.permute.xlu0 %1592
        %1594 = vrot.lane.b32.xlu0 %v1216, 64
        %v1595 = vpop.permute.xlu0 %1594
        %1596 = vrot.lane.b32.xlu0 %v1223, 64
        %v1597 = vpop.permute.xlu0 %1596
        %1598 = vrot.lane.b32.xlu0 %v1230, 64
        %v1599 = vpop.permute.xlu0 %1598
        %1600 = vrot.lane.b32.xlu0 %v1237, 64
        %v1601 = vpop.permute.xlu0 %1600
        %1602 = vrot.lane.b32.xlu0 %v1244, 64
        %v1603 = vpop.permute.xlu0 %1602
        %1604 = vrot.lane.b32.xlu0 %v1429, 64
        %v1605 = vpop.permute.xlu0 %1604
        %v1613 = vld [vmem:[#allocation2 + $0x4] sm:$0xf]
        %v1614 = vsel %vm483, %v1593, %v1613
        %1615 = vst [vmem:[#allocation2 + $0x4] sm:$0xf] %v1614
        %v1616 = vld [vmem:[#allocation2 + $0x10] sm:$0xf]
        %v1617 = vsel %vm483, %v1595, %v1616
        %1618 = vst [vmem:[#allocation2 + $0x10] sm:$0xf] %v1617
        %v1619 = vld [vmem:[#allocation2 + $0x1c] sm:$0xf]
        %v1620 = vsel %vm483, %v1597, %v1619
        %1621 = vst [vmem:[#allocation2 + $0x1c] sm:$0xf] %v1620
        %v1622 = vld [vmem:[#allocation2 + $0x28] sm:$0xf]
        %v1623 = vsel %vm483, %v1599, %v1622
        %1624 = vst [vmem:[#allocation2 + $0x28] sm:$0xf] %v1623
        %v1625 = vld [vmem:[#allocation2 + $0x34] sm:$0xf]
        %v1626 = vsel %vm483, %v1601, %v1625
        %1627 = vst [vmem:[#allocation2 + $0x34] sm:$0xf] %v1626
        %v1628 = vld [vmem:[#allocation2 + $0x40] sm:$0xf]
        %v1629 = vsel %vm483, %v1603, %v1628
        %1630 = vst [vmem:[#allocation2 + $0x40] sm:$0xf] %v1629
        %v1631 = vld [vmem:[#allocation2 + $0x4c] sm:$0xf]
        %v1632 = vsel %vm483, %v1605, %v1631
        %1633 = vst [vmem:[#allocation2 + $0x4c] sm:$0xf] %v1632
        %s1634 = scalar_lea.vmem [#allocation2], 84
        %1635 = vst.msk [vmem:[%s1634 + $0x4] sm:$0xf] %vm505, 0
        %v1636 = vld [vmem:[#allocation2 + $0x4] sm:$0x1]
        %v1637 = vsel %vm509, 0, %v1636
        %1638 = vst [vmem:[#allocation2 + $0x4] sm:$0x1] %v1637
        %v1639 = vld [vmem:[#allocation2 + $0x10] sm:$0x1]
        %v1640 = vsel %vm509, 0, %v1639
        %1641 = vst [vmem:[#allocation2 + $0x10] sm:$0x1] %v1640
        %v1642 = vld [vmem:[#allocation2 + $0x1c] sm:$0x1]
        %v1643 = vsel %vm509, 0, %v1642
        %1644 = vst [vmem:[#allocation2 + $0x1c] sm:$0x1] %v1643
        %v1645 = vld [vmem:[#allocation2 + $0x28] sm:$0x1]
        %v1646 = vsel %vm509, 0, %v1645
        %1647 = vst [vmem:[#allocation2 + $0x28] sm:$0x1] %v1646
        %v1648 = vld [vmem:[#allocation2 + $0x34] sm:$0x1]
        %v1649 = vsel %vm509, 0, %v1648
        %1650 = vst [vmem:[#allocation2 + $0x34] sm:$0x1] %v1649
        %v1651 = vld [vmem:[#allocation2 + $0x40] sm:$0x1]
        %v1652 = vsel %vm509, 0, %v1651
        %1653 = vst [vmem:[#allocation2 + $0x40] sm:$0x1] %v1652
        %v1654 = vld [vmem:[#allocation2 + $0x4c] sm:$0x1]
        %v1655 = vsel %vm509, 0, %v1654
        %1656 = vst [vmem:[#allocation2 + $0x4c] sm:$0x1] %v1655
        %v1657 = vld [vmem:[#allocation2 + $0x58] sm:$0x1]
        %v1658 = vsel %vm509, 0, %v1657
        %1659 = vst [vmem:[#allocation2 + $0x58] sm:$0x1] %v1658
        %1660 = vrot.lane.b32.xlu0 %v1181, 96
        %v1661 = vpop.permute.xlu0 %1660
        %1662 = vrot.lane.b32.xlu0 %v1182, 96
        %v1663 = vpop.permute.xlu0 %1662
        %1664 = vrot.lane.b32.xlu0 %v1183, 96
        %v1665 = vpop.permute.xlu0 %1664
        %1666 = vrot.lane.b32.xlu0 %v1184, 96
        %v1667 = vpop.permute.xlu0 %1666
        %1668 = vrot.lane.b32.xlu0 %v1185, 96
        %v1669 = vpop.permute.xlu0 %1668
        %1670 = vrot.lane.b32.xlu0 %v1186, 96
        %v1671 = vpop.permute.xlu0 %1670
        %1672 = vrot.lane.b32.xlu0 %v1187, 96
        %v1673 = vpop.permute.xlu0 %1672
        %1681 = vst.msk [vmem:[#allocation2 + $0x4] sm:$0xf] %vm555, %v1661
        %1682 = vst.msk [vmem:[#allocation2 + $0x10] sm:$0xf] %vm555, %v1663
        %1683 = vst.msk [vmem:[#allocation2 + $0x1c] sm:$0xf] %vm555, %v1665
        %1684 = vst.msk [vmem:[#allocation2 + $0x28] sm:$0xf] %vm555, %v1667
        %1685 = vst.msk [vmem:[#allocation2 + $0x34] sm:$0xf] %vm555, %v1669
        %1686 = vst.msk [vmem:[#allocation2 + $0x40] sm:$0xf] %vm555, %v1671
        %1687 = vst.msk [vmem:[#allocation2 + $0x4c] sm:$0xf] %vm555, %v1673
        %1688 = vst.msk [vmem:[%s1634 + $0x4] sm:$0xf] %vm555, 0
        %v1696 = vld [vmem:[#allocation2 + $0x8] sm:$0xf]
        %v1697 = vsel %vm601, %v1335, %v1696
        %1698 = vst [vmem:[#allocation2 + $0x8] sm:$0xf] %v1697
        %v1699 = vld [vmem:[#allocation2 + $0x14] sm:$0xf]
        %v1700 = vsel %vm601, %v1339, %v1699
        %1701 = vst [vmem:[#allocation2 + $0x14] sm:$0xf] %v1700
        %v1702 = vld [vmem:[#allocation2 + $0x20] sm:$0xf]
        %v1703 = vsel %vm601, %v1343, %v1702
        %1704 = vst [vmem:[#allocation2 + $0x20] sm:$0xf] %v1703
        %v1705 = vld [vmem:[#allocation2 + $0x2c] sm:$0xf]
        %v1706 = vsel %vm601, %v1347, %v1705
        %1707 = vst [vmem:[#allocation2 + $0x2c] sm:$0xf] %v1706
        %v1708 = vld [vmem:[#allocation2 + $0x38] sm:$0xf]
        %v1709 = vsel %vm601, %v1351, %v1708
        %1710 = vst [vmem:[#allocation2 + $0x38] sm:$0xf] %v1709
        %v1711 = vld [vmem:[#allocation2 + $0x44] sm:$0xf]
        %v1712 = vsel %vm601, %v1355, %v1711
        %1713 = vst [vmem:[#allocation2 + $0x44] sm:$0xf] %v1712
        %v1714 = vld [vmem:[#allocation2 + $0x50] sm:$0xf]
        %v1715 = vsel %vm601, %v1516, %v1714
        %1716 = vst [vmem:[#allocation2 + $0x50] sm:$0xf] %v1715
        %1717 = vst.msk [vmem:[%s1634 + $0x8] sm:$0xf] %vm623, 0
        %v1718 = vld [vmem:[#allocation2 + $0x8] sm:$0x8]
        %v1719 = vsel %vm627, 0, %v1718
        %1720 = vst [vmem:[#allocation2 + $0x8] sm:$0x8] %v1719
        %v1721 = vld [vmem:[#allocation2 + $0x14] sm:$0x8]
        %v1722 = vsel %vm627, 0, %v1721
        %1723 = vst [vmem:[#allocation2 + $0x14] sm:$0x8] %v1722
        %v1724 = vld [vmem:[#allocation2 + $0x20] sm:$0x8]
        %v1725 = vsel %vm627, 0, %v1724
        %1726 = vst [vmem:[#allocation2 + $0x20] sm:$0x8] %v1725
        %v1727 = vld [vmem:[#allocation2 + $0x2c] sm:$0x8]
        %v1728 = vsel %vm627, 0, %v1727
        %1729 = vst [vmem:[#allocation2 + $0x2c] sm:$0x8] %v1728
        %v1730 = vld [vmem:[#allocation2 + $0x38] sm:$0x8]
        %v1731 = vsel %vm627, 0, %v1730
        %1732 = vst [vmem:[#allocation2 + $0x38] sm:$0x8] %v1731
        %v1733 = vld [vmem:[#allocation2 + $0x44] sm:$0x8]
        %v1734 = vsel %vm627, 0, %v1733
        %1735 = vst [vmem:[#allocation2 + $0x44] sm:$0x8] %v1734
        %v1736 = vld [vmem:[#allocation2 + $0x50] sm:$0x8]
        %v1737 = vsel %vm627, 0, %v1736
        %1738 = vst [vmem:[#allocation2 + $0x50] sm:$0x8] %v1737
        %v1739 = vld [vmem:[#allocation2 + $0x5c] sm:$0x8]
        %v1740 = vsel %vm627, 0, %v1739
        %1741 = vst [vmem:[#allocation2 + $0x5c] sm:$0x8] %v1740
        %v1742 = vld [vmem:[#allocation2] sm:$0xff]
        %v1743 = vld [vmem:[#allocation2 + $0x8] sm:$0xf]
        %v1744 = vld [vmem:[#allocation2 + $0xc] sm:$0xff]
        %v1745 = vld [vmem:[#allocation2 + $0x14] sm:$0xf]
        %v1746 = vld [vmem:[#allocation2 + $0x18] sm:$0xff]
        %v1747 = vld [vmem:[#allocation2 + $0x20] sm:$0xf]
        %v1748 = vld [vmem:[#allocation2 + $0x24] sm:$0xff]
        %v1749 = vld [vmem:[#allocation2 + $0x2c] sm:$0xf]
        %v1750 = vld [vmem:[#allocation2 + $0x30] sm:$0xff]
        %v1751 = vld [vmem:[#allocation2 + $0x38] sm:$0xf]
        %v1752 = vld [vmem:[#allocation2 + $0x3c] sm:$0xff]
        %v1753 = vld [vmem:[#allocation2 + $0x44] sm:$0xf]
        %v1754 = vld [vmem:[#allocation2 + $0x48] sm:$0xff]
        %v1755 = vld [vmem:[#allocation2 + $0x50] sm:$0xf]
        %v1756 = vld [vmem:[#allocation2 + $0x54] sm:$0xff]
        %v1757 = vld [vmem:[#allocation2 + $0x5c] sm:$0xf]
        %v1758 = vld [vmem:[%s4] sm:$0xf]
        %v1759 = vld [vmem:[%s4 + $0x4] sm:$0xf]
        %v1760 = vld [vmem:[%s4 + $0x8] sm:$0xf]
        %v1761 = vld [vmem:[%s4 + $0xc] sm:$0xf]
        %v1762 = vld [vmem:[%s4 + $0x10] sm:$0xf]
        %v1763 = vld [vmem:[%s4 + $0x14] sm:$0xf]
        %v1764 = vld [vmem:[%s4 + $0x18] sm:$0xf]
        %v1765 = vld [vmem:[%s4 + $0x1c] sm:$0xf]
        %v1766 = vld [vmem:[%s4 + $0x20] sm:$0xf]
        %v1767 = vld [vmem:[%s4 + $0x24] sm:$0xf]
        %v1768 = vld [vmem:[%s4 + $0x28] sm:$0xf]
        %v1769 = vld [vmem:[%s4 + $0x2c] sm:$0xf]
        %v1770 = vld [vmem:[%s4 + $0x30] sm:$0xf]
        %v1771 = vld [vmem:[%s4 + $0x34] sm:$0xf]
        %v1772 = vld [vmem:[%s4 + $0x38] sm:$0xf]
        %v1773 = vld [vmem:[%s4 + $0x3c] sm:$0xf]
        %v1774 = vld [vmem:[%s4 + $0x40] sm:$0xf]
        %v1775 = vld [vmem:[%s4 + $0x44] sm:$0xf]
        %v1776 = vld [vmem:[%s4 + $0x48] sm:$0xf]
        %v1777 = vld [vmem:[%s4 + $0x4c] sm:$0xf]
        %v1778 = vld [vmem:[%s4 + $0x50] sm:$0xf]
        %v1779 = vld [vmem:[%s4 + $0x54] sm:$0xf]
        %v1780 = vld [vmem:[%s4 + $0x58] sm:$0xf]
        %v1781 = vld [vmem:[%s4 + $0x5c] sm:$0xf]
        %v1782 = vld [vmem:[%s4 + $0x60] sm:$0xf]
        %v1783 = vld [vmem:[%s4 + $0x64] sm:$0xf]
        %v1784 = vld [vmem:[%s4 + $0x68] sm:$0xf]
        %v1785 = vld [vmem:[%s4 + $0x6c] sm:$0xf]
        %v1786 = vld [vmem:[%s4 + $0x70] sm:$0xf]
        %v1787 = vld [vmem:[%s4 + $0x74] sm:$0xf]
        %v1788 = vld [vmem:[%s4 + $0x78] sm:$0xf]
        %v1789 = vld [vmem:[%s4 + $0x7c] sm:$0xf]
        %v1790 = vld [vmem:[%s4 + $0x80] sm:$0xf]
        %v1791 = vld [vmem:[%s4 + $0x84] sm:$0xf]
        %v1792 = vld [vmem:[%s4 + $0x88] sm:$0xf]
        %v1793 = vld [vmem:[%s4 + $0x8c] sm:$0xf]
        %v1794 = vld [vmem:[%s5] sm:$0x1]
        %v1796 = vlaneseq
        %v1797 = vshrl.u32 %v1796, 7
        %v1798 = vsub.s32 0, %v1797
        %v1799 = vrot.slane %v1794, %v1798
        %v1817 = vunpack.c.l.b16 %v1742
        %v1818 = vunpack.c.h.b16 %v1742
        %v1819 = vunpack.c.l.b16 %v1743
        %v1820 = vunpack.c.l.b16 %v1744
        %v1821 = vunpack.c.h.b16 %v1744
        %v1822 = vunpack.c.l.b16 %v1745
        %v1823 = vunpack.c.l.b16 %v1746
        %v1824 = vunpack.c.h.b16 %v1746
        %v1825 = vunpack.c.l.b16 %v1747
        %v1826 = vunpack.c.l.b16 %v1748
        %v1827 = vunpack.c.h.b16 %v1748
        %v1828 = vunpack.c.l.b16 %v1749
        %v1829 = vunpack.c.l.b16 %v1750
        %v1830 = vunpack.c.h.b16 %v1750
        %v1831 = vunpack.c.l.b16 %v1751
        %v1832 = vunpack.c.l.b16 %v1752
        %v1833 = vunpack.c.h.b16 %v1752
        %v1834 = vunpack.c.l.b16 %v1753
        %v1835 = vunpack.c.l.b16 %v1754
        %v1836 = vunpack.c.h.b16 %v1754
        %v1837 = vunpack.c.l.b16 %v1755
        %v1838 = vunpack.c.l.b16 %v1756
        %v1839 = vunpack.c.h.b16 %v1756
        %v1840 = vunpack.c.l.b16 %v1757
        %v1841 = vpack.c.b16 %v1820, %v1817
        %v1842 = vpack.c.b16 %v1821, %v1818
        %v1843 = vpack.c.b16 %v1822, %v1819
        %v1844 = vpack.c.b16 %v1826, %v1823
        %v1845 = vpack.c.b16 %v1827, %v1824
        %v1846 = vpack.c.b16 %v1828, %v1825
        %v1847 = vpack.c.b16 %v1832, %v1829
        %v1848 = vpack.c.b16 %v1833, %v1830
        %v1849 = vpack.c.b16 %v1834, %v1831
        %v1850 = vpack.c.b16 %v1838, %v1835
        %v1851 = vpack.c.b16 %v1839, %v1836
        %v1852 = vpack.c.b16 %v1840, %v1837
        %v1897 = vunpack.c.l.b16 %v1758
        %v1898 = vunpack.c.l.b16 %v1759
        %v1899 = vunpack.c.l.b16 %v1760
        %v1900 = vunpack.c.l.b16 %v1761
        %v1901 = vunpack.c.l.b16 %v1762
        %v1902 = vunpack.c.l.b16 %v1763
        %v1903 = vunpack.c.l.b16 %v1764
        %v1904 = vunpack.c.l.b16 %v1765
        %v1905 = vunpack.c.l.b16 %v1766
        %v1906 = vunpack.c.l.b16 %v1767
        %v1907 = vunpack.c.l.b16 %v1768
        %v1908 = vunpack.c.l.b16 %v1769
        %v1909 = vunpack.c.l.b16 %v1770
        %v1910 = vunpack.c.l.b16 %v1771
        %v1911 = vunpack.c.l.b16 %v1772
        %v1912 = vunpack.c.l.b16 %v1773
        %v1913 = vunpack.c.l.b16 %v1774
        %v1914 = vunpack.c.l.b16 %v1775
        %v1915 = vunpack.c.l.b16 %v1776
        %v1916 = vunpack.c.l.b16 %v1777
        %v1917 = vunpack.c.l.b16 %v1778
        %v1918 = vunpack.c.l.b16 %v1779
        %v1919 = vunpack.c.l.b16 %v1780
        %v1920 = vunpack.c.l.b16 %v1781
        %v1921 = vunpack.c.l.b16 %v1782
        %v1922 = vunpack.c.l.b16 %v1783
        %v1923 = vunpack.c.l.b16 %v1784
        %v1924 = vunpack.c.l.b16 %v1785
        %v1925 = vunpack.c.l.b16 %v1786
        %v1926 = vunpack.c.l.b16 %v1787
        %v1927 = vunpack.c.l.b16 %v1788
        %v1928 = vunpack.c.l.b16 %v1789
        %v1929 = vunpack.c.l.b16 %v1790
        %v1930 = vunpack.c.l.b16 %v1791
        %v1931 = vunpack.c.l.b16 %v1792
        %v1932 = vunpack.c.l.b16 %v1793
        %v1933 = vpack.c.b16 %v1898, %v1897
        %v1934 = vpack.c.b16 %v1900, %v1899
        %v1935 = vpack.c.b16 %v1902, %v1901
        %v1936 = vpack.c.b16 %v1904, %v1903
        %v1937 = vpack.c.b16 %v1906, %v1905
        %v1938 = vpack.c.b16 %v1908, %v1907
        %v1939 = vpack.c.b16 %v1910, %v1909
        %v1940 = vpack.c.b16 %v1912, %v1911
        %v1941 = vpack.c.b16 %v1914, %v1913
        %v1942 = vpack.c.b16 %v1916, %v1915
        %v1943 = vpack.c.b16 %v1918, %v1917
        %v1944 = vpack.c.b16 %v1920, %v1919
        %v1945 = vpack.c.b16 %v1922, %v1921
        %v1946 = vpack.c.b16 %v1924, %v1923
        %v1947 = vpack.c.b16 %v1926, %v1925
        %v1948 = vpack.c.b16 %v1928, %v1927
        %v1949 = vpack.c.b16 %v1930, %v1929
        %v1950 = vpack.c.b16 %v1932, %v1931
        %v1970 = vsel %vm1009, %v1843, 0
        %v1973 = vsel %vm1009, %v1846, 0
        %v1976 = vsel %vm1009, %v1849, 0
        %v1979 = vsel %vm1009, %v1852, 0
        %1981 = vmatprep.subr.bf16.mxu0 0
        %1982 = vmatpush1.bf16.msra.mxu0 %v1933
        %1983 = vmatprep.subr.bf16.mxu0 0
        %1984 = vmatpush1.bf16.msra.mxu0 %v1934
        %1985 = vmatprep.subr.bf16.mxu0 0
        %1986 = vmatpush1.bf16.msra.mxu0 %v1935
        %1987 = vmatprep.subr.bf16.mxu0 0
        %1988 = vmatpush1.bf16.msra.mxu0 %v1936
        %1989 = vmatprep.subr.bf16.mxu0 0
        %1990 = vmatpush1.bf16.msra.mxu0 %v1937
        %1991 = vmatprep.subr.bf16.mxu0 0
        %1992 = vmatpush1.bf16.msra.mxu0 %v1938
        %1993 = vmatprep.subr.bf16.mxu0 0
        %1994 = vmatpush1.bf16.msra.mxu0 %v1939
        %1995 = vmatprep.subr.bf16.mxu0 0
        %1996 = vmatpush1.bf16.msra.mxu0 %v1940
        %1997 = vmatprep.subr.bf16.mxu0 0
        %1998 = vmatpush1.bf16.msra.mxu0 %v1941
        %1999 = vmatprep.subr.bf16.mxu0 0
        %2000 = vmatpush1.bf16.msra.mxu0 %v1942
        %2001 = vmatprep.subr.bf16.mxu0 0
        %2002 = vmatpush1.bf16.msra.mxu0 %v1943
        %2003 = vmatprep.subr.bf16.mxu0 0
        %2004 = vmatpush1.bf16.msra.mxu0 %v1944
        %2005 = vmatprep.subr.bf16.mxu0 0
        %2006 = vmatpush1.bf16.msra.mxu0 %v1945
        %2007 = vmatprep.subr.bf16.mxu0 0
        %2008 = vmatpush1.bf16.msra.mxu0 %v1946
        %2009 = vmatprep.subr.bf16.mxu0 0
        %2010 = vmatpush1.bf16.msra.mxu0 %v1947
        %2011 = vmatprep.subr.bf16.mxu0 0
        %2012 = vmatpush1.bf16.msra.mxu0 %v1948
        %2013 = vmatprep.mubr.bf16.mxu0 %v1842
        %2014 = vmatmul.mubr.bf16.gmra.mrb[0].mxu0 %v1841
        %v2015 = vpop.f32.mrb[0].mxu0
        %v2016 = vadd.f32 %v1799, %v2015
        %v2017 = vpop.f32.mrb[0].mxu0
        %v2018 = vpop.f32.mrb[0].mxu0
        %v2019 = vadd.f32 %v1799, %v2018
        %v2020 = vpop.f32.mrb[0].mxu0
        %2021 = vmatprep.mubr.bf16.mxu0 %v1845
        %2022 = vmatmul.mubr.bf16.gmra.mrb[0].mxu0 %v1844
        %v2023 = vpop.f32.mrb[0].mxu0
        %v2024 = vadd.f32 %v1799, %v2023
        %v2025 = vpop.f32.mrb[0].mxu0
        %v2026 = vpop.f32.mrb[0].mxu0
        %v2027 = vadd.f32 %v1799, %v2026
        %v2028 = vpop.f32.mrb[0].mxu0
        %2029 = vmatprep.mubr.bf16.mxu0 %v1848
        %2030 = vmatmul.mubr.bf16.gmra.mrb[0].mxu0 %v1847
        %v2031 = vpop.f32.mrb[0].mxu0
        %v2032 = vadd.f32 %v1799, %v2031
        %v2033 = vpop.f32.mrb[0].mxu0
        %v2034 = vpop.f32.mrb[0].mxu0
        %v2035 = vadd.f32 %v1799, %v2034
        %v2036 = vpop.f32.mrb[0].mxu0
        %2037 = vmatprep.mubr.bf16.mxu0 %v1851
        %2038 = vmatmul.mubr.bf16.gmra.mrb[0].mxu0 %v1850
        %v2039 = vpop.f32.mrb[0].mxu0
        %v2040 = vadd.f32 %v1799, %v2039
        %v2041 = vpop.f32.mrb[0].mxu0
        %v2042 = vpop.f32.mrb[0].mxu0
        %v2043 = vadd.f32 %v1799, %v2042
        %v2044 = vpop.f32.mrb[0].mxu0
        %2045 = vdwg.mxu0
        %2046 = vmatprep.subr.bf16.mxu0 0
        %2047 = vmatpush1.bf16.msra.mxu0 %v1949
        %2048 = vmatprep.subr.bf16.mxu0 0
        %2049 = vmatpush1.bf16.msra.mxu0 %v1950
        %2050 = vmatprep.subr.bf16.mxu0 0
        %2051 = vmatpush1.bf16.msra.mxu0 0
        %2052 = vmatprep.subr.bf16.mxu0 0
        %2053 = vmatpush1.bf16.msra.mxu0 0
        %2054 = vmatprep.subr.bf16.mxu0 0
        %2055 = vmatpush1.bf16.msra.mxu0 0
        %2056 = vmatprep.subr.bf16.mxu0 0
        %2057 = vmatpush1.bf16.msra.mxu0 0
        %2058 = vmatprep.subr.bf16.mxu0 0
        %2059 = vmatpush1.bf16.msra.mxu0 0
        %2060 = vmatprep.subr.bf16.mxu0 0
        %2061 = vmatpush1.bf16.msra.mxu0 0
        %2062 = vmatprep.subr.bf16.mxu0 0
        %2063 = vmatpush1.bf16.msra.mxu0 0
        %2064 = vmatprep.subr.bf16.mxu0 0
        %2065 = vmatpush1.bf16.msra.mxu0 0
        %2066 = vmatprep.subr.bf16.mxu0 0
        %2067 = vmatpush1.bf16.msra.mxu0 0
        %2068 = vmatprep.subr.bf16.mxu0 0
        %2069 = vmatpush1.bf16.msra.mxu0 0
        %2070 = vmatprep.subr.bf16.mxu0 0
        %2071 = vmatpush1.bf16.msra.mxu0 0
        %2072 = vmatprep.subr.bf16.mxu0 0
        %2073 = vmatpush1.bf16.msra.mxu0 0
        %2074 = vmatprep.subr.bf16.mxu0 0
        %2075 = vmatpush1.bf16.msra.mxu0 0
        %2076 = vmatprep.subr.bf16.mxu0 0
        %2077 = vmatpush1.bf16.msra.mxu0 0
        %2078 = vmatprep.mubr.bf16.mxu0 0
        %2079 = vmatmul.mubr.bf16.gmra.mrb[0].mxu0 %v1970
        %v2080 = vpop.f32.mrb[0].mxu0
        %v2081 = vadd.f32 %v2016, %v2080
        %v2082 = vpop.f32.mrb[0].mxu0
        %v2083 = vpop.f32.mrb[0].mxu0
        %v2084 = vadd.f32 %v2019, %v2083
        %v2085 = vpop.f32.mrb[0].mxu0
        %2086 = vmatprep.mubr.bf16.mxu0 0
        %2087 = vmatmul.mubr.bf16.gmra.mrb[0].mxu0 %v1973
        %v2088 = vpop.f32.mrb[0].mxu0
        %v2089 = vadd.f32 %v2024, %v2088
        %v2090 = vpop.f32.mrb[0].mxu0
        %v2091 = vpop.f32.mrb[0].mxu0
        %v2092 = vadd.f32 %v2027, %v2091
        %v2093 = vpop.f32.mrb[0].mxu0
        %2094 = vmatprep.mubr.bf16.mxu0 0
        %2095 = vmatmul.mubr.bf16.gmra.mrb[0].mxu0 %v1976
        %v2096 = vpop.f32.mrb[0].mxu0
        %v2097 = vadd.f32 %v2032, %v2096
        %v2098 = vpop.f32.mrb[0].mxu0
        %v2099 = vpop.f32.mrb[0].mxu0
        %v2100 = vadd.f32 %v2035, %v2099
        %v2101 = vpop.f32.mrb[0].mxu0
        %2102 = vmatprep.mubr.bf16.mxu0 0
        %2103 = vmatmul.mubr.bf16.gmra.mrb[0].mxu0 %v1979
        %v2104 = vpop.f32.mrb[0].mxu0
        %v2105 = vadd.f32 %v2040, %v2104
        %v2106 = vpop.f32.mrb[0].mxu0
        %v2107 = vpop.f32.mrb[0].mxu0
        %v2108 = vadd.f32 %v2043, %v2107
        %v2109 = vpop.f32.mrb[0].mxu0
        %2110 = vdwg.mxu0
        %v2111 = vld [vmem:[%s371] sm:$0x1]
        %v2113 = vlaneseq
        %v2114 = vshrl.u32 %v2113, 7
        %v2115 = vsub.s32 0, %v2114
        %v2116 = vrot.slane %v2111, %v2115
        %v2118 = vadd.f32 %v2081, %v2116
        %v2119 = vadd.f32 %v2084, %v2116
        %v2120 = vadd.f32 %v2089, %v2116
        %v2121 = vadd.f32 %v2092, %v2116
        %v2122 = vadd.f32 %v2097, %v2116
        %v2123 = vadd.f32 %v2100, %v2116
        %v2124 = vadd.f32 %v2105, %v2116
        %v2125 = vadd.f32 %v2108, %v2116
        %v2126 = vld [vmem:[%s6] sm:$0x1]
        %v2127 = vld [vmem:[%s7] sm:$0x1]
        %vm2128 = vcmask 523264
        %v2129 = vsel %vm2128, %v2118, 0.0
        %v2130 = vsel %vm2128, %v2119, 0.0
        %v2131 = vadd.f32 %v2129, %v2130
        %v2132 = vsel %vm2128, %v2120, 0.0
        %v2133 = vadd.f32 %v2131, %v2132
        %v2134 = vsel %vm2128, %v2121, 0.0
        %v2135 = vadd.f32 %v2133, %v2134
        %v2136 = vsel %vm2128, %v2122, 0.0
        %v2137 = vadd.f32 %v2135, %v2136
        %v2138 = vsel %vm2128, %v2123, 0.0
        %v2139 = vadd.f32 %v2137, %v2138
        %v2140 = vsel %vm2128, %v2124, 0.0
        %v2141 = vadd.f32 %v2139, %v2140
        %v2142 = vsel %vm2128, %v2125, 0.0
        %v2143 = vadd.f32 %v2141, %v2142
        %v2144 = vrot.slane %v2143, 4
        %v2145 = vadd.f32 %v2143, %v2144
        %v2146 = vrot.slane %v2145, 2
        %v2147 = vadd.f32 %v2145, %v2146
        %v2148 = vrot.slane %v2147, 1
        %v2149 = vadd.f32 %v2147, %v2148
        %v2150 = vlaneseq
        %v2151 = vand.u32 %v2150, 127
        %vm2152 = vcmask 1048064
        %2153 = vrot.lane.b32.xlu0 %v2149, 64
        %v2154 = vpop.permute.xlu0 %2153
        %v2155 = vsel %vm2152, %v2154, %v2149
        %2156 = vrot.lane.b32.xlu0 %v2155, 64
        %v2157 = vpop.permute.xlu0 %2156
        %v2158 = vsel %vm2152, %v2157, %v2149
        %vm2159 = vcmp.lt.s32.totalorder %v2151, 0
        %v2160 = vsub.s32 0, %v2151
        %v2161 = vsel %vm2159, %v2160, %v2151
        %v2162 = vshrl.u32 %v2161, 1
        %v2163 = vand.u32 %v2161, 1
        %v2164 = vsub.s32 0, %v2163
        %v2165 = vsel %vm2159, %v2164, %v2163
        %vm2166 = vcmp.ne.s32.totalorder %v2165, 0
        %vm2167 = vcmp.lt.s32.totalorder %v2165, 0
        %vm2168 = vmand %vm2167, %vm2166
        %v2169 = vadd.s32 %v2165, 2
        %v2170 = vsel %vm2168, %v2169, %v2165
        %vm2171 = vcmp.eq.s32.totalorder %v2170, 0
        %2173 = vrot.lane.b32.xlu0 %v2158, 127
        %v2174 = vpop.permute.xlu0 %2173
        %2176 = vrot.lane.b32.xlu0 %v2158, 65
        %v2177 = vpop.permute.xlu0 %2176
        %v2179 = vsel %vm2171, %v2174, %v2177
        %v2180 = vadd.f32 %v2149, %v2179
        %v2181 = vmul.f32 %v2180, 0.0078125
        %v2182 = vlaneseq
        %v2183 = vshrl.u32 %v2182, 7
        %v2184 = vsub.s32 0, %v2183
        %v2185 = vrot.slane %v2181, %v2184
        %v2186 = vsub.f32 %v2118, %v2185
        %v2187 = vsub.f32 %v2119, %v2185
        %v2188 = vsub.f32 %v2120, %v2185
        %v2189 = vsub.f32 %v2121, %v2185
        %v2190 = vsub.f32 %v2122, %v2185
        %v2191 = vsub.f32 %v2123, %v2185
        %v2192 = vsub.f32 %v2124, %v2185
        %v2193 = vsub.f32 %v2125, %v2185
        %v2194 = vmul.f32 %v2186, %v2186
        %v2195 = vmul.f32 %v2187, %v2187
        %v2196 = vmul.f32 %v2188, %v2188
        %v2197 = vmul.f32 %v2189, %v2189
        %v2198 = vmul.f32 %v2190, %v2190
        %v2199 = vmul.f32 %v2191, %v2191
        %v2200 = vmul.f32 %v2192, %v2192
        %v2201 = vmul.f32 %v2193, %v2193
        %v2202 = vsel %vm2128, %v2194, 0.0
        %v2203 = vsel %vm2128, %v2195, 0.0
        %v2204 = vadd.f32 %v2202, %v2203
        %v2205 = vsel %vm2128, %v2196, 0.0
        %v2206 = vadd.f32 %v2204, %v2205
        %v2207 = vsel %vm2128, %v2197, 0.0
        %v2208 = vadd.f32 %v2206, %v2207
        %v2209 = vsel %vm2128, %v2198, 0.0
        %v2210 = vadd.f32 %v2208, %v2209
        %v2211 = vsel %vm2128, %v2199, 0.0
        %v2212 = vadd.f32 %v2210, %v2211
        %v2213 = vsel %vm2128, %v2200, 0.0
        %v2214 = vadd.f32 %v2212, %v2213
        %v2215 = vsel %vm2128, %v2201, 0.0
        %v2216 = vadd.f32 %v2214, %v2215
        %v2217 = vrot.slane %v2216, 4
        %v2218 = vadd.f32 %v2216, %v2217
        %v2219 = vrot.slane %v2218, 2
        %v2220 = vadd.f32 %v2218, %v2219
        %v2221 = vrot.slane %v2220, 1
        %v2222 = vadd.f32 %v2220, %v2221
        %2223 = vrot.lane.b32.xlu0 %v2222, 64
        %v2224 = vpop.permute.xlu0 %2223
        %v2225 = vsel %vm2152, %v2224, %v2222
        %2226 = vrot.lane.b32.xlu0 %v2225, 64
        %v2227 = vpop.permute.xlu0 %2226
        %v2228 = vsel %vm2152, %v2227, %v2222
        %2230 = vrot.lane.b32.xlu0 %v2228, 127
        %v2231 = vpop.permute.xlu0 %2230
        %2233 = vrot.lane.b32.xlu0 %v2228, 65
        %v2234 = vpop.permute.xlu0 %2233
        %v2236 = vsel %vm2171, %v2231, %v2234
        %v2237 = vadd.f32 %v2222, %v2236
        %v2238 = vmul.f32 %v2237, 0.0078125
        %v2239 = vadd.f32 %v2238, 1e-05
        %v2240 = vrsqrt.pop %v2239
        %v2241 = vlaneseq
        %v2242 = vshrl.u32 %v2241, 7
        %v2243 = vsub.s32 0, %v2242
        %v2244 = vrot.slane %v2240, %v2243
        %v2245 = vmul.f32 %v2186, %v2244
        %v2246 = vmul.f32 %v2187, %v2244
        %v2247 = vmul.f32 %v2188, %v2244
        %v2248 = vmul.f32 %v2189, %v2244
        %v2249 = vmul.f32 %v2190, %v2244
        %v2250 = vmul.f32 %v2191, %v2244
        %v2251 = vmul.f32 %v2192, %v2244
        %v2252 = vmul.f32 %v2193, %v2244
        %v2254 = vlaneseq
        %v2255 = vshrl.u32 %v2254, 7
        %v2256 = vsub.s32 0, %v2255
        %v2257 = vrot.slane %v2126, %v2256
        %v2259 = vmul.f32 %v2245, %v2257
        %v2260 = vmul.f32 %v2246, %v2257
        %v2261 = vmul.f32 %v2247, %v2257
        %v2262 = vmul.f32 %v2248, %v2257
        %v2263 = vmul.f32 %v2249, %v2257
        %v2264 = vmul.f32 %v2250, %v2257
        %v2265 = vmul.f32 %v2251, %v2257
        %v2266 = vmul.f32 %v2252, %v2257
        %v2268 = vlaneseq
        %v2269 = vshrl.u32 %v2268, 7
        %v2270 = vsub.s32 0, %v2269
        %v2271 = vrot.slane %v2127, %v2270
        %v2273 = vadd.f32 %v2259, %v2271
        %v2274 = vadd.f32 %v2260, %v2271
        %v2275 = vadd.f32 %v2261, %v2271
        %v2276 = vadd.f32 %v2262, %v2271
        %v2277 = vadd.f32 %v2263, %v2271
        %v2278 = vadd.f32 %v2264, %v2271
        %v2279 = vadd.f32 %v2265, %v2271
        %v2280 = vadd.f32 %v2266, %v2271
        %v2281 = vxor.u32 %v2273, 2147483648
        %v2282 = vxor.u32 %v2274, 2147483648
        %v2283 = vxor.u32 %v2275, 2147483648
        %v2284 = vxor.u32 %v2276, 2147483648
        %v2285 = vxor.u32 %v2277, 2147483648
        %v2286 = vxor.u32 %v2278, 2147483648
        %v2287 = vxor.u32 %v2279, 2147483648
        %v2288 = vxor.u32 %v2280, 2147483648
        %v2289 = vmul.f32 %v2281, 1.442695
        %v2290 = vpow.pop %v2289
        %v2291 = vmul.f32 %v2282, 1.442695
        %v2292 = vpow.pop %v2291
        %v2293 = vmul.f32 %v2283, 1.442695
        %v2294 = vpow.pop %v2293
        %v2295 = vmul.f32 %v2284, 1.442695
        %v2296 = vpow.pop %v2295
        %v2297 = vmul.f32 %v2285, 1.442695
        %v2298 = vpow.pop %v2297
        %v2299 = vmul.f32 %v2286, 1.442695
        %v2300 = vpow.pop %v2299
        %v2301 = vmul.f32 %v2287, 1.442695
        %v2302 = vpow.pop %v2301
        %v2303 = vmul.f32 %v2288, 1.442695
        %v2304 = vpow.pop %v2303
        %v2305 = vadd.f32 %v2290, 1.0
        %v2306 = vadd.f32 %v2292, 1.0
        %v2307 = vadd.f32 %v2294, 1.0
        %v2308 = vadd.f32 %v2296, 1.0
        %v2309 = vadd.f32 %v2298, 1.0
        %v2310 = vadd.f32 %v2300, 1.0
        %v2311 = vadd.f32 %v2302, 1.0
        %v2312 = vadd.f32 %v2304, 1.0
        %v2313 = vrcp.pop %v2305
        %v2314 = vmul.f32 1.0, %v2313
        %v2315 = vrcp.pop %v2306
        %v2316 = vmul.f32 1.0, %v2315
        %v2317 = vrcp.pop %v2307
        %v2318 = vmul.f32 1.0, %v2317
        %v2319 = vrcp.pop %v2308
        %v2320 = vmul.f32 1.0, %v2319
        %v2321 = vrcp.pop %v2309
        %v2322 = vmul.f32 1.0, %v2321
        %v2323 = vrcp.pop %v2310
        %v2324 = vmul.f32 1.0, %v2323
        %v2325 = vrcp.pop %v2311
        %v2326 = vmul.f32 1.0, %v2325
        %v2327 = vrcp.pop %v2312
        %v2328 = vmul.f32 1.0, %v2327
        %v2329 = vmul.f32 %v2273, %v2314
        %v2330 = vmul.f32 %v2274, %v2316
        %v2331 = vmul.f32 %v2275, %v2318
        %v2332 = vmul.f32 %v2276, %v2320
        %v2333 = vmul.f32 %v2277, %v2322
        %v2334 = vmul.f32 %v2278, %v2324
        %v2335 = vmul.f32 %v2279, %v2326
        %v2336 = vmul.f32 %v2280, %v2328
        %v2337 = vpack.c.bf16 %v2330, %v2329
        %v2338 = vpack.c.bf16 %v2332, %v2331
        %v2339 = vpack.c.bf16 %v2334, %v2333
        %v2340 = vpack.c.bf16 %v2336, %v2335
        %v2345 = vunpack.c.l.b16 %v2337
        %v2346 = vunpack.c.h.b16 %v2337
        %v2347 = vunpack.c.l.b16 %v2338
        %v2348 = vunpack.c.h.b16 %v2338
        %v2349 = vunpack.c.l.b16 %v2339
        %v2350 = vunpack.c.h.b16 %v2339
        %v2351 = vunpack.c.l.b16 %v2340
        %v2352 = vunpack.c.h.b16 %v2340
        %v2353 = vpack.c.b16 %v2345, %v2345
        %v2354 = vpack.c.b16 %v2346, %v2346
        %v2355 = vpack.c.b16 %v2347, %v2347
        %v2356 = vpack.c.b16 %v2348, %v2348
        %v2357 = vpack.c.b16 %v2349, %v2349
        %v2358 = vpack.c.b16 %v2350, %v2350
        %v2359 = vpack.c.b16 %v2351, %v2351
        %v2360 = vpack.c.b16 %v2352, %v2352
        %v2370 = vshrl.u32 %v2353, 16
        %v2372 = vrot.slane %v2370, 7
        %v2373 = vshll.u32 %v2353, 16
        %v2375 = vor.u32 %v2372, %v2373
        %v2377 = vshrl.u32 %v2354, 16
        %v2379 = vrot.slane %v2377, 7
        %v2380 = vshll.u32 %v2354, 16
        %v2382 = vor.u32 %v2379, %v2380
        %v2384 = vshrl.u32 %v2355, 16
        %v2386 = vrot.slane %v2384, 7
        %v2387 = vshll.u32 %v2355, 16
        %v2389 = vor.u32 %v2386, %v2387
        %v2391 = vshrl.u32 %v2356, 16
        %v2393 = vrot.slane %v2391, 7
        %v2394 = vshll.u32 %v2356, 16
        %v2396 = vor.u32 %v2393, %v2394
        %v2398 = vshrl.u32 %v2357, 16
        %v2400 = vrot.slane %v2398, 7
        %v2401 = vshll.u32 %v2357, 16
        %v2403 = vor.u32 %v2400, %v2401
        %v2405 = vshrl.u32 %v2358, 16
        %v2407 = vrot.slane %v2405, 7
        %v2408 = vshll.u32 %v2358, 16
        %v2410 = vor.u32 %v2407, %v2408
        %v2412 = vshrl.u32 %v2359, 16
        %v2414 = vrot.slane %v2412, 7
        %v2415 = vshll.u32 %v2359, 16
        %v2417 = vor.u32 %v2414, %v2415
        %vm2425 = vcmask 519168
        %vm2426 = vmand %vm2425, %vm482
        %v2427 = vld [vmem:[%s480] sm:$0xf]
        %v2428 = vsel %vm2426, %v2375, %v2427
        %2429 = vst [vmem:[%s480] sm:$0xf] %v2428
        %v2430 = vld [vmem:[%s480 + $0x1c] sm:$0xf]
        %v2431 = vsel %vm2426, %v2382, %v2430
        %2432 = vst [vmem:[%s480 + $0x1c] sm:$0xf] %v2431
        %v2433 = vld [vmem:[%s480 + $0x38] sm:$0xf]
        %v2434 = vsel %vm2426, %v2389, %v2433
        %2435 = vst [vmem:[%s480 + $0x38] sm:$0xf] %v2434
        %v2436 = vld [vmem:[%s480 + $0x54] sm:$0xf]
        %v2437 = vsel %vm2426, %v2396, %v2436
        %2438 = vst [vmem:[%s480 + $0x54] sm:$0xf] %v2437
        %v2439 = vld [vmem:[%s480 + $0x70] sm:$0xf]
        %v2440 = vsel %vm2426, %v2403, %v2439
        %2441 = vst [vmem:[%s480 + $0x70] sm:$0xf] %v2440
        %v2442 = vld [vmem:[%s480 + $0x8c] sm:$0xf]
        %v2443 = vsel %vm2426, %v2410, %v2442
        %2444 = vst [vmem:[%s480 + $0x8c] sm:$0xf] %v2443
        %v2445 = vld [vmem:[%s480 + $0xa8] sm:$0xf]
        %v2446 = vsel %vm2426, %v2417, %v2445
        %2447 = vst [vmem:[%s480 + $0xa8] sm:$0xf] %v2446
        %vm2448 = vcmask 519168
        %2449 = vst.msk [vmem:[#allocation3] sm:$0xf] %vm2448, 0
        %vm2450 = vcmask 516096
        %vm2451 = vmand %vm2450, %vm508
        %v2452 = vld [vmem:[#allocation3] sm:$0x1]
        %v2453 = vsel %vm2451, 0, %v2452
        %2454 = vst [vmem:[#allocation3] sm:$0x1] %v2453
        %v2455 = vld [vmem:[#allocation3 + $0x1c] sm:$0x1]
        %v2456 = vsel %vm2451, 0, %v2455
        %2457 = vst [vmem:[#allocation3 + $0x1c] sm:$0x1] %v2456
        %v2458 = vld [vmem:[#allocation3 + $0x38] sm:$0x1]
        %v2459 = vsel %vm2451, 0, %v2458
        %2460 = vst [vmem:[#allocation3 + $0x38] sm:$0x1] %v2459
        %v2461 = vld [vmem:[#allocation3 + $0x54] sm:$0x1]
        %v2462 = vsel %vm2451, 0, %v2461
        %2463 = vst [vmem:[#allocation3 + $0x54] sm:$0x1] %v2462
        %v2464 = vld [vmem:[#allocation3 + $0x70] sm:$0x1]
        %v2465 = vsel %vm2451, 0, %v2464
        %2466 = vst [vmem:[#allocation3 + $0x70] sm:$0x1] %v2465
        %v2467 = vld [vmem:[#allocation3 + $0x8c] sm:$0x1]
        %v2468 = vsel %vm2451, 0, %v2467
        %2469 = vst [vmem:[#allocation3 + $0x8c] sm:$0x1] %v2468
        %v2470 = vld [vmem:[#allocation3 + $0xa8] sm:$0x1]
        %v2471 = vsel %vm2451, 0, %v2470
        %2472 = vst [vmem:[#allocation3 + $0xa8] sm:$0x1] %v2471
        %v2473 = vld [vmem:[#allocation3 + $0xc4] sm:$0x1]
        %v2474 = vsel %vm2451, 0, %v2473
        %2475 = vst [vmem:[#allocation3 + $0xc4] sm:$0x1] %v2474
        %2476 = vrot.lane.b32.xlu0 %v2353, 64
        %v2477 = vpop.permute.xlu0 %2476
        %2478 = vrot.lane.b32.xlu0 %v2354, 64
        %v2479 = vpop.permute.xlu0 %2478
        %2480 = vrot.lane.b32.xlu0 %v2355, 64
        %v2481 = vpop.permute.xlu0 %2480
        %2482 = vrot.lane.b32.xlu0 %v2356, 64
        %v2483 = vpop.permute.xlu0 %2482
        %2484 = vrot.lane.b32.xlu0 %v2357, 64
        %v2485 = vpop.permute.xlu0 %2484
        %2486 = vrot.lane.b32.xlu0 %v2358, 64
        %v2487 = vpop.permute.xlu0 %2486
        %2488 = vrot.lane.b32.xlu0 %v2359, 64
        %v2489 = vpop.permute.xlu0 %2488
        %vm2497 = vcmask 1043968
        %2498 = vst.msk [vmem:[%s480] sm:$0xf] %vm2497, %v2477
        %2499 = vst.msk [vmem:[%s480 + $0x1c] sm:$0xf] %vm2497, %v2479
        %2500 = vst.msk [vmem:[%s480 + $0x38] sm:$0xf] %vm2497, %v2481
        %2501 = vst.msk [vmem:[%s480 + $0x54] sm:$0xf] %vm2497, %v2483
        %2502 = vst.msk [vmem:[%s480 + $0x70] sm:$0xf] %vm2497, %v2485
        %2503 = vst.msk [vmem:[%s480 + $0x8c] sm:$0xf] %vm2497, %v2487
        %2504 = vst.msk [vmem:[%s480 + $0xa8] sm:$0xf] %vm2497, %v2489
        %2505 = vst.msk [vmem:[#allocation3] sm:$0xf] %vm2497, 0
        %v2506 = vrot.slane %v2370, 4
        %v2507 = vrot.slane %v2373, 5
        %v2508 = vor.u32 %v2506, %v2507
        %v2509 = vrot.slane %v2508, 4
        %v2510 = vrot.slane %v2377, 4
        %v2511 = vrot.slane %v2380, 5
        %v2512 = vor.u32 %v2510, %v2511
        %v2513 = vrot.slane %v2512, 4
        %v2514 = vrot.slane %v2384, 4
        %v2515 = vrot.slane %v2387, 5
        %v2516 = vor.u32 %v2514, %v2515
        %v2517 = vrot.slane %v2516, 4
        %v2518 = vrot.slane %v2391, 4
        %v2519 = vrot.slane %v2394, 5
        %v2520 = vor.u32 %v2518, %v2519
        %v2521 = vrot.slane %v2520, 4
        %v2522 = vrot.slane %v2398, 4
        %v2523 = vrot.slane %v2401, 5
        %v2524 = vor.u32 %v2522, %v2523
        %v2525 = vrot.slane %v2524, 4
        %v2526 = vrot.slane %v2405, 4
        %v2527 = vrot.slane %v2408, 5
        %v2528 = vor.u32 %v2526, %v2527
        %v2529 = vrot.slane %v2528, 4
        %v2530 = vrot.slane %v2412, 4
        %v2531 = vrot.slane %v2415, 5
        %v2532 = vor.u32 %v2530, %v2531
        %v2533 = vrot.slane %v2532, 4
        %vm2541 = vmand %vm2425, %vm600
        %v2542 = vld [vmem:[%s480 + $0x4] sm:$0xf]
        %v2543 = vsel %vm2541, %v2509, %v2542
        %2544 = vst [vmem:[%s480 + $0x4] sm:$0xf] %v2543
        %v2545 = vld [vmem:[%s480 + $0x20] sm:$0xf]
        %v2546 = vsel %vm2541, %v2513, %v2545
        %2547 = vst [vmem:[%s480 + $0x20] sm:$0xf] %v2546
        %v2548 = vld [vmem:[%s480 + $0x3c] sm:$0xf]
        %v2549 = vsel %vm2541, %v2517, %v2548
        %2550 = vst [vmem:[%s480 + $0x3c] sm:$0xf] %v2549
        %v2551 = vld [vmem:[%s480 + $0x58] sm:$0xf]
        %v2552 = vsel %vm2541, %v2521, %v2551
        %2553 = vst [vmem:[%s480 + $0x58] sm:$0xf] %v2552
        %v2554 = vld [vmem:[%s480 + $0x74] sm:$0xf]
        %v2555 = vsel %vm2541, %v2525, %v2554
        %2556 = vst [vmem:[%s480 + $0x74] sm:$0xf] %v2555
        %v2557 = vld [vmem:[%s480 + $0x90] sm:$0xf]
        %v2558 = vsel %vm2541, %v2529, %v2557
        %2559 = vst [vmem:[%s480 + $0x90] sm:$0xf] %v2558
        %v2560 = vld [vmem:[%s480 + $0xac] sm:$0xf]
        %v2561 = vsel %vm2541, %v2533, %v2560
        %2562 = vst [vmem:[%s480 + $0xac] sm:$0xf] %v2561
        %2563 = vst.msk [vmem:[#allocation3 + $0x4] sm:$0xf] %vm2448, 0
        %vm2564 = vcmask 519171
        %vm2565 = vmand %vm2564, %vm626
        %v2566 = vld [vmem:[#allocation3 + $0x4] sm:$0x8]
        %v2567 = vsel %vm2565, 0, %v2566
        %2568 = vst [vmem:[#allocation3 + $0x4] sm:$0x8] %v2567
        %v2569 = vld [vmem:[#allocation3 + $0x20] sm:$0x8]
        %v2570 = vsel %vm2565, 0, %v2569
        %2571 = vst [vmem:[#allocation3 + $0x20] sm:$0x8] %v2570
        %v2572 = vld [vmem:[#allocation3 + $0x3c] sm:$0x8]
        %v2573 = vsel %vm2565, 0, %v2572
        %2574 = vst [vmem:[#allocation3 + $0x3c] sm:$0x8] %v2573
        %v2575 = vld [vmem:[#allocation3 + $0x58] sm:$0x8]
        %v2576 = vsel %vm2565, 0, %v2575
        %2577 = vst [vmem:[#allocation3 + $0x58] sm:$0x8] %v2576
        %v2578 = vld [vmem:[#allocation3 + $0x74] sm:$0x8]
        %v2579 = vsel %vm2565, 0, %v2578
        %2580 = vst [vmem:[#allocation3 + $0x74] sm:$0x8] %v2579
        %v2581 = vld [vmem:[#allocation3 + $0x90] sm:$0x8]
        %v2582 = vsel %vm2565, 0, %v2581
        %2583 = vst [vmem:[#allocation3 + $0x90] sm:$0x8] %v2582
        %v2584 = vld [vmem:[#allocation3 + $0xac] sm:$0x8]
        %v2585 = vsel %vm2565, 0, %v2584
        %2586 = vst [vmem:[#allocation3 + $0xac] sm:$0x8] %v2585
        %v2587 = vld [vmem:[#allocation3 + $0xc8] sm:$0x8]
        %v2588 = vsel %vm2565, 0, %v2587
        %2589 = vst [vmem:[#allocation3 + $0xc8] sm:$0x8] %v2588
        %v2591 = vshrl.u32 %v2360, 16
        %v2593 = vrot.slane %v2591, 7
        %v2594 = vshll.u32 %v2360, 16
        %v2596 = vor.u32 %v2593, %v2594
        %2597 = vrot.lane.b32.xlu0 %v2375, 64
        %v2598 = vpop.permute.xlu0 %2597
        %2599 = vrot.lane.b32.xlu0 %v2382, 64
        %v2600 = vpop.permute.xlu0 %2599
        %2601 = vrot.lane.b32.xlu0 %v2389, 64
        %v2602 = vpop.permute.xlu0 %2601
        %2603 = vrot.lane.b32.xlu0 %v2396, 64
        %v2604 = vpop.permute.xlu0 %2603
        %2605 = vrot.lane.b32.xlu0 %v2403, 64
        %v2606 = vpop.permute.xlu0 %2605
        %2607 = vrot.lane.b32.xlu0 %v2410, 64
        %v2608 = vpop.permute.xlu0 %2607
        %2609 = vrot.lane.b32.xlu0 %v2417, 64
        %v2610 = vpop.permute.xlu0 %2609
        %2611 = vrot.lane.b32.xlu0 %v2596, 64
        %v2612 = vpop.permute.xlu0 %2611
        %vm2621 = vcmask 1043968
        %vm2622 = vmand %vm2621, %vm482
        %v2623 = vld [vmem:[#allocation3 + $0x4] sm:$0xf]
        %v2624 = vsel %vm2622, %v2598, %v2623
        %2625 = vst [vmem:[#allocation3 + $0x4] sm:$0xf] %v2624
        %v2626 = vld [vmem:[#allocation3 + $0x20] sm:$0xf]
        %v2627 = vsel %vm2622, %v2600, %v2626
        %2628 = vst [vmem:[#allocation3 + $0x20] sm:$0xf] %v2627
        %v2629 = vld [vmem:[#allocation3 + $0x3c] sm:$0xf]
        %v2630 = vsel %vm2622, %v2602, %v2629
        %2631 = vst [vmem:[#allocation3 + $0x3c] sm:$0xf] %v2630
        %v2632 = vld [vmem:[#allocation3 + $0x58] sm:$0xf]
        %v2633 = vsel %vm2622, %v2604, %v2632
        %2634 = vst [vmem:[#allocation3 + $0x58] sm:$0xf] %v2633
        %v2635 = vld [vmem:[#allocation3 + $0x74] sm:$0xf]
        %v2636 = vsel %vm2622, %v2606, %v2635
        %2637 = vst [vmem:[#allocation3 + $0x74] sm:$0xf] %v2636
        %v2638 = vld [vmem:[#allocation3 + $0x90] sm:$0xf]
        %v2639 = vsel %vm2622, %v2608, %v2638
        %2640 = vst [vmem:[#allocation3 + $0x90] sm:$0xf] %v2639
        %v2641 = vld [vmem:[#allocation3 + $0xac] sm:$0xf]
        %v2642 = vsel %vm2622, %v2610, %v2641
        %2643 = vst [vmem:[#allocation3 + $0xac] sm:$0xf] %v2642
        %v2644 = vld [vmem:[#allocation3 + $0xc8] sm:$0xf]
        %v2645 = vsel %vm2622, %v2612, %v2644
        %2646 = vst [vmem:[#allocation3 + $0xc8] sm:$0xf] %v2645
        %vm2647 = vcmask 1040896
        %vm2648 = vmand %vm2647, %vm508
        %v2649 = vld [vmem:[#allocation3 + $0x4] sm:$0x1]
        %v2650 = vsel %vm2648, 0, %v2649
        %2651 = vst [vmem:[#allocation3 + $0x4] sm:$0x1] %v2650
        %v2652 = vld [vmem:[#allocation3 + $0x20] sm:$0x1]
        %v2653 = vsel %vm2648, 0, %v2652
        %2654 = vst [vmem:[#allocation3 + $0x20] sm:$0x1] %v2653
        %v2655 = vld [vmem:[#allocation3 + $0x3c] sm:$0x1]
        %v2656 = vsel %vm2648, 0, %v2655
        %2657 = vst [vmem:[#allocation3 + $0x3c] sm:$0x1] %v2656
        %v2658 = vld [vmem:[#allocation3 + $0x58] sm:$0x1]
        %v2659 = vsel %vm2648, 0, %v2658
        %2660 = vst [vmem:[#allocation3 + $0x58] sm:$0x1] %v2659
        %v2661 = vld [vmem:[#allocation3 + $0x74] sm:$0x1]
        %v2662 = vsel %vm2648, 0, %v2661
        %2663 = vst [vmem:[#allocation3 + $0x74] sm:$0x1] %v2662
        %v2664 = vld [vmem:[#allocation3 + $0x90] sm:$0x1]
        %v2665 = vsel %vm2648, 0, %v2664
        %2666 = vst [vmem:[#allocation3 + $0x90] sm:$0x1] %v2665
        %v2667 = vld [vmem:[#allocation3 + $0xac] sm:$0x1]
        %v2668 = vsel %vm2648, 0, %v2667
        %2669 = vst [vmem:[#allocation3 + $0xac] sm:$0x1] %v2668
        %v2670 = vld [vmem:[#allocation3 + $0xc8] sm:$0x1]
        %v2671 = vsel %vm2648, 0, %v2670
        %2672 = vst [vmem:[#allocation3 + $0xc8] sm:$0x1] %v2671
        %2673 = vst.msk [vmem:[#allocation3 + $0x8] sm:$0xf] %vm2448, %v2353
        %2674 = vst.msk [vmem:[#allocation3 + $0x24] sm:$0xf] %vm2448, %v2354
        %2675 = vst.msk [vmem:[#allocation3 + $0x40] sm:$0xf] %vm2448, %v2355
        %2676 = vst.msk [vmem:[#allocation3 + $0x5c] sm:$0xf] %vm2448, %v2356
        %2677 = vst.msk [vmem:[#allocation3 + $0x78] sm:$0xf] %vm2448, %v2357
        %2678 = vst.msk [vmem:[#allocation3 + $0x94] sm:$0xf] %vm2448, %v2358
        %2679 = vst.msk [vmem:[#allocation3 + $0xb0] sm:$0xf] %vm2448, %v2359
        %2680 = vst.msk [vmem:[#allocation3 + $0xcc] sm:$0xf] %vm2448, %v2360
        %v2681 = vrot.slane %v2591, 4
        %v2682 = vrot.slane %v2594, 5
        %v2683 = vor.u32 %v2681, %v2682
        %v2684 = vrot.slane %v2683, 4
        %2685 = vrot.lane.b32.xlu0 %v2509, 64
        %v2686 = vpop.permute.xlu0 %2685
        %2687 = vrot.lane.b32.xlu0 %v2513, 64
        %v2688 = vpop.permute.xlu0 %2687
        %2689 = vrot.lane.b32.xlu0 %v2517, 64
        %v2690 = vpop.permute.xlu0 %2689
        %2691 = vrot.lane.b32.xlu0 %v2521, 64
        %v2692 = vpop.permute.xlu0 %2691
        %2693 = vrot.lane.b32.xlu0 %v2525, 64
        %v2694 = vpop.permute.xlu0 %2693
        %2695 = vrot.lane.b32.xlu0 %v2529, 64
        %v2696 = vpop.permute.xlu0 %2695
        %2697 = vrot.lane.b32.xlu0 %v2533, 64
        %v2698 = vpop.permute.xlu0 %2697
        %2699 = vrot.lane.b32.xlu0 %v2684, 64
        %v2700 = vpop.permute.xlu0 %2699
        %vm2709 = vmand %vm2621, %vm600
        %v2710 = vld [vmem:[#allocation3 + $0x8] sm:$0xf]
        %v2711 = vsel %vm2709, %v2686, %v2710
        %2712 = vst [vmem:[#allocation3 + $0x8] sm:$0xf] %v2711
        %v2713 = vld [vmem:[#allocation3 + $0x24] sm:$0xf]
        %v2714 = vsel %vm2709, %v2688, %v2713
        %2715 = vst [vmem:[#allocation3 + $0x24] sm:$0xf] %v2714
        %v2716 = vld [vmem:[#allocation3 + $0x40] sm:$0xf]
        %v2717 = vsel %vm2709, %v2690, %v2716
        %2718 = vst [vmem:[#allocation3 + $0x40] sm:$0xf] %v2717
        %v2719 = vld [vmem:[#allocation3 + $0x5c] sm:$0xf]
        %v2720 = vsel %vm2709, %v2692, %v2719
        %2721 = vst [vmem:[#allocation3 + $0x5c] sm:$0xf] %v2720
        %v2722 = vld [vmem:[#allocation3 + $0x78] sm:$0xf]
        %v2723 = vsel %vm2709, %v2694, %v2722
        %2724 = vst [vmem:[#allocation3 + $0x78] sm:$0xf] %v2723
        %v2725 = vld [vmem:[#allocation3 + $0x94] sm:$0xf]
        %v2726 = vsel %vm2709, %v2696, %v2725
        %2727 = vst [vmem:[#allocation3 + $0x94] sm:$0xf] %v2726
        %v2728 = vld [vmem:[#allocation3 + $0xb0] sm:$0xf]
        %v2729 = vsel %vm2709, %v2698, %v2728
        %2730 = vst [vmem:[#allocation3 + $0xb0] sm:$0xf] %v2729
        %v2731 = vld [vmem:[#allocation3 + $0xcc] sm:$0xf]
        %v2732 = vsel %vm2709, %v2700, %v2731
        %2733 = vst [vmem:[#allocation3 + $0xcc] sm:$0xf] %v2732
        %vm2734 = vcmask 1043971
        %vm2735 = vmand %vm2734, %vm626
        %v2736 = vld [vmem:[#allocation3 + $0x8] sm:$0x8]
        %v2737 = vsel %vm2735, 0, %v2736
        %2738 = vst [vmem:[#allocation3 + $0x8] sm:$0x8] %v2737
        %v2739 = vld [vmem:[#allocation3 + $0x24] sm:$0x8]
        %v2740 = vsel %vm2735, 0, %v2739
        %2741 = vst [vmem:[#allocation3 + $0x24] sm:$0x8] %v2740
        %v2742 = vld [vmem:[#allocation3 + $0x40] sm:$0x8]
        %v2743 = vsel %vm2735, 0, %v2742
        %2744 = vst [vmem:[#allocation3 + $0x40] sm:$0x8] %v2743
        %v2745 = vld [vmem:[#allocation3 + $0x5c] sm:$0x8]
        %v2746 = vsel %vm2735, 0, %v2745
        %2747 = vst [vmem:[#allocation3 + $0x5c] sm:$0x8] %v2746
        %v2748 = vld [vmem:[#allocation3 + $0x78] sm:$0x8]
        %v2749 = vsel %vm2735, 0, %v2748
        %2750 = vst [vmem:[#allocation3 + $0x78] sm:$0x8] %v2749
        %v2751 = vld [vmem:[#allocation3 + $0x94] sm:$0x8]
        %v2752 = vsel %vm2735, 0, %v2751
        %2753 = vst [vmem:[#allocation3 + $0x94] sm:$0x8] %v2752
        %v2754 = vld [vmem:[#allocation3 + $0xb0] sm:$0x8]
        %v2755 = vsel %vm2735, 0, %v2754
        %2756 = vst [vmem:[#allocation3 + $0xb0] sm:$0x8] %v2755
        %v2757 = vld [vmem:[#allocation3 + $0xcc] sm:$0x8]
        %v2758 = vsel %vm2735, 0, %v2757
        %2759 = vst [vmem:[#allocation3 + $0xcc] sm:$0x8] %v2758
        %v2761 = vld [vmem:[#allocation3 + $0xc] sm:$0xf]
        %v2762 = vsel %vm2426, %v2382, %v2761
        %2763 = vst [vmem:[#allocation3 + $0xc] sm:$0xf] %v2762
        %v2764 = vld [vmem:[#allocation3 + $0x28] sm:$0xf]
        %v2765 = vsel %vm2426, %v2389, %v2764
        %2766 = vst [vmem:[#allocation3 + $0x28] sm:$0xf] %v2765
        %v2767 = vld [vmem:[#allocation3 + $0x44] sm:$0xf]
        %v2768 = vsel %vm2426, %v2396, %v2767
        %2769 = vst [vmem:[#allocation3 + $0x44] sm:$0xf] %v2768
        %v2770 = vld [vmem:[#allocation3 + $0x60] sm:$0xf]
        %v2771 = vsel %vm2426, %v2403, %v2770
        %2772 = vst [vmem:[#allocation3 + $0x60] sm:$0xf] %v2771
        %v2773 = vld [vmem:[#allocation3 + $0x7c] sm:$0xf]
        %v2774 = vsel %vm2426, %v2410, %v2773
        %2775 = vst [vmem:[#allocation3 + $0x7c] sm:$0xf] %v2774
        %v2776 = vld [vmem:[#allocation3 + $0x98] sm:$0xf]
        %v2777 = vsel %vm2426, %v2417, %v2776
        %2778 = vst [vmem:[#allocation3 + $0x98] sm:$0xf] %v2777
        %v2779 = vld [vmem:[#allocation3 + $0xb4] sm:$0xf]
        %v2780 = vsel %vm2426, %v2596, %v2779
        %2781 = vst [vmem:[#allocation3 + $0xb4] sm:$0xf] %v2780
        %2782 = vst.msk [vmem:[%s879 + $0xc] sm:$0xf] %vm2448, 0
        %v2783 = vld [vmem:[#allocation3 + $0xc] sm:$0x1]
        %v2784 = vsel %vm2451, 0, %v2783
        %2785 = vst [vmem:[#allocation3 + $0xc] sm:$0x1] %v2784
        %v2786 = vld [vmem:[#allocation3 + $0x28] sm:$0x1]
        %v2787 = vsel %vm2451, 0, %v2786
        %2788 = vst [vmem:[#allocation3 + $0x28] sm:$0x1] %v2787
        %v2789 = vld [vmem:[#allocation3 + $0x44] sm:$0x1]
        %v2790 = vsel %vm2451, 0, %v2789
        %2791 = vst [vmem:[#allocation3 + $0x44] sm:$0x1] %v2790
        %v2792 = vld [vmem:[#allocation3 + $0x60] sm:$0x1]
        %v2793 = vsel %vm2451, 0, %v2792
        %2794 = vst [vmem:[#allocation3 + $0x60] sm:$0x1] %v2793
        %v2795 = vld [vmem:[#allocation3 + $0x7c] sm:$0x1]
        %v2796 = vsel %vm2451, 0, %v2795
        %2797 = vst [vmem:[#allocation3 + $0x7c] sm:$0x1] %v2796
        %v2798 = vld [vmem:[#allocation3 + $0x98] sm:$0x1]
        %v2799 = vsel %vm2451, 0, %v2798
        %2800 = vst [vmem:[#allocation3 + $0x98] sm:$0x1] %v2799
        %v2801 = vld [vmem:[#allocation3 + $0xb4] sm:$0x1]
        %v2802 = vsel %vm2451, 0, %v2801
        %2803 = vst [vmem:[#allocation3 + $0xb4] sm:$0x1] %v2802
        %v2804 = vld [vmem:[#allocation3 + $0xd0] sm:$0x1]
        %v2805 = vsel %vm2451, 0, %v2804
        %2806 = vst [vmem:[#allocation3 + $0xd0] sm:$0x1] %v2805
        %2807 = vrot.lane.b32.xlu0 %v2360, 64
        %v2808 = vpop.permute.xlu0 %2807
        %2810 = vst.msk [vmem:[#allocation3 + $0xc] sm:$0xf] %vm2497, %v2479
        %2811 = vst.msk [vmem:[#allocation3 + $0x28] sm:$0xf] %vm2497, %v2481
        %2812 = vst.msk [vmem:[#allocation3 + $0x44] sm:$0xf] %vm2497, %v2483
        %2813 = vst.msk [vmem:[#allocation3 + $0x60] sm:$0xf] %vm2497, %v2485
        %2814 = vst.msk [vmem:[#allocation3 + $0x7c] sm:$0xf] %vm2497, %v2487
        %2815 = vst.msk [vmem:[#allocation3 + $0x98] sm:$0xf] %vm2497, %v2489
        %2816 = vst.msk [vmem:[#allocation3 + $0xb4] sm:$0xf] %vm2497, %v2808
        %2817 = vst.msk [vmem:[%s879 + $0xc] sm:$0xf] %vm2497, 0
        %v2819 = vld [vmem:[#allocation3 + $0x10] sm:$0xf]
        %v2820 = vsel %vm2541, %v2513, %v2819
        %2821 = vst [vmem:[#allocation3 + $0x10] sm:$0xf] %v2820
        %v2822 = vld [vmem:[#allocation3 + $0x2c] sm:$0xf]
        %v2823 = vsel %vm2541, %v2517, %v2822
        %2824 = vst [vmem:[#allocation3 + $0x2c] sm:$0xf] %v2823
        %v2825 = vld [vmem:[#allocation3 + $0x48] sm:$0xf]
        %v2826 = vsel %vm2541, %v2521, %v2825
        %2827 = vst [vmem:[#allocation3 + $0x48] sm:$0xf] %v2826
        %v2828 = vld [vmem:[#allocation3 + $0x64] sm:$0xf]
        %v2829 = vsel %vm2541, %v2525, %v2828
        %2830 = vst [vmem:[#allocation3 + $0x64] sm:$0xf] %v2829
        %v2831 = vld [vmem:[#allocation3 + $0x80] sm:$0xf]
        %v2832 = vsel %vm2541, %v2529, %v2831
        %2833 = vst [vmem:[#allocation3 + $0x80] sm:$0xf] %v2832
        %v2834 = vld [vmem:[#allocation3 + $0x9c] sm:$0xf]
        %v2835 = vsel %vm2541, %v2533, %v2834
        %2836 = vst [vmem:[#allocation3 + $0x9c] sm:$0xf] %v2835
        %v2837 = vld [vmem:[#allocation3 + $0xb8] sm:$0xf]
        %v2838 = vsel %vm2541, %v2684, %v2837
        %2839 = vst [vmem:[#allocation3 + $0xb8] sm:$0xf] %v2838
        %2840 = vst.msk [vmem:[%s879 + $0x10] sm:$0xf] %vm2448, 0
        %v2841 = vld [vmem:[#allocation3 + $0x10] sm:$0x8]
        %v2842 = vsel %vm2565, 0, %v2841
        %2843 = vst [vmem:[#allocation3 + $0x10] sm:$0x8] %v2842
        %v2844 = vld [vmem:[#allocation3 + $0x2c] sm:$0x8]
        %v2845 = vsel %vm2565, 0, %v2844
        %2846 = vst [vmem:[#allocation3 + $0x2c] sm:$0x8] %v2845
        %v2847 = vld [vmem:[#allocation3 + $0x48] sm:$0x8]
        %v2848 = vsel %vm2565, 0, %v2847
        %2849 = vst [vmem:[#allocation3 + $0x48] sm:$0x8] %v2848
        %v2850 = vld [vmem:[#allocation3 + $0x64] sm:$0x8]
        %v2851 = vsel %vm2565, 0, %v2850
        %2852 = vst [vmem:[#allocation3 + $0x64] sm:$0x8] %v2851
        %v2853 = vld [vmem:[#allocation3 + $0x80] sm:$0x8]
        %v2854 = vsel %vm2565, 0, %v2853
        %2855 = vst [vmem:[#allocation3 + $0x80] sm:$0x8] %v2854
        %v2856 = vld [vmem:[#allocation3 + $0x9c] sm:$0x8]
        %v2857 = vsel %vm2565, 0, %v2856
        %2858 = vst [vmem:[#allocation3 + $0x9c] sm:$0x8] %v2857
        %v2859 = vld [vmem:[#allocation3 + $0xb8] sm:$0x8]
        %v2860 = vsel %vm2565, 0, %v2859
        %2861 = vst [vmem:[#allocation3 + $0xb8] sm:$0x8] %v2860
        %v2862 = vld [vmem:[#allocation3 + $0xd4] sm:$0x8]
        %v2863 = vsel %vm2565, 0, %v2862
        %2864 = vst [vmem:[#allocation3 + $0xd4] sm:$0x8] %v2863
        %v2865 = vld [vmem:[#allocation3] sm:$0xff]
        %v2866 = vld [vmem:[#allocation3 + $0x8] sm:$0xff]
        %v2867 = vld [vmem:[#allocation3 + $0x10] sm:$0xff]
        %v2868 = vld [vmem:[#allocation3 + $0x18] sm:$0xf]
        %v2869 = vld [vmem:[#allocation3 + $0x1c] sm:$0xff]
        %v2870 = vld [vmem:[#allocation3 + $0x24] sm:$0xff]
        %v2871 = vld [vmem:[#allocation3 + $0x2c] sm:$0xff]
        %v2872 = vld [vmem:[#allocation3 + $0x34] sm:$0xf]
        %v2873 = vld [vmem:[#allocation3 + $0x38] sm:$0xff]
        %v2874 = vld [vmem:[#allocation3 + $0x40] sm:$0xff]
        %v2875 = vld [vmem:[#allocation3 + $0x48] sm:$0xff]
        %v2876 = vld [vmem:[#allocation3 + $0x50] sm:$0xf]
        %v2877 = vld [vmem:[#allocation3 + $0x54] sm:$0xff]
        %v2878 = vld [vmem:[#allocation3 + $0x5c] sm:$0xff]
        %v2879 = vld [vmem:[#allocation3 + $0x64] sm:$0xff]
        %v2880 = vld [vmem:[#allocation3 + $0x6c] sm:$0xf]
        %v2881 = vld [vmem:[#allocation3 + $0x70] sm:$0xff]
        %v2882 = vld [vmem:[#allocation3 + $0x78] sm:$0xff]
        %v2883 = vld [vmem:[#allocation3 + $0x80] sm:$0xff]
        %v2884 = vld [vmem:[#allocation3 + $0x88] sm:$0xf]
        %v2885 = vld [vmem:[#allocation3 + $0x8c] sm:$0xff]
        %v2886 = vld [vmem:[#allocation3 + $0x94] sm:$0xff]
        %v2887 = vld [vmem:[#allocation3 + $0x9c] sm:$0xff]
        %v2888 = vld [vmem:[#allocation3 + $0xa4] sm:$0xf]
        %v2889 = vld [vmem:[#allocation3 + $0xa8] sm:$0xff]
        %v2890 = vld [vmem:[#allocation3 + $0xb0] sm:$0xff]
        %v2891 = vld [vmem:[#allocation3 + $0xb8] sm:$0xff]
        %v2892 = vld [vmem:[#allocation3 + $0xc0] sm:$0xf]
        %v2893 = vld [vmem:[#allocation3 + $0xc4] sm:$0xff]
        %v2894 = vld [vmem:[#allocation3 + $0xcc] sm:$0xff]
        %v2895 = vld [vmem:[#allocation3 + $0xd4] sm:$0xff]
        %v2896 = vld [vmem:[#allocation3 + $0xdc] sm:$0xf]
        %v2897 = vld [vmem:[%s8] sm:$0xf]
        %v2898 = vld [vmem:[%s8 + $0x4] sm:$0xf]
        %v2899 = vld [vmem:[%s8 + $0x8] sm:$0xf]
        %v2900 = vld [vmem:[%s8 + $0xc] sm:$0xf]
        %v2901 = vld [vmem:[%s8 + $0x10] sm:$0xf]
        %v2902 = vld [vmem:[%s8 + $0x14] sm:$0xf]
        %v2903 = vld [vmem:[%s8 + $0x18] sm:$0xf]
        %v2904 = vld [vmem:[%s8 + $0x1c] sm:$0xf]
        %v2905 = vld [vmem:[%s8 + $0x20] sm:$0xf]
        %v2906 = vld [vmem:[%s8 + $0x24] sm:$0xf]
        %v2907 = vld [vmem:[%s8 + $0x28] sm:$0xf]
        %v2908 = vld [vmem:[%s8 + $0x2c] sm:$0xf]
        %v2909 = vld [vmem:[%s8 + $0x30] sm:$0xf]
        %v2910 = vld [vmem:[%s8 + $0x34] sm:$0xf]
        %v2911 = vld [vmem:[%s8 + $0x38] sm:$0xf]
        %v2912 = vld [vmem:[%s8 + $0x3c] sm:$0xf]
        %v2913 = vld [vmem:[%s8 + $0x40] sm:$0xf]
        %v2914 = vld [vmem:[%s8 + $0x44] sm:$0xf]
        %v2915 = vld [vmem:[%s8 + $0x48] sm:$0xf]
        %v2916 = vld [vmem:[%s8 + $0x4c] sm:$0xf]
        %v2917 = vld [vmem:[%s8 + $0x50] sm:$0xf]
        %v2918 = vld [vmem:[%s8 + $0x54] sm:$0xf]
        %v2919 = vld [vmem:[%s8 + $0x58] sm:$0xf]
        %v2920 = vld [vmem:[%s8 + $0x5c] sm:$0xf]
        %v2921 = vld [vmem:[%s8 + $0x60] sm:$0xf]
        %v2922 = vld [vmem:[%s8 + $0x64] sm:$0xf]
        %v2923 = vld [vmem:[%s8 + $0x68] sm:$0xf]
        %v2924 = vld [vmem:[%s8 + $0x6c] sm:$0xf]
        %v2925 = vld [vmem:[%s8 + $0x70] sm:$0xf]
        %v2926 = vld [vmem:[%s8 + $0x74] sm:$0xf]
        %v2927 = vld [vmem:[%s8 + $0x78] sm:$0xf]
        %v2928 = vld [vmem:[%s8 + $0x7c] sm:$0xf]
        %v2929 = vld [vmem:[%s8 + $0x80] sm:$0xf]
        %v2930 = vld [vmem:[%s8 + $0x84] sm:$0xf]
        %v2931 = vld [vmem:[%s8 + $0x88] sm:$0xf]
        %v2932 = vld [vmem:[%s8 + $0x8c] sm:$0xf]
        %v2933 = vld [vmem:[%s8 + $0x90] sm:$0xf]
        %v2934 = vld [vmem:[%s8 + $0x94] sm:$0xf]
        %v2935 = vld [vmem:[%s8 + $0x98] sm:$0xf]
        %v2936 = vld [vmem:[%s8 + $0x9c] sm:$0xf]
        %v2937 = vld [vmem:[%s8 + $0xa0] sm:$0xf]
        %v2938 = vld [vmem:[%s8 + $0xa4] sm:$0xf]
        %v2939 = vld [vmem:[%s8 + $0xa8] sm:$0xf]
        %v2940 = vld [vmem:[%s8 + $0xac] sm:$0xf]
        %v2941 = vld [vmem:[%s8 + $0xb0] sm:$0xf]
        %v2942 = vld [vmem:[%s8 + $0xb4] sm:$0xf]
        %v2943 = vld [vmem:[%s8 + $0xb8] sm:$0xf]
        %v2944 = vld [vmem:[%s8 + $0xbc] sm:$0xf]
        %v2945 = vld [vmem:[%s8 + $0xc0] sm:$0xf]
        %v2946 = vld [vmem:[%s8 + $0xc4] sm:$0xf]
        %v2947 = vld [vmem:[%s8 + $0xc8] sm:$0xf]
        %v2948 = vld [vmem:[%s8 + $0xcc] sm:$0xf]
        %v2949 = vld [vmem:[%s8 + $0xd0] sm:$0xf]
        %v2950 = vld [vmem:[%s8 + $0xd4] sm:$0xf]
        %v2951 = vld [vmem:[%s8 + $0xd8] sm:$0xf]
        %v2952 = vld [vmem:[%s8 + $0xdc] sm:$0xf]
        %v2953 = vld [vmem:[%s8 + $0xe0] sm:$0xf]
        %v2954 = vld [vmem:[%s8 + $0xe4] sm:$0xf]
        %v2955 = vld [vmem:[%s8 + $0xe8] sm:$0xf]
        %v2956 = vld [vmem:[%s8 + $0xec] sm:$0xf]
        %v2957 = vld [vmem:[%s8 + $0xf0] sm:$0xf]
        %v2958 = vld [vmem:[%s8 + $0xf4] sm:$0xf]
        %v2959 = vld [vmem:[%s8 + $0xf8] sm:$0xf]
        %v2960 = vld [vmem:[%s8 + $0xfc] sm:$0xf]
        %v2961 = vld [vmem:[%s8 + $0x100] sm:$0xf]
        %v2962 = vld [vmem:[%s8 + $0x104] sm:$0xf]
        %v2963 = vld [vmem:[%s8 + $0x108] sm:$0xf]
        %v2964 = vld [vmem:[%s8 + $0x10c] sm:$0xf]
        %v2965 = vld [vmem:[%s8 + $0x110] sm:$0xf]
        %v2966 = vld [vmem:[%s8 + $0x114] sm:$0xf]
        %v2967 = vld [vmem:[%s8 + $0x118] sm:$0xf]
        %v2968 = vld [vmem:[%s8 + $0x11c] sm:$0xf]
        %v2969 = vld [vmem:[%s8 + $0x120] sm:$0xf]
        %v2970 = vld [vmem:[%s8 + $0x124] sm:$0xf]
        %v2971 = vld [vmem:[%s8 + $0x128] sm:$0xf]
        %v2972 = vld [vmem:[%s8 + $0x12c] sm:$0xf]
        %v2973 = vld [vmem:[%s8 + $0x130] sm:$0xf]
        %v2974 = vld [vmem:[%s8 + $0x134] sm:$0xf]
        %v2975 = vld [vmem:[%s8 + $0x138] sm:$0xf]
        %v2976 = vld [vmem:[%s8 + $0x13c] sm:$0xf]
        %v2977 = vld [vmem:[%s8 + $0x140] sm:$0xf]
        %v2978 = vld [vmem:[%s8 + $0x144] sm:$0xf]
        %v2979 = vld [vmem:[%s8 + $0x148] sm:$0xf]
        %v2980 = vld [vmem:[%s8 + $0x14c] sm:$0xf]
        %v2981 = vld [vmem:[%s8 + $0x150] sm:$0xf]
        %v2982 = vld [vmem:[%s8 + $0x154] sm:$0xf]
        %v2983 = vld [vmem:[%s8 + $0x158] sm:$0xf]
        %v2984 = vld [vmem:[%s8 + $0x15c] sm:$0xf]
        %v2985 = vld [vmem:[%s8 + $0x160] sm:$0xf]
        %v2986 = vld [vmem:[%s8 + $0x164] sm:$0xf]
        %v2987 = vld [vmem:[%s8 + $0x168] sm:$0xf]
        %v2988 = vld [vmem:[%s8 + $0x16c] sm:$0xf]
        %v2989 = vld [vmem:[%s8 + $0x170] sm:$0xf]
        %v2990 = vld [vmem:[%s8 + $0x174] sm:$0xf]
        %v2991 = vld [vmem:[%s8 + $0x178] sm:$0xf]
        %v2992 = vld [vmem:[%s8 + $0x17c] sm:$0xf]
        %v2993 = vld [vmem:[%s8 + $0x180] sm:$0xf]
        %v2994 = vld [vmem:[%s8 + $0x184] sm:$0xf]
        %v2995 = vld [vmem:[%s8 + $0x188] sm:$0xf]
        %v2996 = vld [vmem:[%s8 + $0x18c] sm:$0xf]
        %v2997 = vld [vmem:[%s8 + $0x190] sm:$0xf]
        %v2998 = vld [vmem:[%s8 + $0x194] sm:$0xf]
        %v2999 = vld [vmem:[%s8 + $0x198] sm:$0xf]
        %v3000 = vld [vmem:[%s8 + $0x19c] sm:$0xf]
        %v3001 = vld [vmem:[%s8 + $0x1a0] sm:$0xf]
        %v3002 = vld [vmem:[%s8 + $0x1a4] sm:$0xf]
        %v3003 = vld [vmem:[%s8 + $0x1a8] sm:$0xf]
        %v3004 = vld [vmem:[%s8 + $0x1ac] sm:$0xf]
        %v3005 = vld [vmem:[%s9] sm:$0x1]
        %v3007 = vlaneseq
        %v3008 = vshrl.u32 %v3007, 7
        %v3009 = vsub.s32 0, %v3008
        %v3010 = vrot.slane %v3005, %v3009
        %v3044 = vunpack.c.l.b16 %v2865
        %v3045 = vunpack.c.h.b16 %v2865
        %v3046 = vunpack.c.l.b16 %v2866
        %v3047 = vunpack.c.h.b16 %v2866
        %v3048 = vunpack.c.l.b16 %v2867
        %v3049 = vunpack.c.h.b16 %v2867
        %v3050 = vunpack.c.l.b16 %v2868
        %v3051 = vunpack.c.l.b16 %v2869
        %v3052 = vunpack.c.h.b16 %v2869
        %v3053 = vunpack.c.l.b16 %v2870
        %v3054 = vunpack.c.h.b16 %v2870
        %v3055 = vunpack.c.l.b16 %v2871
        %v3056 = vunpack.c.h.b16 %v2871
        %v3057 = vunpack.c.l.b16 %v2872
        %v3058 = vunpack.c.l.b16 %v2873
        %v3059 = vunpack.c.h.b16 %v2873
        %v3060 = vunpack.c.l.b16 %v2874
        %v3061 = vunpack.c.h.b16 %v2874
        %v3062 = vunpack.c.l.b16 %v2875
        %v3063 = vunpack.c.h.b16 %v2875
        %v3064 = vunpack.c.l.b16 %v2876
        %v3065 = vunpack.c.l.b16 %v2877
        %v3066 = vunpack.c.h.b16 %v2877
        %v3067 = vunpack.c.l.b16 %v2878
        %v3068 = vunpack.c.h.b16 %v2878
        %v3069 = vunpack.c.l.b16 %v2879
        %v3070 = vunpack.c.h.b16 %v2879
        %v3071 = vunpack.c.l.b16 %v2880
        %v3072 = vunpack.c.l.b16 %v2881
        %v3073 = vunpack.c.h.b16 %v2881
        %v3074 = vunpack.c.l.b16 %v2882
        %v3075 = vunpack.c.h.b16 %v2882
        %v3076 = vunpack.c.l.b16 %v2883
        %v3077 = vunpack.c.h.b16 %v2883
        %v3078 = vunpack.c.l.b16 %v2884
        %v3079 = vunpack.c.l.b16 %v2885
        %v3080 = vunpack.c.h.b16 %v2885
        %v3081 = vunpack.c.l.b16 %v2886
        %v3082 = vunpack.c.h.b16 %v2886
        %v3083 = vunpack.c.l.b16 %v2887
        %v3084 = vunpack.c.h.b16 %v2887
        %v3085 = vunpack.c.l.b16 %v2888
        %v3086 = vunpack.c.l.b16 %v2889
        %v3087 = vunpack.c.h.b16 %v2889
        %v3088 = vunpack.c.l.b16 %v2890
        %v3089 = vunpack.c.h.b16 %v2890
        %v3090 = vunpack.c.l.b16 %v2891
        %v3091 = vunpack.c.h.b16 %v2891
        %v3092 = vunpack.c.l.b16 %v2892
        %v3093 = vunpack.c.l.b16 %v2893
        %v3094 = vunpack.c.h.b16 %v2893
        %v3095 = vunpack.c.l.b16 %v2894
        %v3096 = vunpack.c.h.b16 %v2894
        %v3097 = vunpack.c.l.b16 %v2895
        %v3098 = vunpack.c.h.b16 %v2895
        %v3099 = vunpack.c.l.b16 %v2896
        %v3100 = vpack.c.b16 %v3051, %v3044
        %v3101 = vpack.c.b16 %v3052, %v3045
        %v3102 = vpack.c.b16 %v3053, %v3046
        %v3103 = vpack.c.b16 %v3054, %v3047
        %v3104 = vpack.c.b16 %v3055, %v3048
        %v3105 = vpack.c.b16 %v3056, %v3049
        %v3106 = vpack.c.b16 %v3057, %v3050
        %v3107 = vpack.c.b16 %v3065, %v3058
        %v3108 = vpack.c.b16 %v3066, %v3059
        %v3109 = vpack.c.b16 %v3067, %v3060
        %v3110 = vpack.c.b16 %v3068, %v3061
        %v3111 = vpack.c.b16 %v3069, %v3062
        %v3112 = vpack.c.b16 %v3070, %v3063
        %v3113 = vpack.c.b16 %v3071, %v3064
        %v3114 = vpack.c.b16 %v3079, %v3072
        %v3115 = vpack.c.b16 %v3080, %v3073
        %v3116 = vpack.c.b16 %v3081, %v3074
        %v3117 = vpack.c.b16 %v3082, %v3075
        %v3118 = vpack.c.b16 %v3083, %v3076
        %v3119 = vpack.c.b16 %v3084, %v3077
        %v3120 = vpack.c.b16 %v3085, %v3078
        %v3121 = vpack.c.b16 %v3093, %v3086
        %v3122 = vpack.c.b16 %v3094, %v3087
        %v3123 = vpack.c.b16 %v3095, %v3088
        %v3124 = vpack.c.b16 %v3096, %v3089
        %v3125 = vpack.c.b16 %v3097, %v3090
        %v3126 = vpack.c.b16 %v3098, %v3091
        %v3127 = vpack.c.b16 %v3099, %v3092
        %v3260 = vunpack.c.l.b16 %v2897
        %v3261 = vunpack.c.l.b16 %v2898
        %v3262 = vunpack.c.l.b16 %v2899
        %v3263 = vunpack.c.l.b16 %v2900
        %v3264 = vunpack.c.l.b16 %v2901
        %v3265 = vunpack.c.l.b16 %v2902
        %v3266 = vunpack.c.l.b16 %v2903
        %v3267 = vunpack.c.l.b16 %v2904
        %v3268 = vunpack.c.l.b16 %v2905
        %v3269 = vunpack.c.l.b16 %v2906
        %v3270 = vunpack.c.l.b16 %v2907
        %v3271 = vunpack.c.l.b16 %v2908
        %v3272 = vunpack.c.l.b16 %v2909
        %v3273 = vunpack.c.l.b16 %v2910
        %v3274 = vunpack.c.l.b16 %v2911
        %v3275 = vunpack.c.l.b16 %v2912
        %v3276 = vunpack.c.l.b16 %v2913
        %v3277 = vunpack.c.l.b16 %v2914
        %v3278 = vunpack.c.l.b16 %v2915
        %v3279 = vunpack.c.l.b16 %v2916
        %v3280 = vunpack.c.l.b16 %v2917
        %v3281 = vunpack.c.l.b16 %v2918
        %v3282 = vunpack.c.l.b16 %v2919
        %v3283 = vunpack.c.l.b16 %v2920
        %v3284 = vunpack.c.l.b16 %v2921
        %v3285 = vunpack.c.l.b16 %v2922
        %v3286 = vunpack.c.l.b16 %v2923
        %v3287 = vunpack.c.l.b16 %v2924
        %v3288 = vunpack.c.l.b16 %v2925
        %v3289 = vunpack.c.l.b16 %v2926
        %v3290 = vunpack.c.l.b16 %v2927
        %v3291 = vunpack.c.l.b16 %v2928
        %v3292 = vunpack.c.l.b16 %v2929
        %v3293 = vunpack.c.l.b16 %v2930
        %v3294 = vunpack.c.l.b16 %v2931
        %v3295 = vunpack.c.l.b16 %v2932
        %v3296 = vunpack.c.l.b16 %v2933
        %v3297 = vunpack.c.l.b16 %v2934
        %v3298 = vunpack.c.l.b16 %v2935
        %v3299 = vunpack.c.l.b16 %v2936
        %v3300 = vunpack.c.l.b16 %v2937
        %v3301 = vunpack.c.l.b16 %v2938
        %v3302 = vunpack.c.l.b16 %v2939
        %v3303 = vunpack.c.l.b16 %v2940
        %v3304 = vunpack.c.l.b16 %v2941
        %v3305 = vunpack.c.l.b16 %v2942
        %v3306 = vunpack.c.l.b16 %v2943
        %v3307 = vunpack.c.l.b16 %v2944
        %v3308 = vunpack.c.l.b16 %v2945
        %v3309 = vunpack.c.l.b16 %v2946
        %v3310 = vunpack.c.l.b16 %v2947
        %v3311 = vunpack.c.l.b16 %v2948
        %v3312 = vunpack.c.l.b16 %v2949
        %v3313 = vunpack.c.l.b16 %v2950
        %v3314 = vunpack.c.l.b16 %v2951
        %v3315 = vunpack.c.l.b16 %v2952
        %v3316 = vunpack.c.l.b16 %v2953
        %v3317 = vunpack.c.l.b16 %v2954
        %v3318 = vunpack.c.l.b16 %v2955
        %v3319 = vunpack.c.l.b16 %v2956
        %v3320 = vunpack.c.l.b16 %v2957
        %v3321 = vunpack.c.l.b16 %v2958
        %v3322 = vunpack.c.l.b16 %v2959
        %v3323 = vunpack.c.l.b16 %v2960
        %v3324 = vunpack.c.l.b16 %v2961
        %v3325 = vunpack.c.l.b16 %v2962
        %v3326 = vunpack.c.l.b16 %v2963
        %v3327 = vunpack.c.l.b16 %v2964
        %v3328 = vunpack.c.l.b16 %v2965
        %v3329 = vunpack.c.l.b16 %v2966
        %v3330 = vunpack.c.l.b16 %v2967
        %v3331 = vunpack.c.l.b16 %v2968
        %v3332 = vunpack.c.l.b16 %v2969
        %v3333 = vunpack.c.l.b16 %v2970
        %v3334 = vunpack.c.l.b16 %v2971
        %v3335 = vunpack.c.l.b16 %v2972
        %v3336 = vunpack.c.l.b16 %v2973
        %v3337 = vunpack.c.l.b16 %v2974
        %v3338 = vunpack.c.l.b16 %v2975
        %v3339 = vunpack.c.l.b16 %v2976
        %v3340 = vunpack.c.l.b16 %v2977
        %v3341 = vunpack.c.l.b16 %v2978
        %v3342 = vunpack.c.l.b16 %v2979
        %v3343 = vunpack.c.l.b16 %v2980
        %v3344 = vunpack.c.l.b16 %v2981
        %v3345 = vunpack.c.l.b16 %v2982
        %v3346 = vunpack.c.l.b16 %v2983
        %v3347 = vunpack.c.l.b16 %v2984
        %v3348 = vunpack.c.l.b16 %v2985
        %v3349 = vunpack.c.l.b16 %v2986
        %v3350 = vunpack.c.l.b16 %v2987
        %v3351 = vunpack.c.l.b16 %v2988
        %v3352 = vunpack.c.l.b16 %v2989
        %v3353 = vunpack.c.l.b16 %v2990
        %v3354 = vunpack.c.l.b16 %v2991
        %v3355 = vunpack.c.l.b16 %v2992
        %v3356 = vunpack.c.l.b16 %v2993
        %v3357 = vunpack.c.l.b16 %v2994
        %v3358 = vunpack.c.l.b16 %v2995
        %v3359 = vunpack.c.l.b16 %v2996
        %v3360 = vunpack.c.l.b16 %v2997
        %v3361 = vunpack.c.l.b16 %v2998
        %v3362 = vunpack.c.l.b16 %v2999
        %v3363 = vunpack.c.l.b16 %v3000
        %v3364 = vunpack.c.l.b16 %v3001
        %v3365 = vunpack.c.l.b16 %v3002
        %v3366 = vunpack.c.l.b16 %v3003
        %v3367 = vunpack.c.l.b16 %v3004
        %v3368 = vpack.c.b16 %v3261, %v3260
        %v3369 = vpack.c.b16 %v3263, %v3262
        %v3370 = vpack.c.b16 %v3265, %v3264
        %v3371 = vpack.c.b16 %v3267, %v3266
        %v3372 = vpack.c.b16 %v3269, %v3268
        %v3373 = vpack.c.b16 %v3271, %v3270
        %v3374 = vpack.c.b16 %v3273, %v3272
        %v3375 = vpack.c.b16 %v3275, %v3274
        %v3376 = vpack.c.b16 %v3277, %v3276
        %v3377 = vpack.c.b16 %v3279, %v3278
        %v3378 = vpack.c.b16 %v3281, %v3280
        %v3379 = vpack.c.b16 %v3283, %v3282
        %v3380 = vpack.c.b16 %v3285, %v3284
        %v3381 = vpack.c.b16 %v3287, %v3286
        %v3382 = vpack.c.b16 %v3289, %v3288
        %v3383 = vpack.c.b16 %v3291, %v3290
        %v3384 = vpack.c.b16 %v3293, %v3292
        %v3385 = vpack.c.b16 %v3295, %v3294
        %v3386 = vpack.c.b16 %v3297, %v3296
        %v3387 = vpack.c.b16 %v3299, %v3298
        %v3388 = vpack.c.b16 %v3301, %v3300
        %v3389 = vpack.c.b16 %v3303, %v3302
        %v3390 = vpack.c.b16 %v3305, %v3304
        %v3391 = vpack.c.b16 %v3307, %v3306
        %v3392 = vpack.c.b16 %v3309, %v3308
        %v3393 = vpack.c.b16 %v3311, %v3310
        %v3394 = vpack.c.b16 %v3313, %v3312
        %v3395 = vpack.c.b16 %v3315, %v3314
        %v3396 = vpack.c.b16 %v3317, %v3316
        %v3397 = vpack.c.b16 %v3319, %v3318
        %v3398 = vpack.c.b16 %v3321, %v3320
        %v3399 = vpack.c.b16 %v3323, %v3322
        %v3400 = vpack.c.b16 %v3325, %v3324
        %v3401 = vpack.c.b16 %v3327, %v3326
        %v3402 = vpack.c.b16 %v3329, %v3328
        %v3403 = vpack.c.b16 %v3331, %v3330
        %v3404 = vpack.c.b16 %v3333, %v3332
        %v3405 = vpack.c.b16 %v3335, %v3334
        %v3406 = vpack.c.b16 %v3337, %v3336
        %v3407 = vpack.c.b16 %v3339, %v3338
        %v3408 = vpack.c.b16 %v3341, %v3340
        %v3409 = vpack.c.b16 %v3343, %v3342
        %v3410 = vpack.c.b16 %v3345, %v3344
        %v3411 = vpack.c.b16 %v3347, %v3346
        %v3412 = vpack.c.b16 %v3349, %v3348
        %v3413 = vpack.c.b16 %v3351, %v3350
        %v3414 = vpack.c.b16 %v3353, %v3352
        %v3415 = vpack.c.b16 %v3355, %v3354
        %v3416 = vpack.c.b16 %v3357, %v3356
        %v3417 = vpack.c.b16 %v3359, %v3358
        %v3418 = vpack.c.b16 %v3361, %v3360
        %v3419 = vpack.c.b16 %v3363, %v3362
        %v3420 = vpack.c.b16 %v3365, %v3364
        %v3421 = vpack.c.b16 %v3367, %v3366
        %vm3476 = vcmask 785408
        %v3478 = vsel %vm3476, %v3106, 0
        %v3481 = vsel %vm3476, %v3113, 0
        %v3484 = vsel %vm3476, %v3120, 0
        %v3487 = vsel %vm3476, %v3127, 0
        %3489 = vmatprep.subr.bf16.mxu0 0
        %3490 = vmatpush1.bf16.msra.mxu0 %v3368
        %3491 = vmatprep.subr.bf16.mxu0 0
        %3492 = vmatpush1.bf16.msra.mxu0 %v3369
        %3493 = vmatprep.subr.bf16.mxu0 0
        %3494 = vmatpush1.bf16.msra.mxu0 %v3370
        %3495 = vmatprep.subr.bf16.mxu0 0
        %3496 = vmatpush1.bf16.msra.mxu0 %v3371
        %3497 = vmatprep.subr.bf16.mxu0 0
        %3498 = vmatpush1.bf16.msra.mxu0 %v3372
        %3499 = vmatprep.subr.bf16.mxu0 0
        %3500 = vmatpush1.bf16.msra.mxu0 %v3373
        %3501 = vmatprep.subr.bf16.mxu0 0
        %3502 = vmatpush1.bf16.msra.mxu0 %v3374
        %3503 = vmatprep.subr.bf16.mxu0 0
        %3504 = vmatpush1.bf16.msra.mxu0 %v3375
        %3505 = vmatprep.subr.bf16.mxu0 0
        %3506 = vmatpush1.bf16.msra.mxu0 %v3376
        %3507 = vmatprep.subr.bf16.mxu0 0
        %3508 = vmatpush1.bf16.msra.mxu0 %v3377
        %3509 = vmatprep.subr.bf16.mxu0 0
        %3510 = vmatpush1.bf16.msra.mxu0 %v3378
        %3511 = vmatprep.subr.bf16.mxu0 0
        %3512 = vmatpush1.bf16.msra.mxu0 %v3379
        %3513 = vmatprep.subr.bf16.mxu0 0
        %3514 = vmatpush1.bf16.msra.mxu0 %v3380
        %3515 = vmatprep.subr.bf16.mxu0 0
        %3516 = vmatpush1.bf16.msra.mxu0 %v3381
        %3517 = vmatprep.subr.bf16.mxu0 0
        %3518 = vmatpush1.bf16.msra.mxu0 %v3382
        %3519 = vmatprep.subr.bf16.mxu0 0
        %3520 = vmatpush1.bf16.msra.mxu0 %v3383
        %3521 = vmatprep.mubr.bf16.mxu0 %v3101
        %3522 = vmatmul.mubr.bf16.gmra.mrb[0].mxu0 %v3100
        %v3523 = vpop.f32.mrb[0].mxu0
        %v3524 = vadd.f32 %v3010, %v3523
        %v3525 = vpop.f32.mrb[0].mxu0
        %v3526 = vpop.f32.mrb[0].mxu0
        %v3527 = vadd.f32 %v3010, %v3526
        %v3528 = vpop.f32.mrb[0].mxu0
        %3529 = vmatprep.mubr.bf16.mxu0 %v3108
        %3530 = vmatmul.mubr.bf16.gmra.mrb[0].mxu0 %v3107
        %v3531 = vpop.f32.mrb[0].mxu0
        %v3532 = vadd.f32 %v3010, %v3531
        %v3533 = vpop.f32.mrb[0].mxu0
        %v3534 = vpop.f32.mrb[0].mxu0
        %v3535 = vadd.f32 %v3010, %v3534
        %v3536 = vpop.f32.mrb[0].mxu0
        %3537 = vmatprep.mubr.bf16.mxu0 %v3115
        %3538 = vmatmul.mubr.bf16.gmra.mrb[0].mxu0 %v3114
        %v3539 = vpop.f32.mrb[0].mxu0
        %v3540 = vadd.f32 %v3010, %v3539
        %v3541 = vpop.f32.mrb[0].mxu0
        %v3542 = vpop.f32.mrb[0].mxu0
        %v3543 = vadd.f32 %v3010, %v3542
        %v3544 = vpop.f32.mrb[0].mxu0
        %3545 = vmatprep.mubr.bf16.mxu0 %v3122
        %3546 = vmatmul.mubr.bf16.gmra.mrb[0].mxu0 %v3121
        %v3547 = vpop.f32.mrb[0].mxu0
        %v3548 = vadd.f32 %v3010, %v3547
        %v3549 = vpop.f32.mrb[0].mxu0
        %v3550 = vpop.f32.mrb[0].mxu0
        %v3551 = vadd.f32 %v3010, %v3550
        %v3552 = vpop.f32.mrb[0].mxu0
        %3553 = vdwg.mxu0
        %3554 = vmatprep.subr.bf16.mxu0 0
        %3555 = vmatpush1.bf16.msra.mxu0 %v3384
        %3556 = vmatprep.subr.bf16.mxu0 0
        %3557 = vmatpush1.bf16.msra.mxu0 %v3385
        %3558 = vmatprep.subr.bf16.mxu0 0
        %3559 = vmatpush1.bf16.msra.mxu0 %v3386
        %3560 = vmatprep.subr.bf16.mxu0 0
        %3561 = vmatpush1.bf16.msra.mxu0 %v3387
        %3562 = vmatprep.subr.bf16.mxu0 0
        %3563 = vmatpush1.bf16.msra.mxu0 %v3388
        %3564 = vmatprep.subr.bf16.mxu0 0
        %3565 = vmatpush1.bf16.msra.mxu0 %v3389
        %3566 = vmatprep.subr.bf16.mxu0 0
        %3567 = vmatpush1.bf16.msra.mxu0 %v3390
        %3568 = vmatprep.subr.bf16.mxu0 0
        %3569 = vmatpush1.bf16.msra.mxu0 %v3391
        %3570 = vmatprep.subr.bf16.mxu0 0
        %3571 = vmatpush1.bf16.msra.mxu0 %v3392
        %3572 = vmatprep.subr.bf16.mxu0 0
        %3573 = vmatpush1.bf16.msra.mxu0 %v3393
        %3574 = vmatprep.subr.bf16.mxu0 0
        %3575 = vmatpush1.bf16.msra.mxu0 %v3394
        %3576 = vmatprep.subr.bf16.mxu0 0
        %3577 = vmatpush1.bf16.msra.mxu0 %v3395
        %3578 = vmatprep.subr.bf16.mxu0 0
        %3579 = vmatpush1.bf16.msra.mxu0 %v3396
        %3580 = vmatprep.subr.bf16.mxu0 0
        %3581 = vmatpush1.bf16.msra.mxu0 %v3397
        %3582 = vmatprep.subr.bf16.mxu0 0
        %3583 = vmatpush1.bf16.msra.mxu0 %v3398
        %3584 = vmatprep.subr.bf16.mxu0 0
        %3585 = vmatpush1.bf16.msra.mxu0 %v3399
        %3586 = vmatprep.mubr.bf16.mxu0 %v3103
        %3587 = vmatmul.mubr.bf16.gmra.mrb[0].mxu0 %v3102
        %v3588 = vpop.f32.mrb[0].mxu0
        %v3589 = vadd.f32 %v3524, %v3588
        %v3590 = vpop.f32.mrb[0].mxu0
        %v3591 = vpop.f32.mrb[0].mxu0
        %v3592 = vadd.f32 %v3527, %v3591
        %v3593 = vpop.f32.mrb[0].mxu0
        %3594 = vmatprep.mubr.bf16.mxu0 %v3110
        %3595 = vmatmul.mubr.bf16.gmra.mrb[0].mxu0 %v3109
        %v3596 = vpop.f32.mrb[0].mxu0
        %v3597 = vadd.f32 %v3532, %v3596
        %v3598 = vpop.f32.mrb[0].mxu0
        %v3599 = vpop.f32.mrb[0].mxu0
        %v3600 = vadd.f32 %v3535, %v3599
        %v3601 = vpop.f32.mrb[0].mxu0
        %3602 = vmatprep.mubr.bf16.mxu0 %v3117
        %3603 = vmatmul.mubr.bf16.gmra.mrb[0].mxu0 %v3116
        %v3604 = vpop.f32.mrb[0].mxu0
        %v3605 = vadd.f32 %v3540, %v3604
        %v3606 = vpop.f32.mrb[0].mxu0
        %v3607 = vpop.f32.mrb[0].mxu0
        %v3608 = vadd.f32 %v3543, %v3607
        %v3609 = vpop.f32.mrb[0].mxu0
        %3610 = vmatprep.mubr.bf16.mxu0 %v3124
        %3611 = vmatmul.mubr.bf16.gmra.mrb[0].mxu0 %v3123
        %v3612 = vpop.f32.mrb[0].mxu0
        %v3613 = vadd.f32 %v3548, %v3612
        %v3614 = vpop.f32.mrb[0].mxu0
        %v3615 = vpop.f32.mrb[0].mxu0
        %v3616 = vadd.f32 %v3551, %v3615
        %v3617 = vpop.f32.mrb[0].mxu0
        %3618 = vdwg.mxu0
        %3619 = vmatprep.subr.bf16.mxu0 0
        %3620 = vmatpush1.bf16.msra.mxu0 %v3400
        %3621 = vmatprep.subr.bf16.mxu0 0
        %3622 = vmatpush1.bf16.msra.mxu0 %v3401
        %3623 = vmatprep.subr.bf16.mxu0 0
        %3624 = vmatpush1.bf16.msra.mxu0 %v3402
        %3625 = vmatprep.subr.bf16.mxu0 0
        %3626 = vmatpush1.bf16.msra.mxu0 %v3403
        %3627 = vmatprep.subr.bf16.mxu0 0
        %3628 = vmatpush1.bf16.msra.mxu0 %v3404
        %3629 = vmatprep.subr.bf16.mxu0 0
        %3630 = vmatpush1.bf16.msra.mxu0 %v3405
        %3631 = vmatprep.subr.bf16.mxu0 0
        %3632 = vmatpush1.bf16.msra.mxu0 %v3406
        %3633 = vmatprep.subr.bf16.mxu0 0
        %3634 = vmatpush1.bf16.msra.mxu0 %v3407
        %3635 = vmatprep.subr.bf16.mxu0 0
        %3636 = vmatpush1.bf16.msra.mxu0 %v3408
        %3637 = vmatprep.subr.bf16.mxu0 0
        %3638 = vmatpush1.bf16.msra.mxu0 %v3409
        %3639 = vmatprep.subr.bf16.mxu0 0
        %3640 = vmatpush1.bf16.msra.mxu0 %v3410
        %3641 = vmatprep.subr.bf16.mxu0 0
        %3642 = vmatpush1.bf16.msra.mxu0 %v3411
        %3643 = vmatprep.subr.bf16.mxu0 0
        %3644 = vmatpush1.bf16.msra.mxu0 %v3412
        %3645 = vmatprep.subr.bf16.mxu0 0
        %3646 = vmatpush1.bf16.msra.mxu0 %v3413
        %3647 = vmatprep.subr.bf16.mxu0 0
        %3648 = vmatpush1.bf16.msra.mxu0 %v3414
        %3649 = vmatprep.subr.bf16.mxu0 0
        %3650 = vmatpush1.bf16.msra.mxu0 %v3415
        %3651 = vmatprep.mubr.bf16.mxu0 %v3105
        %3652 = vmatmul.mubr.bf16.gmra.mrb[0].mxu0 %v3104
        %v3653 = vpop.f32.mrb[0].mxu0
        %v3654 = vadd.f32 %v3589, %v3653
        %v3655 = vpop.f32.mrb[0].mxu0
        %v3656 = vpop.f32.mrb[0].mxu0
        %v3657 = vadd.f32 %v3592, %v3656
        %v3658 = vpop.f32.mrb[0].mxu0
        %3659 = vmatprep.mubr.bf16.mxu0 %v3112
        %3660 = vmatmul.mubr.bf16.gmra.mrb[0].mxu0 %v3111
        %v3661 = vpop.f32.mrb[0].mxu0
        %v3662 = vadd.f32 %v3597, %v3661
        %v3663 = vpop.f32.mrb[0].mxu0
        %v3664 = vpop.f32.mrb[0].mxu0
        %v3665 = vadd.f32 %v3600, %v3664
        %v3666 = vpop.f32.mrb[0].mxu0
        %3667 = vmatprep.mubr.bf16.mxu0 %v3119
        %3668 = vmatmul.mubr.bf16.gmra.mrb[0].mxu0 %v3118
        %v3669 = vpop.f32.mrb[0].mxu0
        %v3670 = vadd.f32 %v3605, %v3669
        %v3671 = vpop.f32.mrb[0].mxu0
        %v3672 = vpop.f32.mrb[0].mxu0
        %v3673 = vadd.f32 %v3608, %v3672
        %v3674 = vpop.f32.mrb[0].mxu0
        %3675 = vmatprep.mubr.bf16.mxu0 %v3126
        %3676 = vmatmul.mubr.bf16.gmra.mrb[0].mxu0 %v3125
        %v3677 = vpop.f32.mrb[0].mxu0
        %v3678 = vadd.f32 %v3613, %v3677
        %v3679 = vpop.f32.mrb[0].mxu0
        %v3680 = vpop.f32.mrb[0].mxu0
        %v3681 = vadd.f32 %v3616, %v3680
        %v3682 = vpop.f32.mrb[0].mxu0
        %3683 = vdwg.mxu0
        %3684 = vmatprep.subr.bf16.mxu0 0
        %3685 = vmatpush1.bf16.msra.mxu0 %v3416
        %3686 = vmatprep.subr.bf16.mxu0 0
        %3687 = vmatpush1.bf16.msra.mxu0 %v3417
        %3688 = vmatprep.subr.bf16.mxu0 0
        %3689 = vmatpush1.bf16.msra.mxu0 %v3418
        %3690 = vmatprep.subr.bf16.mxu0 0
        %3691 = vmatpush1.bf16.msra.mxu0 %v3419
        %3692 = vmatprep.subr.bf16.mxu0 0
        %3693 = vmatpush1.bf16.msra.mxu0 %v3420
        %3694 = vmatprep.subr.bf16.mxu0 0
        %3695 = vmatpush1.bf16.msra.mxu0 %v3421
        %3696 = vmatprep.subr.bf16.mxu0 0
        %3697 = vmatpush1.bf16.msra.mxu0 0
        %3698 = vmatprep.subr.bf16.mxu0 0
        %3699 = vmatpush1.bf16.msra.mxu0 0
        %3700 = vmatprep.subr.bf16.mxu0 0
        %3701 = vmatpush1.bf16.msra.mxu0 0
        %3702 = vmatprep.subr.bf16.mxu0 0
        %3703 = vmatpush1.bf16.msra.mxu0 0
        %3704 = vmatprep.subr.bf16.mxu0 0
        %3705 = vmatpush1.bf16.msra.mxu0 0
        %3706 = vmatprep.subr.bf16.mxu0 0
        %3707 = vmatpush1.bf16.msra.mxu0 0
        %3708 = vmatprep.subr.bf16.mxu0 0
        %3709 = vmatpush1.bf16.msra.mxu0 0
        %3710 = vmatprep.subr.bf16.mxu0 0
        %3711 = vmatpush1.bf16.msra.mxu0 0
        %3712 = vmatprep.subr.bf16.mxu0 0
        %3713 = vmatpush1.bf16.msra.mxu0 0
        %3714 = vmatprep.subr.bf16.mxu0 0
        %3715 = vmatpush1.bf16.msra.mxu0 0
        %3716 = vmatprep.mubr.bf16.mxu0 0
        %3717 = vmatmul.mubr.bf16.gmra.mrb[0].mxu0 %v3478
        %v3718 = vpop.f32.mrb[0].mxu0
        %v3719 = vadd.f32 %v3654, %v3718
        %v3720 = vpop.f32.mrb[0].mxu0
        %v3721 = vpop.f32.mrb[0].mxu0
        %v3722 = vadd.f32 %v3657, %v3721
        %v3723 = vpop.f32.mrb[0].mxu0
        %3724 = vmatprep.mubr.bf16.mxu0 0
        %3725 = vmatmul.mubr.bf16.gmra.mrb[0].mxu0 %v3481
        %v3726 = vpop.f32.mrb[0].mxu0
        %v3727 = vadd.f32 %v3662, %v3726
        %v3728 = vpop.f32.mrb[0].mxu0
        %v3729 = vpop.f32.mrb[0].mxu0
        %v3730 = vadd.f32 %v3665, %v3729
        %v3731 = vpop.f32.mrb[0].mxu0
        %3732 = vmatprep.mubr.bf16.mxu0 0
        %3733 = vmatmul.mubr.bf16.gmra.mrb[0].mxu0 %v3484
        %v3734 = vpop.f32.mrb[0].mxu0
        %v3735 = vadd.f32 %v3670, %v3734
        %v3736 = vpop.f32.mrb[0].mxu0
        %v3737 = vpop.f32.mrb[0].mxu0
        %v3738 = vadd.f32 %v3673, %v3737
        %v3739 = vpop.f32.mrb[0].mxu0
        %3740 = vmatprep.mubr.bf16.mxu0 0
        %3741 = vmatmul.mubr.bf16.gmra.mrb[0].mxu0 %v3487
        %v3742 = vpop.f32.mrb[0].mxu0
        %v3743 = vadd.f32 %v3678, %v3742
        %v3744 = vpop.f32.mrb[0].mxu0
        %v3745 = vpop.f32.mrb[0].mxu0
        %v3746 = vadd.f32 %v3681, %v3745
        %v3747 = vpop.f32.mrb[0].mxu0
        %3748 = vdwg.mxu0
        %v3757 = vrot.slane %v3722, 7
        %vm3758 = vcmask 1041409
        %v3759 = vsel %vm3758, %v3757, %v3719
        %v3760 = vrot.slane %v3727, 6
        %vm3761 = vcmask 1042434
        %v3762 = vsel %vm3761, %v3760, %v3759
        %v3763 = vrot.slane %v3730, 5
        %vm3764 = vcmask 1043459
        %v3765 = vsel %vm3764, %v3763, %v3762
        %v3766 = vrot.slane %v3735, 4
        %vm3767 = vcmask 1044484
        %v3768 = vsel %vm3767, %v3766, %v3765
        %v3769 = vrot.slane %v3738, 3
        %vm3770 = vcmask 1045509
        %v3771 = vsel %vm3770, %v3769, %v3768
        %v3772 = vrot.slane %v3743, 2
        %vm3773 = vcmask 1046534
        %v3774 = vsel %vm3773, %v3772, %v3771
        %v3775 = vrot.slane %v3746, 1
        %vm3776 = vcmask 1047559
        %v3777 = vsel %vm3776, %v3775, %v3774
        %v3779 = vrot.slane %v3719, 1
        %v3780 = vsel %vm3758, %v3722, %v3779
        %v3781 = vrot.slane %v3727, 7
        %v3782 = vsel %vm3761, %v3781, %v3780
        %v3783 = vrot.slane %v3730, 6
        %v3784 = vsel %vm3764, %v3783, %v3782
        %v3785 = vrot.slane %v3735, 5
        %v3786 = vsel %vm3767, %v3785, %v3784
        %v3787 = vrot.slane %v3738, 4
        %v3788 = vsel %vm3770, %v3787, %v3786
        %v3789 = vrot.slane %v3743, 3
        %v3790 = vsel %vm3773, %v3789, %v3788
        %v3791 = vrot.slane %v3746, 2
        %v3792 = vsel %vm3776, %v3791, %v3790
        %3793 = vrot.lane.b32.xlu0 %v3792, 64
        %v3794 = vpop.permute.xlu0 %3793
        %v3796 = vsel %vm2128, %v3777, %v3794
        %3797 = vst [vmem:[%s363] sm:$0xff] %v3796
        %v3798 = vsel %vm3764, %v3757, %v3719
        %v3799 = vsel %vm3767, %v3760, %v3798
        %v3800 = vsel %vm3770, %v3763, %v3799
        %v3801 = vsel %vm3773, %v3766, %v3800
        %v3802 = vsel %vm3776, %v3769, %v3801
        %v3803 = vsel %vm3758, %v3775, %v3772
        %v3806 = vsel %vm3764, %v3722, %v3779
        %v3807 = vsel %vm3767, %v3781, %v3806
        %v3808 = vsel %vm3770, %v3783, %v3807
        %v3809 = vsel %vm3773, %v3785, %v3808
        %v3810 = vsel %vm3776, %v3787, %v3809
        %v3811 = vsel %vm3758, %v3791, %v3789
        %3812 = vrot.lane.b32.xlu0 %v3810, 64
        %v3813 = vpop.permute.xlu0 %3812
        %3814 = vrot.lane.b32.xlu0 %v3811, 64
        %v3815 = vpop.permute.xlu0 %3814
        %v3818 = vsel %vm2128, %v3802, %v3813
        %v3819 = vsel %vm2128, %v3803, %v3815
        %vm3822 = vcmask 1045504
        %v3823 = vrot.slane %v3818, 2
        %v3824 = vrot.slane %v3819, 2
        %v3825 = vsel %vm3822, %v3823, %v3824
        %3827 = vst [vmem:[%s363 + $0x8] sm:$0xff] %v3825
        %v3828 = vsel %vm3770, %v3757, %v3719
        %v3829 = vsel %vm3773, %v3760, %v3828
        %v3830 = vsel %vm3776, %v3763, %v3829
        %v3831 = vsel %vm3758, %v3769, %v3766
        %v3832 = vsel %vm3761, %v3772, %v3831
        %v3833 = vsel %vm3764, %v3775, %v3832
        %v3836 = vsel %vm3770, %v3722, %v3779
        %v3837 = vsel %vm3773, %v3781, %v3836
        %v3838 = vsel %vm3776, %v3783, %v3837
        %v3839 = vsel %vm3758, %v3787, %v3785
        %v3840 = vsel %vm3761, %v3789, %v3839
        %v3841 = vsel %vm3764, %v3791, %v3840
        %3842 = vrot.lane.b32.xlu0 %v3838, 64
        %v3843 = vpop.permute.xlu0 %3842
        %3844 = vrot.lane.b32.xlu0 %v3841, 64
        %v3845 = vpop.permute.xlu0 %3844
        %v3848 = vsel %vm2128, %v3830, %v3843
        %v3849 = vsel %vm2128, %v3833, %v3845
        %vm3852 = vcmask 1043456
        %v3853 = vrot.slane %v3848, 4
        %v3854 = vrot.slane %v3849, 4
        %v3855 = vsel %vm3852, %v3853, %v3854
        %3857 = vst [vmem:[%s363 + $0x10] sm:$0xff] %v3855
        %v3858 = vsel %vm3776, %v3757, %v3719
        %v3859 = vsel %vm3758, %v3763, %v3760
        %v3860 = vsel %vm3761, %v3766, %v3859
        %v3861 = vsel %vm3764, %v3769, %v3860
        %v3862 = vsel %vm3767, %v3772, %v3861
        %v3863 = vsel %vm3770, %v3775, %v3862
        %v3866 = vsel %vm3776, %v3722, %v3779
        %v3867 = vsel %vm3758, %v3783, %v3781
        %v3868 = vsel %vm3761, %v3785, %v3867
        %v3869 = vsel %vm3764, %v3787, %v3868
        %v3870 = vsel %vm3767, %v3789, %v3869
        %v3871 = vsel %vm3770, %v3791, %v3870
        %3872 = vrot.lane.b32.xlu0 %v3866, 64
        %v3873 = vpop.permute.xlu0 %3872
        %3874 = vrot.lane.b32.xlu0 %v3871, 64
        %v3875 = vpop.permute.xlu0 %3874
        %v3878 = vsel %vm2128, %v3858, %v3873
        %v3879 = vsel %vm2128, %v3863, %v3875
        %vm3882 = vcmask 1041408
        %v3883 = vrot.slane %v3878, 6
        %v3884 = vrot.slane %v3879, 6
        %v3885 = vsel %vm3882, %v3883, %v3884
        %3887 = vst [vmem:[%s363 + $0x18] sm:$0xff] %v3885
        %s3888 = sand.u32 %s252, 1
        %s3889 = scalar_lea.sflag [#allocation5], %s3888
        %s3890 = sand.u32 %s252, 1
        %s3891 = smul.addr %s3890, 32
        %s3892 = scalar_lea.vmem [#allocation4], %s3891
        // Predicated region
        $region61: #{tpu_custom_call.1} parent=59 // pred_check
          %p3893 = pneg %p262
        $region62: #{tpu_custom_call.1} parent=59 // pred_check_branch
          %3895 = sbr.rel (%p3893) target = $region64
        $region63: #{tpu_custom_call.1} parent=59 // pred_region
          %s3897 = ssub.s32 512, 512
          %3898 = vsyncadd %s3889, %s3897
          %s3899 = smul.addr %s24, 4
          %s3900 = smul.addr %s3899, 128
          %s3901 = scalar_lea.hbm %s10, %s3900
          %s3903 = sshll.u32 %s3892, 4
          %s3904 = int_to_ptr.vmem [resolvable:$true] %s3903
          %3906 = dma.vmem_to_hbm [thread:$0]  %s3904, 512, %s3901, %s3889
        $region64: #{tpu_custom_call.1} parent=59 // pred_fallthru
          _
      $region60: #{tpu_custom_call.1} parent=5 // pred_fallthru
        _
      %p3907 = scmp.le.s32.totalorder 2, %s19
      // Predicated region
      $region65: #{tpu_custom_call.1} parent=5 // pred_check
        %p3908 = pneg %p3907
      $region66: #{tpu_custom_call.1} parent=5 // pred_check_branch
        %3910 = sbr.rel (%p3908) target = $region68
      $region67: #{tpu_custom_call.1} parent=5 // pred_region
        %s3911 = ssub.s32 %s19, 2
        // Predicated region
        $region69: #{tpu_custom_call.1} parent=67 // pred_check
          %p3912 = pneg %p268
        $region70: #{tpu_custom_call.1} parent=67 // pred_check_branch
          %3914 = sbr.rel (%p3912) target = $region72
        $region71: #{tpu_custom_call.1} parent=67 // pred_region
          %s3915 = sand.u32 %s253, 1
          %s3916 = scalar_lea.sflag [#allocation5], %s3915
          %s3917 = sand.u32 %s253, 1
          %s3918 = smul.addr %s3917, 32
          %s3919 = scalar_lea.vmem [#allocation4], %s3918
          %3920 = dma.done %s3916, 512
        $region72: #{tpu_custom_call.1} parent=67 // pred_fallthru
          _
      $region68: #{tpu_custom_call.1} parent=5 // pred_fallthru
        _
    $region6: #{tpu_custom_call.1} parent=1 // loop_footer
      %s23 = sadd.s32 1, %s19
    $region7: #{tpu_custom_call.1} parent=1 // loop_footer_branch
      %18 = sbr.rel target = $region3
    $region8: #{tpu_custom_call.1} parent=1 // loop_exit
      _
    %3921 = vsyncpa [#allocation5], 1
    %s3922 = scalar_lea.sflag [#allocation5], 1
    %3923 = vsyncpa %s3922, 1

</llo_original>
